<compile_context>
chip_gen: v7x
topology: tpu7x:2x2x1
jax: 0.10.0
libtpu: 0.0.40
codegen_flags: <defaults>
</compile_context>

<pallas_src>
import functools

import jax
import jax.numpy as jnp
from jax import lax
from jax.experimental import pallas as pl
from jax.experimental.pallas import tpu as pltpu


NB_COARSE = 16          # coarse histogram bins (pass 1a)
NB_FINE = 16            # fine bins inside each target coarse bin (pass 1b)
_LANE = 128


# ---------------------------------------------------------------------------
# Pallas kernels
# ---------------------------------------------------------------------------

def _coarse_hist_kernel(edges_ref, x_ref, o_ref, *, w_total, tile_w):
    """16-bin per-channel histogram over [ch_min, ch_max], accumulated over W tiles.

    edges_ref : SMEM (2, C) float32 rows = [channel_min, 1 / coarse_bin_width]
    x_ref     : VMEM (1, H, tw)  current channel / W tile
    o_ref     : VMEM (1, 1, 128) float32 counts (lanes 0..15 used), resident block
    """
    c = pl.program_id(0)
    wt = pl.program_id(1)
    lo = edges_ref[0, c]
    inv = edges_ref[1, c]

    x = x_ref[0]                                                     # (H, tw)
    b = jnp.clip(jnp.floor((x - lo) * inv), 0.0, NB_COARSE - 1.0)
    if w_total % tile_w:                                             # ragged last tile
        col = wt * tile_w + lax.broadcasted_iota(jnp.int32, x.shape, 1)
        b = jnp.where(col < w_total, b, -1.0)                        # never matches a bin

    lane = lax.broadcasted_iota(jnp.int32, (1, _LANE), 1)
    hist = jnp.zeros((1, _LANE), jnp.float32)
    for j in range(NB_COARSE):                                       # fully unrolled
        cnt = jnp.sum((b == float(j)).astype(jnp.float32))
        hist = hist + jnp.where(lane == j, cnt, 0.0)

    @pl.when(wt == 0)
    def _():
        o_ref[0] = hist

    @pl.when(wt != 0)
    def _():
        o_ref[0] = o_ref[0] + hist


def _refine_hist_kernel(params_ref, x_ref, o_ref, *, w_total, tile_w):
    """Two 16-bin fine histograms (1% and 99% target coarse bins), W-tile accumulated.

    params_ref : SMEM (4, C) float32 rows = [lo_q01, 1/fine_bw, lo_q99, 1/fine_bw]
    x_ref      : VMEM (1, H, tw)
    o_ref      : VMEM (1, 2, 128) float32; row 0 = 1%-range bins, row 1 = 99%-range bins
    """
    c = pl.program_id(0)
    wt = pl.program_id(1)
    x = x_ref[0]                                                     # (H, tw)

    col_ok = None
    if w_total % tile_w:
        col = wt * tile_w + lax.broadcasted_iota(jnp.int32, x.shape, 1)
        col_ok = col < w_total

    sub = lax.broadcasted_iota(jnp.int32, (2, _LANE), 0)
    lane = lax.broadcasted_iota(jnp.int32, (2, _LANE), 1)
    hist = jnp.zeros((2, _LANE), jnp.float32)
    for r in range(2):
        lo = params_ref[2 * r, c]
        inv = params_ref[2 * r + 1, c]
        # values outside [lo, lo + NB_FINE/inv) land outside [0, NB_FINE) and match no bin
        f = jnp.floor((x - lo) * inv)
        if col_ok is not None:
            f = jnp.where(col_ok, f, -1.0)
        for j in range(NB_FINE):
            cnt = jnp.sum((f == float(j)).astype(jnp.float32))
            hist = hist + jnp.where((sub == r) & (lane == j), cnt, 0.0)

    @pl.when(wt == 0)
    def _():
        o_ref[0] = hist

    @pl.when(wt != 0)
    def _():
        o_ref[0] = o_ref[0] + hist


def _norm_resize_kernel(params_ref, x_ref, wy_ref, wx_ref, o_ref, *, w_total, tile_w):
    """Fused clamp+normalize (single f32 clip) + bf16 bilinear resize, W-tiled accumulation.

    params_ref : SMEM (4, C) float32 rows = [lo, inv, clip_lo, clip_hi]
    x_ref      : VMEM (1, H, tw) f32
    wy_ref     : VMEM (size, H) bf16        row-interpolation matrix (constant block)
    wx_ref     : VMEM (tw, size_pad) bf16   column-interpolation slice (lane-padded)
    o_ref      : VMEM (1, size, size_pad) f32, accumulated across W tiles
    """
    c = pl.program_id(0)
    wt = pl.program_id(1)
    lo = params_ref[0, c]
    inv = params_ref[1, c]
    clip_lo = params_ref[2, c]
    clip_hi = params_ref[3, c]

    # quantile clamp + mean/std window normalization fused into one clip (f32)
    x = jnp.clip((x_ref[0] - lo) * inv, clip_lo, clip_hi)            # (H, tw)
    if w_total % tile_w:                                             # neutralize OOB garbage
        col = wt * tile_w + lax.broadcasted_iota(jnp.int32, x.shape, 1)
        x = jnp.where(col < w_total, x, 0.0)
    xb = x.astype(jnp.bfloat16)

    t = jnp.dot(wy_ref[...], xb, preferred_element_type=jnp.float32)      # (size, tw)
    part = jnp.dot(t.astype(jnp.bfloat16), wx_ref[...],
                   preferred_element_type=jnp.float32)                    # (size, size_pad)

    @pl.when(wt == 0)
    def _():
        o_ref[0] = part

    @pl.when(wt != 0)
    def _():
        o_ref[0] = o_ref[0] + part


# ---------------------------------------------------------------------------
# Glue helpers (tiny, O(C * 16) work only)
# ---------------------------------------------------------------------------

def _round_up(x, m):
    return ((x + m - 1) // m) * m


def _vmem_limit_bytes():
    """Generation-aware VMEM cap: ~100 MiB on 128-MiB parts, ~56 MiB on v7x."""
    try:
        cap = int(pltpu.get_tpu_info().vmem_capacity_bytes)
    except Exception:
        cap = 64 << 20
    return min(cap - (8 << 20), 100 << 20)


def _choose_tile_w(W, H, size, size_pad, budget):
    """Largest 128-aligned (preferably 256-aligned, for the 256-wide MXU) W tile
    whose double-buffered pass-2 footprint fits `budget` bytes."""
    if W <= 128:
        return W

    def footprint(tw):
        return (2 * H * tw * 4              # image tile f32, double-buffered
                + 2 * tw * size_pad * 2     # Wx slice bf16, double-buffered
                + 2 * size * H * 2          # Wy bf16
                + 2 * size * size_pad * 4)  # resident f32 output (+ shadow)

    w128 = (W // 128) * 128
    for granule in (256, 128):
        tw = (min(w128, 2048) // granule) * granule
        while tw >= granule:
            if footprint(tw) <= budget:
                return tw
            tw -= granule
    return 128


def _src_coords(out_size, in_size):
    if out_size == 1:
        return jnp.zeros((1,), jnp.float32)
    return jnp.arange(out_size, dtype=jnp.float32) * (in_size - 1) / (out_size - 1)


def _bilinear_matrix(out_size, in_size):
    """Kornia Resize(align_corners=True) row/col interpolation matrix (out, in), f32."""
    src = _src_coords(out_size, in_size)
    i0 = jnp.clip(jnp.floor(src).astype(jnp.int32), 0, in_size - 1)
    i1 = jnp.clip(i0 + 1, 0, in_size - 1)
    w1 = src - i0.astype(jnp.float32)
    w0 = 1.0 - w1
    cols = jnp.arange(in_size)
    m = (w0[:, None] * (cols[None, :] == i0[:, None]).astype(jnp.float32)
         + w1[:, None] * (cols[None, :] == i1[:, None]).astype(jnp.float32))
    return m.astype(jnp.float32)


def _nearest_indices(out_size, in_size):
    src = _src_coords(out_size, in_size)
    return jnp.clip(jnp.round(src).astype(jnp.int32), 0, in_size - 1)


def _coarse_bin_params(coarse, ch_min, bw_c, t):
    """Locate the coarse bin containing the t-th count: returns (range_lo, cdf_below)."""
    cdf = jnp.cumsum(coarse, axis=1)                                  # (C, 16)
    reach = cdf >= t
    j = jnp.argmax(reach, axis=1)
    j = jnp.where(jnp.any(reach, axis=1), j, NB_COARSE - 1)
    base = jnp.where(
        j > 0,
        jnp.take_along_axis(cdf, jnp.maximum(j - 1, 0)[:, None], axis=1)[:, 0],
        0.0)
    r_lo = ch_min + j.astype(jnp.float32) * bw_c
    return r_lo, base


def _fine_quantile(fine, r_lo, base, bw_f, t):
    """Quantile value from the fine histogram of the target coarse bin (linear interp)."""
    cdf = base[:, None] + jnp.cumsum(fine, axis=1)                    # (C, 16)
    reach = cdf >= t
    any_r = jnp.any(reach, axis=1)
    j = jnp.where(any_r, jnp.argmax(reach, axis=1), NB_FINE - 1)
    prev = jnp.where(
        j > 0,
        jnp.take_along_axis(cdf, jnp.maximum(j - 1, 0)[:, None], axis=1)[:, 0],
        base)
    cnt = jnp.take_along_axis(fine, j[:, None], axis=1)[:, 0]
    frac = jnp.where(cnt > 0.0, (t - prev) / cnt, 1.0)
    frac = jnp.where(any_r, jnp.clip(frac, 0.0, 1.0), 1.0)
    return r_lo + (j.astype(jnp.float32) + frac) * bw_f


# ---------------------------------------------------------------------------
# Wrapper (eval-split forward pass)
# ---------------------------------------------------------------------------

def seg_data_augmentation_softcon(sample, mean, std, size):
    """Eval-split forward of SegDataAugmentationSoftCon (modality == 's1')."""
    image = sample["image"].astype(jnp.float32)     # (C, H, W)
    mask = sample["mask"]                           # (H, W)
    C, H, W = image.shape
    mean = jnp.asarray(mean, jnp.float32)
    std = jnp.asarray(std, jnp.float32)

    size_pad = _round_up(size, 128)                 # lane-dense output width
    vmem_limit = _vmem_limit_bytes()
    tw = _choose_tile_w(W, H, size, size_pad, int(vmem_limit * 0.7))
    n_wt = pl.cdiv(W, tw)
    w_rows = n_wt * tw

    cparams = pltpu.CompilerParams(
        dimension_semantics=("parallel", "arbitrary"),   # C parallel, W-tile reduction
        vmem_limit_bytes=vmem_limit,
    )
    img_spec = pl.BlockSpec((1, H, tw), lambda c, w: (c, 0, w))
    smem_spec = pl.BlockSpec(memory_space=pltpu.MemorySpace.SMEM)

    # --- pass 0: per-channel min / max (sibling reductions; XLA fuses to one read) ---
    ch_min = jnp.min(image, axis=(1, 2))
    ch_max = jnp.max(image, axis=(1, 2))
    rng = jnp.maximum(ch_max - ch_min, 1e-12)
    bw_c = rng / NB_COARSE
    edges = jnp.stack([ch_min, 1.0 / bw_c], axis=0)                  # (2, C)

    # --- pass 1a: coarse 16-bin histogram -------------------------------------
    coarse = pl.pallas_call(
        functools.partial(_coarse_hist_kernel, w_total=W, tile_w=tw),
        out_shape=jax.ShapeDtypeStruct((C, 1, _LANE), jnp.float32),
        grid=(C, n_wt),
        in_specs=[smem_spec, img_spec],
        out_specs=pl.BlockSpec((1, 1, _LANE), lambda c, w: (c, 0, 0)),
        compiler_params=cparams,
    )(edges, image)
    coarse = coarse[:, 0, :NB_COARSE]                                 # (C, 16)

    n_total = float(H * W)
    t_lo = 0.01 * n_total
    t_hi = 0.99 * n_total
    r_lo0, base0 = _coarse_bin_params(coarse, ch_min, bw_c, t_lo)
    r_lo1, base1 = _coarse_bin_params(coarse, ch_min, bw_c, t_hi)
    inv_f = NB_FINE / bw_c
    refine_params = jnp.stack([r_lo0, inv_f, r_lo1, inv_f], axis=0)   # (4, C)

    # --- pass 1b: 16-bin refine inside the two target coarse bins -------------
    fine = pl.pallas_call(
        functools.partial(_refine_hist_kernel, w_total=W, tile_w=tw),
        out_shape=jax.ShapeDtypeStruct((C, 2, _LANE), jnp.float32),
        grid=(C, n_wt),
        in_specs=[smem_spec, img_spec],
        out_specs=pl.BlockSpec((1, 2, _LANE), lambda c, w: (c, 0, 0)),
        compiler_params=cparams,
    )(refine_params, image)
    bw_f = bw_c / NB_FINE
    min_q = _fine_quantile(fine[:, 0, :NB_FINE], r_lo0, base0, bw_f, t_lo)
    max_q = _fine_quantile(fine[:, 1, :NB_FINE], r_lo1, base1, bw_f, t_hi)

    # --- fused clamp(min_q,max_q) -> normalize -> clamp(0,1) parameters -------
    lo = mean - 2.0 * std
    hi = mean + 2.0 * std
    inv = 1.0 / jnp.maximum(hi - lo, 1e-12)                           # epsilon guard
    clip_lo = jnp.clip((min_q - lo) * inv, 0.0, 1.0)                  # exact fusion of the
    clip_hi = jnp.clip((max_q - lo) * inv, 0.0, 1.0)                  # two sequential clamps
    params = jnp.stack([lo, inv, clip_lo, clip_hi], axis=0)           # (4, C)

    # --- interpolation matrices (align_corners=True), bf16 operands -----------
    wy = _bilinear_matrix(size, H).astype(jnp.bfloat16)               # (size, H)
    wx = _bilinear_matrix(size, W).T                                  # (W, size)
    wx = jnp.pad(wx, ((0, w_rows - W), (0, size_pad - size))).astype(jnp.bfloat16)

    # --- pass 2: clamp + normalize + bilinear resize, W-tiled -----------------
    img_pad = pl.pallas_call(
        functools.partial(_norm_resize_kernel, w_total=W, tile_w=tw),
        out_shape=jax.ShapeDtypeStruct((C, size, size_pad), jnp.float32),
        grid=(C, n_wt),
        in_specs=[
            smem_spec,
            img_spec,
            pl.BlockSpec((size, H), lambda c, w: (0, 0)),             # Wy (constant block)
            pl.BlockSpec((tw, size_pad), lambda c, w: (w, 0)),        # Wx slice
        ],
        out_specs=pl.BlockSpec((1, size, size_pad), lambda c, w: (c, 0, 0)),
        compiler_params=cparams,
    )(params, image, wy, wx)
    img_out = img_pad[:, :, :size]                                    # drop lane padding

    # --- mask: nearest-neighbour resize as a plain gather (tiny) --------------
    idx_y = _nearest_indices(size, H)
    idx_x = _nearest_indices(size, W)
    mask_out = mask[idx_y][:, idx_x]

    return img_out, mask_out, sample["meta"]


# ---------------------------------------------------------------------------
# Pure-JAX reference (exact quantiles, f32 resize) for validation
# ---------------------------------------------------------------------------

def _reference(image, mean, std, size):
    C, H, W = image.shape
    flat = image.reshape(C, -1)
    max_q = jnp.quantile(flat, 0.99, axis=1)
    min_q = jnp.quantile(flat, 0.01, axis=1)
    x = jnp.clip(image, min_q[:, None, None], max_q[:, None, None])
    lo = (mean - 2.0 * std)[:, None, None]
    hi = (mean + 2.0 * std)[:, None, None]
    x = jnp.clip((x - lo) / (hi - lo), 0.0, 1.0)
    wy = _bilinear_matrix(size, H)
    wx = _bilinear_matrix(size, W)
    return jnp.einsum("sh,chw,tw->cst", wy, x, wx)


# ---------------------------------------------------------------------------
# Main
# ---------------------------------------------------------------------------

if __name__ == "__main__":
    key = jax.random.PRNGKey(0)
    k_img, k_mask = jax.random.split(key)

    C, H, W = 2, 128, 320      # S1 (VV, VH) bands; W=320 exercises the ragged last W tile
    size = 64                  # Resize target (padded internally to 128 lanes)

    # Deterministic synthetic S1-like input (dB scale) and a binary flood mask.
    image = jax.random.normal(k_img, (C, H, W), dtype=jnp.float32) * 5.0 - 15.0
    mask = jax.random.bernoulli(k_mask, 0.3, (H, W)).astype(jnp.int32)

    # Deterministic "band_stats" for the two S1 bands (synthetic, not a checkpoint).
    band_mean = [-12.5, -20.0]
    band_std = [5.0, 5.9]

    sample = {"image": image, "mask": mask, "meta": {"id": 0}}

    x_out, mask_out, meta = seg_data_augmentation_softcon(sample, band_mean, band_std, size)
    jax.block_until_ready(x_out)
    jax.block_until_ready(mask_out)

    assert x_out.shape == (C, size, size)
    assert mask_out.shape == (size, size)
    # bf16 interpolation weights can overshoot [0, 1] by ~2^-8 per axis
    assert bool(jnp.all((x_out >= -1e-6) & (x_out <= 1.0 + 2e-2)))

    ref = _reference(image, jnp.asarray(band_mean, jnp.float32),
                     jnp.asarray(band_std, jnp.float32), size)
    err = float(jnp.max(jnp.abs(x_out - ref)))
    # tolerance covers the 1/256-resolution histogram quantiles + bf16 matmul operands
    assert err < 0.05, f"max abs err vs reference: {err}"

    print("KERNEL_OK")
</pallas_src>

<mosaic_0001>
module attributes {stable_mosaic.version = 11 : i64} {
  func.func @_coarse_hist_kernel(%arg0: i32, %arg1: i32, %arg2: memref<2x2xf32, #tpu.memory_space<smem>>, %arg3: memref<1x128x256xf32, #tpu.memory_space<vmem>>, %arg4: memref<1x1x128xf32, #tpu.memory_space<vmem>>) attributes {dimension_semantics = [#tpu.dimension_semantics<parallel>, #tpu.dimension_semantics<arbitrary>], iteration_bounds = array<i64: 2, 2>, scalar_prefetch = 0 : i64, scratch_operands = 0 : i64, tpu.core_type = #tpu.core_type<tc>, window_params = [{transform_indices = @transform_0, window_bounds = array<i64: 2, 2>}, {transform_indices = @transform_1, window_bounds = array<i64: 1, 128, 256>}, {transform_indices = @transform_2, window_bounds = array<i64: 1, 1, 128>}]} {
    %c0 = arith.constant 0 : index
    %0 = arith.index_cast %arg0 : i32 to index
    %1 = memref.load %arg2[%c0, %0] : memref<2x2xf32, #tpu.memory_space<smem>>
    %c1 = arith.constant 1 : index
    %2 = arith.index_cast %arg0 : i32 to index
    %3 = memref.load %arg2[%c1, %2] : memref<2x2xf32, #tpu.memory_space<smem>>
    %c0_0 = arith.constant 0 : index
    %c0_1 = arith.constant 0 : index
    %c0_2 = arith.constant 0 : index
    %4 = vector.load %arg3[%c0_0, %c0_1, %c0_2] : memref<1x128x256xf32, #tpu.memory_space<vmem>>, vector<1x128x256xf32>
    %5 = vector.shape_cast %4 : vector<1x128x256xf32> to vector<128x256xf32>
    %6 = vector.broadcast %1 : f32 to vector<128x256xf32>
    %7 = arith.subf %5, %6 : vector<128x256xf32>
    %8 = vector.broadcast %3 : f32 to vector<128x256xf32>
    %9 = arith.mulf %7, %8 : vector<128x256xf32>
    %10 = math.floor %9 : vector<128x256xf32>
    %cst = arith.constant 0.000000e+00 : f32
    %cst_3 = arith.constant 1.500000e+01 : f32
    %11 = vector.broadcast %cst : f32 to vector<128x256xf32>
    %12 = arith.maximumf %11, %10 : vector<128x256xf32>
    %13 = vector.broadcast %cst_3 : f32 to vector<128x256xf32>
    %14 = arith.minimumf %13, %12 : vector<128x256xf32>
    %c256_i32 = arith.constant 256 : i32
    %15 = arith.muli %arg1, %c256_i32 : i32
    %16 = tpu.iota {dimensions = array<i32: 1>} : vector<128x256xi32>
    %17 = vector.broadcast %15 : i32 to vector<128x256xi32>
    %18 = arith.addi %17, %16 : vector<128x256xi32>
    %c320_i32 = arith.constant 320 : i32
    %19 = vector.broadcast %c320_i32 : i32 to vector<128x256xi32>
    %20 = arith.cmpi slt, %18, %19 : vector<128x256xi32>
    %cst_4 = arith.constant -1.000000e+00 : f32
    %21 = vector.broadcast %cst_4 : f32 to vector<128x256xf32>
    %22 = arith.select %20, %14, %21 : vector<128x256xi1>, vector<128x256xf32>
    %23 = tpu.iota {dimensions = array<i32: 1>} : vector<1x128xi32>
    %cst_5 = arith.constant 0.000000e+00 : f32
    %24 = vector.broadcast %cst_5 : f32 to vector<1x128xf32>
    %cst_6 = arith.constant 0.000000e+00 : f32
    %25 = vector.broadcast %cst_6 : f32 to vector<128x256xf32>
    %26 = arith.cmpf oeq, %22, %25 : vector<128x256xf32>
    %27 = arith.extui %26 : vector<128x256xi1> to vector<128x256xi32>
    %28 = arith.sitofp %27 : vector<128x256xi32> to vector<128x256xf32>
    %29 = vector.shape_cast %28 : vector<128x256xf32> to vector<1x128x256xf32>
    %cst_7 = arith.constant dense<0.000000e+00> : vector<1xf32>
    %30 = vector.multi_reduction <add>, %29, %cst_7 [1, 2] : vector<1x128x256xf32> to vector<1xf32>
    %31 = vector.shape_cast %30 : vector<1xf32> to vector<1x1x1xf32>
    %32 = vector.extract %31[0, 0, 0] : f32 from vector<1x1x1xf32>
    %c0_i32 = arith.constant 0 : i32
    %33 = vector.broadcast %c0_i32 : i32 to vector<1x128xi32>
    %34 = arith.cmpi eq, %23, %33 : vector<1x128xi32>
    %cst_8 = arith.constant 0.000000e+00 : f32
    %35 = vector.broadcast %32 : f32 to vector<1x128xf32>
    %36 = vector.broadcast %cst_8 : f32 to vector<1x128xf32>
    %37 = arith.select %34, %35, %36 : vector<1x128xi1>, vector<1x128xf32>
    %38 = arith.addf %24, %37 : vector<1x128xf32>
    %cst_9 = arith.constant 1.000000e+00 : f32
    %39 = vector.broadcast %cst_9 : f32 to vector<128x256xf32>
    %40 = arith.cmpf oeq, %22, %39 : vector<128x256xf32>
    %41 = arith.extui %40 : vector<128x256xi1> to vector<128x256xi32>
    %42 = arith.sitofp %41 : vector<128x256xi32> to vector<128x256xf32>
    %43 = vector.shape_cast %42 : vector<128x256xf32> to vector<1x128x256xf32>
    %cst_10 = arith.constant dense<0.000000e+00> : vector<1xf32>
    %44 = vector.multi_reduction <add>, %43, %cst_10 [1, 2] : vector<1x128x256xf32> to vector<1xf32>
    %45 = vector.shape_cast %44 : vector<1xf32> to vector<1x1x1xf32>
    %46 = vector.extract %45[0, 0, 0] : f32 from vector<1x1x1xf32>
    %c1_i32 = arith.constant 1 : i32
    %47 = vector.broadcast %c1_i32 : i32 to vector<1x128xi32>
    %48 = arith.cmpi eq, %23, %47 : vector<1x128xi32>
    %cst_11 = arith.constant 0.000000e+00 : f32
    %49 = vector.broadcast %46 : f32 to vector<1x128xf32>
    %50 = vector.broadcast %cst_11 : f32 to vector<1x128xf32>
    %51 = arith.select %48, %49, %50 : vector<1x128xi1>, vector<1x128xf32>
    %52 = arith.addf %38, %51 : vector<1x128xf32>
    %cst_12 = arith.constant 2.000000e+00 : f32
    %53 = vector.broadcast %cst_12 : f32 to vector<128x256xf32>
    %54 = arith.cmpf oeq, %22, %53 : vector<128x256xf32>
    %55 = arith.extui %54 : vector<128x256xi1> to vector<128x256xi32>
    %56 = arith.sitofp %55 : vector<128x256xi32> to vector<128x256xf32>
    %57 = vector.shape_cast %56 : vector<128x256xf32> to vector<1x128x256xf32>
    %cst_13 = arith.constant dense<0.000000e+00> : vector<1xf32>
    %58 = vector.multi_reduction <add>, %57, %cst_13 [1, 2] : vector<1x128x256xf32> to vector<1xf32>
    %59 = vector.shape_cast %58 : vector<1xf32> to vector<1x1x1xf32>
    %60 = vector.extract %59[0, 0, 0] : f32 from vector<1x1x1xf32>
    %c2_i32 = arith.constant 2 : i32
    %61 = vector.broadcast %c2_i32 : i32 to vector<1x128xi32>
    %62 = arith.cmpi eq, %23, %61 : vector<1x128xi32>
    %cst_14 = arith.constant 0.000000e+00 : f32
    %63 = vector.broadcast %60 : f32 to vector<1x128xf32>
    %64 = vector.broadcast %cst_14 : f32 to vector<1x128xf32>
    %65 = arith.select %62, %63, %64 : vector<1x128xi1>, vector<1x128xf32>
    %66 = arith.addf %52, %65 : vector<1x128xf32>
    %cst_15 = arith.constant 3.000000e+00 : f32
    %67 = vector.broadcast %cst_15 : f32 to vector<128x256xf32>
    %68 = arith.cmpf oeq, %22, %67 : vector<128x256xf32>
    %69 = arith.extui %68 : vector<128x256xi1> to vector<128x256xi32>
    %70 = arith.sitofp %69 : vector<128x256xi32> to vector<128x256xf32>
    %71 = vector.shape_cast %70 : vector<128x256xf32> to vector<1x128x256xf32>
    %cst_16 = arith.constant dense<0.000000e+00> : vector<1xf32>
    %72 = vector.multi_reduction <add>, %71, %cst_16 [1, 2] : vector<1x128x256xf32> to vector<1xf32>
    %73 = vector.shape_cast %72 : vector<1xf32> to vector<1x1x1xf32>
    %74 = vector.extract %73[0, 0, 0] : f32 from vector<1x1x1xf32>
    %c3_i32 = arith.constant 3 : i32
    %75 = vector.broadcast %c3_i32 : i32 to vector<1x128xi32>
    %76 = arith.cmpi eq, %23, %75 : vector<1x128xi32>
    %cst_17 = arith.constant 0.000000e+00 : f32
    %77 = vector.broadcast %74 : f32 to vector<1x128xf32>
    %78 = vector.broadcast %cst_17 : f32 to vector<1x128xf32>
    %79 = arith.select %76, %77, %78 : vector<1x128xi1>, vector<1x128xf32>
    %80 = arith.addf %66, %79 : vector<1x128xf32>
    %cst_18 = arith.constant 4.000000e+00 : f32
    %81 = vector.broadcast %cst_18 : f32 to vector<128x256xf32>
    %82 = arith.cmpf oeq, %22, %81 : vector<128x256xf32>
    %83 = arith.extui %82 : vector<128x256xi1> to vector<128x256xi32>
    %84 = arith.sitofp %83 : vector<128x256xi32> to vector<128x256xf32>
    %85 = vector.shape_cast %84 : vector<128x256xf32> to vector<1x128x256xf32>
    %cst_19 = arith.constant dense<0.000000e+00> : vector<1xf32>
    %86 = vector.multi_reduction <add>, %85, %cst_19 [1, 2] : vector<1x128x256xf32> to vector<1xf32>
    %87 = vector.shape_cast %86 : vector<1xf32> to vector<1x1x1xf32>
    %88 = vector.extract %87[0, 0, 0] : f32 from vector<1x1x1xf32>
    %c4_i32 = arith.constant 4 : i32
    %89 = vector.broadcast %c4_i32 : i32 to vector<1x128xi32>
    %90 = arith.cmpi eq, %23, %89 : vector<1x128xi32>
    %cst_20 = arith.constant 0.000000e+00 : f32
    %91 = vector.broadcast %88 : f32 to vector<1x128xf32>
    %92 = vector.broadcast %cst_20 : f32 to vector<1x128xf32>
    %93 = arith.select %90, %91, %92 : vector<1x128xi1>, vector<1x128xf32>
    %94 = arith.addf %80, %93 : vector<1x128xf32>
    %cst_21 = arith.constant 5.000000e+00 : f32
    %95 = vector.broadcast %cst_21 : f32 to vector<128x256xf32>
    %96 = arith.cmpf oeq, %22, %95 : vector<128x256xf32>
    %97 = arith.extui %96 : vector<128x256xi1> to vector<128x256xi32>
    %98 = arith.sitofp %97 : vector<128x256xi32> to vector<128x256xf32>
    %99 = vector.shape_cast %98 : vector<128x256xf32> to vector<1x128x256xf32>
    %cst_22 = arith.constant dense<0.000000e+00> : vector<1xf32>
    %100 = vector.multi_reduction <add>, %99, %cst_22 [1, 2] : vector<1x128x256xf32> to vector<1xf32>
    %101 = vector.shape_cast %100 : vector<1xf32> to vector<1x1x1xf32>
    %102 = vector.extract %101[0, 0, 0] : f32 from vector<1x1x1xf32>
    %c5_i32 = arith.constant 5 : i32
    %103 = vector.broadcast %c5_i32 : i32 to vector<1x128xi32>
    %104 = arith.cmpi eq, %23, %103 : vector<1x128xi32>
    %cst_23 = arith.constant 0.000000e+00 : f32
    %105 = vector.broadcast %102 : f32 to vector<1x128xf32>
    %106 = vector.broadcast %cst_23 : f32 to vector<1x128xf32>
    %107 = arith.select %104, %105, %106 : vector<1x128xi1>, vector<1x128xf32>
    %108 = arith.addf %94, %107 : vector<1x128xf32>
    %cst_24 = arith.constant 6.000000e+00 : f32
    %109 = vector.broadcast %cst_24 : f32 to vector<128x256xf32>
    %110 = arith.cmpf oeq, %22, %109 : vector<128x256xf32>
    %111 = arith.extui %110 : vector<128x256xi1> to vector<128x256xi32>
    %112 = arith.sitofp %111 : vector<128x256xi32> to vector<128x256xf32>
    %113 = vector.shape_cast %112 : vector<128x256xf32> to vector<1x128x256xf32>
    %cst_25 = arith.constant dense<0.000000e+00> : vector<1xf32>
    %114 = vector.multi_reduction <add>, %113, %cst_25 [1, 2] : vector<1x128x256xf32> to vector<1xf32>
    %115 = vector.shape_cast %114 : vector<1xf32> to vector<1x1x1xf32>
    %116 = vector.extract %115[0, 0, 0] : f32 from vector<1x1x1xf32>
    %c6_i32 = arith.constant 6 : i32
    %117 = vector.broadcast %c6_i32 : i32 to vector<1x128xi32>
    %118 = arith.cmpi eq, %23, %117 : vector<1x128xi32>
    %cst_26 = arith.constant 0.000000e+00 : f32
    %119 = vector.broadcast %116 : f32 to vector<1x128xf32>
    %120 = vector.broadcast %cst_26 : f32 to vector<1x128xf32>
    %121 = arith.select %118, %119, %120 : vector<1x128xi1>, vector<1x128xf32>
    %122 = arith.addf %108, %121 : vector<1x128xf32>
    %cst_27 = arith.constant 7.000000e+00 : f32
    %123 = vector.broadcast %cst_27 : f32 to vector<128x256xf32>
    %124 = arith.cmpf oeq, %22, %123 : vector<128x256xf32>
    %125 = arith.extui %124 : vector<128x256xi1> to vector<128x256xi32>
    %126 = arith.sitofp %125 : vector<128x256xi32> to vector<128x256xf32>
    %127 = vector.shape_cast %126 : vector<128x256xf32> to vector<1x128x256xf32>
    %cst_28 = arith.constant dense<0.000000e+00> : vector<1xf32>
    %128 = vector.multi_reduction <add>, %127, %cst_28 [1, 2] : vector<1x128x256xf32> to vector<1xf32>
    %129 = vector.shape_cast %128 : vector<1xf32> to vector<1x1x1xf32>
    %130 = vector.extract %129[0, 0, 0] : f32 from vector<1x1x1xf32>
    %c7_i32 = arith.constant 7 : i32
    %131 = vector.broadcast %c7_i32 : i32 to vector<1x128xi32>
    %132 = arith.cmpi eq, %23, %131 : vector<1x128xi32>
    %cst_29 = arith.constant 0.000000e+00 : f32
    %133 = vector.broadcast %130 : f32 to vector<1x128xf32>
    %134 = vector.broadcast %cst_29 : f32 to vector<1x128xf32>
    %135 = arith.select %132, %133, %134 : vector<1x128xi1>, vector<1x128xf32>
    %136 = arith.addf %122, %135 : vector<1x128xf32>
    %cst_30 = arith.constant 8.000000e+00 : f32
    %137 = vector.broadcast %cst_30 : f32 to vector<128x256xf32>
    %138 = arith.cmpf oeq, %22, %137 : vector<128x256xf32>
    %139 = arith.extui %138 : vector<128x256xi1> to vector<128x256xi32>
    %140 = arith.sitofp %139 : vector<128x256xi32> to vector<128x256xf32>
    %141 = vector.shape_cast %140 : vector<128x256xf32> to vector<1x128x256xf32>
    %cst_31 = arith.constant dense<0.000000e+00> : vector<1xf32>
    %142 = vector.multi_reduction <add>, %141, %cst_31 [1, 2] : vector<1x128x256xf32> to vector<1xf32>
    %143 = vector.shape_cast %142 : vector<1xf32> to vector<1x1x1xf32>
    %144 = vector.extract %143[0, 0, 0] : f32 from vector<1x1x1xf32>
    %c8_i32 = arith.constant 8 : i32
    %145 = vector.broadcast %c8_i32 : i32 to vector<1x128xi32>
    %146 = arith.cmpi eq, %23, %145 : vector<1x128xi32>
    %cst_32 = arith.constant 0.000000e+00 : f32
    %147 = vector.broadcast %144 : f32 to vector<1x128xf32>
    %148 = vector.broadcast %cst_32 : f32 to vector<1x128xf32>
    %149 = arith.select %146, %147, %148 : vector<1x128xi1>, vector<1x128xf32>
    %150 = arith.addf %136, %149 : vector<1x128xf32>
    %cst_33 = arith.constant 9.000000e+00 : f32
    %151 = vector.broadcast %cst_33 : f32 to vector<128x256xf32>
    %152 = arith.cmpf oeq, %22, %151 : vector<128x256xf32>
    %153 = arith.extui %152 : vector<128x256xi1> to vector<128x256xi32>
    %154 = arith.sitofp %153 : vector<128x256xi32> to vector<128x256xf32>
    %155 = vector.shape_cast %154 : vector<128x256xf32> to vector<1x128x256xf32>
    %cst_34 = arith.constant dense<0.000000e+00> : vector<1xf32>
    %156 = vector.multi_reduction <add>, %155, %cst_34 [1, 2] : vector<1x128x256xf32> to vector<1xf32>
    %157 = vector.shape_cast %156 : vector<1xf32> to vector<1x1x1xf32>
    %158 = vector.extract %157[0, 0, 0] : f32 from vector<1x1x1xf32>
    %c9_i32 = arith.constant 9 : i32
    %159 = vector.broadcast %c9_i32 : i32 to vector<1x128xi32>
    %160 = arith.cmpi eq, %23, %159 : vector<1x128xi32>
    %cst_35 = arith.constant 0.000000e+00 : f32
    %161 = vector.broadcast %158 : f32 to vector<1x128xf32>
    %162 = vector.broadcast %cst_35 : f32 to vector<1x128xf32>
    %163 = arith.select %160, %161, %162 : vector<1x128xi1>, vector<1x128xf32>
    %164 = arith.addf %150, %163 : vector<1x128xf32>
    %cst_36 = arith.constant 1.000000e+01 : f32
    %165 = vector.broadcast %cst_36 : f32 to vector<128x256xf32>
    %166 = arith.cmpf oeq, %22, %165 : vector<128x256xf32>
    %167 = arith.extui %166 : vector<128x256xi1> to vector<128x256xi32>
    %168 = arith.sitofp %167 : vector<128x256xi32> to vector<128x256xf32>
    %169 = vector.shape_cast %168 : vector<128x256xf32> to vector<1x128x256xf32>
    %cst_37 = arith.constant dense<0.000000e+00> : vector<1xf32>
    %170 = vector.multi_reduction <add>, %169, %cst_37 [1, 2] : vector<1x128x256xf32> to vector<1xf32>
    %171 = vector.shape_cast %170 : vector<1xf32> to vector<1x1x1xf32>
    %172 = vector.extract %171[0, 0, 0] : f32 from vector<1x1x1xf32>
    %c10_i32 = arith.constant 10 : i32
    %173 = vector.broadcast %c10_i32 : i32 to vector<1x128xi32>
    %174 = arith.cmpi eq, %23, %173 : vector<1x128xi32>
    %cst_38 = arith.constant 0.000000e+00 : f32
    %175 = vector.broadcast %172 : f32 to vector<1x128xf32>
    %176 = vector.broadcast %cst_38 : f32 to vector<1x128xf32>
    %177 = arith.select %174, %175, %176 : vector<1x128xi1>, vector<1x128xf32>
    %178 = arith.addf %164, %177 : vector<1x128xf32>
    %cst_39 = arith.constant 1.100000e+01 : f32
    %179 = vector.broadcast %cst_39 : f32 to vector<128x256xf32>
    %180 = arith.cmpf oeq, %22, %179 : vector<128x256xf32>
    %181 = arith.extui %180 : vector<128x256xi1> to vector<128x256xi32>
    %182 = arith.sitofp %181 : vector<128x256xi32> to vector<128x256xf32>
    %183 = vector.shape_cast %182 : vector<128x256xf32> to vector<1x128x256xf32>
    %cst_40 = arith.constant dense<0.000000e+00> : vector<1xf32>
    %184 = vector.multi_reduction <add>, %183, %cst_40 [1, 2] : vector<1x128x256xf32> to vector<1xf32>
    %185 = vector.shape_cast %184 : vector<1xf32> to vector<1x1x1xf32>
    %186 = vector.extract %185[0, 0, 0] : f32 from vector<1x1x1xf32>
    %c11_i32 = arith.constant 11 : i32
    %187 = vector.broadcast %c11_i32 : i32 to vector<1x128xi32>
    %188 = arith.cmpi eq, %23, %187 : vector<1x128xi32>
    %cst_41 = arith.constant 0.000000e+00 : f32
    %189 = vector.broadcast %186 : f32 to vector<1x128xf32>
    %190 = vector.broadcast %cst_41 : f32 to vector<1x128xf32>
    %191 = arith.select %188, %189, %190 : vector<1x128xi1>, vector<1x128xf32>
    %192 = arith.addf %178, %191 : vector<1x128xf32>
    %cst_42 = arith.constant 1.200000e+01 : f32
    %193 = vector.broadcast %cst_42 : f32 to vector<128x256xf32>
    %194 = arith.cmpf oeq, %22, %193 : vector<128x256xf32>
    %195 = arith.extui %194 : vector<128x256xi1> to vector<128x256xi32>
    %196 = arith.sitofp %195 : vector<128x256xi32> to vector<128x256xf32>
    %197 = vector.shape_cast %196 : vector<128x256xf32> to vector<1x128x256xf32>
    %cst_43 = arith.constant dense<0.000000e+00> : vector<1xf32>
    %198 = vector.multi_reduction <add>, %197, %cst_43 [1, 2] : vector<1x128x256xf32> to vector<1xf32>
    %199 = vector.shape_cast %198 : vector<1xf32> to vector<1x1x1xf32>
    %200 = vector.extract %199[0, 0, 0] : f32 from vector<1x1x1xf32>
    %c12_i32 = arith.constant 12 : i32
    %201 = vector.broadcast %c12_i32 : i32 to vector<1x128xi32>
    %202 = arith.cmpi eq, %23, %201 : vector<1x128xi32>
    %cst_44 = arith.constant 0.000000e+00 : f32
    %203 = vector.broadcast %200 : f32 to vector<1x128xf32>
    %204 = vector.broadcast %cst_44 : f32 to vector<1x128xf32>
    %205 = arith.select %202, %203, %204 : vector<1x128xi1>, vector<1x128xf32>
    %206 = arith.addf %192, %205 : vector<1x128xf32>
    %cst_45 = arith.constant 1.300000e+01 : f32
    %207 = vector.broadcast %cst_45 : f32 to vector<128x256xf32>
    %208 = arith.cmpf oeq, %22, %207 : vector<128x256xf32>
    %209 = arith.extui %208 : vector<128x256xi1> to vector<128x256xi32>
    %210 = arith.sitofp %209 : vector<128x256xi32> to vector<128x256xf32>
    %211 = vector.shape_cast %210 : vector<128x256xf32> to vector<1x128x256xf32>
    %cst_46 = arith.constant dense<0.000000e+00> : vector<1xf32>
    %212 = vector.multi_reduction <add>, %211, %cst_46 [1, 2] : vector<1x128x256xf32> to vector<1xf32>
    %213 = vector.shape_cast %212 : vector<1xf32> to vector<1x1x1xf32>
    %214 = vector.extract %213[0, 0, 0] : f32 from vector<1x1x1xf32>
    %c13_i32 = arith.constant 13 : i32
    %215 = vector.broadcast %c13_i32 : i32 to vector<1x128xi32>
    %216 = arith.cmpi eq, %23, %215 : vector<1x128xi32>
    %cst_47 = arith.constant 0.000000e+00 : f32
    %217 = vector.broadcast %214 : f32 to vector<1x128xf32>
    %218 = vector.broadcast %cst_47 : f32 to vector<1x128xf32>
    %219 = arith.select %216, %217, %218 : vector<1x128xi1>, vector<1x128xf32>
    %220 = arith.addf %206, %219 : vector<1x128xf32>
    %cst_48 = arith.constant 1.400000e+01 : f32
    %221 = vector.broadcast %cst_48 : f32 to vector<128x256xf32>
    %222 = arith.cmpf oeq, %22, %221 : vector<128x256xf32>
    %223 = arith.extui %222 : vector<128x256xi1> to vector<128x256xi32>
    %224 = arith.sitofp %223 : vector<128x256xi32> to vector<128x256xf32>
    %225 = vector.shape_cast %224 : vector<128x256xf32> to vector<1x128x256xf32>
    %cst_49 = arith.constant dense<0.000000e+00> : vector<1xf32>
    %226 = vector.multi_reduction <add>, %225, %cst_49 [1, 2] : vector<1x128x256xf32> to vector<1xf32>
    %227 = vector.shape_cast %226 : vector<1xf32> to vector<1x1x1xf32>
    %228 = vector.extract %227[0, 0, 0] : f32 from vector<1x1x1xf32>
    %c14_i32 = arith.constant 14 : i32
    %229 = vector.broadcast %c14_i32 : i32 to vector<1x128xi32>
    %230 = arith.cmpi eq, %23, %229 : vector<1x128xi32>
    %cst_50 = arith.constant 0.000000e+00 : f32
    %231 = vector.broadcast %228 : f32 to vector<1x128xf32>
    %232 = vector.broadcast %cst_50 : f32 to vector<1x128xf32>
    %233 = arith.select %230, %231, %232 : vector<1x128xi1>, vector<1x128xf32>
    %234 = arith.addf %220, %233 : vector<1x128xf32>
    %cst_51 = arith.constant 1.500000e+01 : f32
    %235 = vector.broadcast %cst_51 : f32 to vector<128x256xf32>
    %236 = arith.cmpf oeq, %22, %235 : vector<128x256xf32>
    %237 = arith.extui %236 : vector<128x256xi1> to vector<128x256xi32>
    %238 = arith.sitofp %237 : vector<128x256xi32> to vector<128x256xf32>
    %239 = vector.shape_cast %238 : vector<128x256xf32> to vector<1x128x256xf32>
    %cst_52 = arith.constant dense<0.000000e+00> : vector<1xf32>
    %240 = vector.multi_reduction <add>, %239, %cst_52 [1, 2] : vector<1x128x256xf32> to vector<1xf32>
    %241 = vector.shape_cast %240 : vector<1xf32> to vector<1x1x1xf32>
    %242 = vector.extract %241[0, 0, 0] : f32 from vector<1x1x1xf32>
    %c15_i32 = arith.constant 15 : i32
    %243 = vector.broadcast %c15_i32 : i32 to vector<1x128xi32>
    %244 = arith.cmpi eq, %23, %243 : vector<1x128xi32>
    %cst_53 = arith.constant 0.000000e+00 : f32
    %245 = vector.broadcast %242 : f32 to vector<1x128xf32>
    %246 = vector.broadcast %cst_53 : f32 to vector<1x128xf32>
    %247 = arith.select %244, %245, %246 : vector<1x128xi1>, vector<1x128xf32>
    %248 = arith.addf %234, %247 : vector<1x128xf32>
    %c0_i32_54 = arith.constant 0 : i32
    %249 = arith.cmpi eq, %arg1, %c0_i32_54 : i32
    %250 = arith.extui %249 : i1 to i32
    %c0_i32_55 = arith.constant 0 : i32
    %251 = arith.cmpi ne, %250, %c0_i32_55 : i32
    scf.if %251 {
      %c0_58 = arith.constant 0 : index
      %c0_59 = arith.constant 0 : index
      %c0_60 = arith.constant 0 : index
      %255 = vector.load %arg4[%c0_58, %c0_59, %c0_60] : memref<1x1x128xf32, #tpu.memory_space<vmem>>, vector<1x1x128xf32>
      %256 = vector.shape_cast %255 : vector<1x1x128xf32> to vector<1x128xf32>
      %257 = vector.shape_cast %248 : vector<1x128xf32> to vector<1x1x128xf32>
      tpu.vector_store %arg4[%c0_58, %c0_59, %c0_60], %257 {strides = array<i32>} : memref<1x1x128xf32, #tpu.memory_space<vmem>>, vector<1x1x128xf32>,
    } else {
    }
    %c0_i32_56 = arith.constant 0 : i32
    %252 = arith.cmpi ne, %arg1, %c0_i32_56 : i32
    %253 = arith.extui %252 : i1 to i32
    %c0_i32_57 = arith.constant 0 : i32
    %254 = arith.cmpi ne, %253, %c0_i32_57 : i32
    scf.if %254 {
      %c0_58 = arith.constant 0 : index
      %c0_59 = arith.constant 0 : index
      %c0_60 = arith.constant 0 : index
      %255 = vector.load %arg4[%c0_58, %c0_59, %c0_60] : memref<1x1x128xf32, #tpu.memory_space<vmem>>, vector<1x1x128xf32>
      %256 = vector.shape_cast %255 : vector<1x1x128xf32> to vector<1x128xf32>
      %257 = arith.addf %256, %248 : vector<1x128xf32>
      %c0_61 = arith.constant 0 : index
      %c0_62 = arith.constant 0 : index
      %c0_63 = arith.constant 0 : index
      %258 = vector.load %arg4[%c0_61, %c0_62, %c0_63] : memref<1x1x128xf32, #tpu.memory_space<vmem>>, vector<1x1x128xf32>
      %259 = vector.shape_cast %258 : vector<1x1x128xf32> to vector<1x128xf32>
      %260 = vector.shape_cast %257 : vector<1x128xf32> to vector<1x1x128xf32>
      tpu.vector_store %arg4[%c0_61, %c0_62, %c0_63], %260 {strides = array<i32>} : memref<1x1x128xf32, #tpu.memory_space<vmem>>, vector<1x1x128xf32>,
    } else {
    }
    return
  }
  func.func @transform_0(%arg0: i32, %arg1: i32) -> (i32, i32) {
    %c0_i32 = arith.constant 0 : i32
    %c0_i32_0 = arith.constant 0 : i32
    %c0_i32_1 = arith.constant 0 : i32
    return %c0_i32, %c0_i32_0 : i32, i32
  }
  func.func @transform_1(%arg0: i32, %arg1: i32) -> (i32, i32, i32) {
    %c0_i32 = arith.constant 0 : i32
    %c0_i32_0 = arith.constant 0 : i32
    return %arg0, %c0_i32, %arg1 : i32, i32, i32
  }
  func.func @transform_2(%arg0: i32, %arg1: i32) -> (i32, i32, i32) {
    %c0_i32 = arith.constant 0 : i32
    %c0_i32_0 = arith.constant 0 : i32
    %c0_i32_1 = arith.constant 0 : i32
    return %arg0, %c0_i32, %c0_i32_0 : i32, i32, i32
  }
}

</mosaic_0001>

<llo_original>
// kernel: tpu_custom_call.1
$region0: #{tpu_custom_call.1}
  #allocation0 [shape = 'u32[]', space=smem, size = 0x4, offset = 0x4, fixed_abs, tag = 'smem constant byte address 0x4 - core index']
  #allocation1 [shape = 'u32[144,128]{1,0:T(1,128)}', space=vmem, size = 0x12000, scoped, tag = 'internal scratch']
  %s0 = inlined_call_operand.vmem [shape: f32[2,2], index: 0, kind: input, shape index: {}]
  %s1 = inlined_call_operand.vmem [shape: f32[2,128,320], index: 1, kind: input, shape index: {}]
  %s2 = inlined_call_operand.hbm [shape: f32[2,1,128], index: 2, kind: output, shape index: {}]
  %s3 = sld [smem:[#allocation0]]
  $region119: #{tpu_custom_call.1} parent=0
    _
  %s5 = ssub.s32 1, %s3
  %s6 = scalar_select 0, %s5, %s3
  $region1: #{tpu_custom_call.1} parent=0
    #allocation2 [shape = 'u8[1024]{0}', space=smem, size = 0x400, scoped, tag = 'input window, operand 0, single buffered']
    #allocation3 [shape = 's32[2]{0}', space=sflag, size = 0x8, scoped, tag = 'scoped memory for tpu_custom_call.1']
    #allocation4 [shape = 's32[2]{0}', space=sflag, size = 0x8, scoped, tag = 'scoped memory for tpu_custom_call.1']
    #allocation5 [shape = 'u8[262144]{0}', space=vmem, size = 0x40000, scoped, tag = 'input window, operand 1']
    #allocation6 [shape = 'u8[1024]{0}', space=vmem, size = 0x400, scoped, tag = 'output window, operand 0']
    %7 = vsyncpa [#allocation4], 0
    %8 = vsyncpa [#allocation3], 0
    %s9 = scalar_lea.sflag [#allocation3], 1
    %10 = vsyncpa %s9, 0
    loop: start=0, step=1, limit=6
    $region2: #{tpu_custom_call.1} parent=1 // loop_pre_header
      _
    $region3: #{tpu_custom_call.1} parent=1 // loop_header
      %s12 = sphi 0, %s16
      %p13 = scmp.ge.s32.totalorder %s12, 6
      %s19 = sphi 0, %s31
      %s20 = sphi 0, %s27
      %s21 = sphi 0, %s19
      %s22 = sphi 0, %s20
      %s23 = sphi 0, %s21
      %s24 = sphi 0, %s22
      %s32 = sphi 0, %s32
      %s34 = sphi 0, %s32
      %s35 = sphi 0, %s34
      %s49 = sphi 0, %s35
      %s57 = sphi 0, %s59
      %s60 = sphi 0, %s57
      %s61 = sphi 0, %s60
      %s77 = sphi 0, %s61
      %s83 = sphi 0, %s85
      %s86 = sphi 0, %s83
      %s87 = sphi 0, %s86
      %s103 = sphi 0, %s87
    $region4: #{tpu_custom_call.1} parent=1 // loop_header_branch
      %15 = sbr.rel (%p13) target = $region8
    $region5: #{tpu_custom_call.1} parent=1 // loop_body
      %s17 = ssub.s32 %s12, 1
      %s18 = ssub.s32 %s12, 2
      %s25 = sadd.s32 1, %s20
      %p26 = scmp.ge.s32.totalorder %s25, 2
      %s27 = scalar_select %p26, 0, %s25
      %s28 = sadd.s32 1, %s19
      %s29 = scalar_select %p26, %s28, %s19
      %p30 = scmp.ge.s32.totalorder %s29, 2
      %s31 = scalar_select %p30, 0, %s29
      %s33 = sadd.s32 %s32, 1
      %p36 = scmp.eq.s32.totalorder %s12, 3
      %p37 = scmp.ne.s32.totalorder %s32, %s34
      %p38 = scmp.eq.s32.totalorder %s12, 0
      %p39 = por %p37, %p38
      %p40 = scmp.ne.s32.totalorder %s32, %s34
      %p41 = scmp.eq.s32.totalorder %s17, 3
      %p42 = por %p40, %p41
      %p43 = scmp.ne.s32.totalorder %s34, %s35
      %p44 = scmp.eq.s32.totalorder %s17, 0
      %p45 = por %p43, %p44
      %p46 = scmp.ne.s32.totalorder %s34, %s35
      %p47 = scmp.eq.s32.totalorder %s18, 3
      %p48 = por %p46, %p47
      %p50 = scmp.ne.s32.totalorder %s35, %s49
      %p51 = scmp.eq.s32.totalorder %s18, 0
      %p52 = por %p50, %p51
      %s53 = ssub.s32 %s19, %s31
      %s54 = ssub.s32 %s20, %s27
      %s55 = sor.u32 %s53, %s54
      %p56 = scmp.eq.s32.totalorder %s55, 0
      %s58 = sadd.s32 %s57, 1
      %s59 = scalar_select %p56, %s57, %s58
      %p62 = pneg %p56
      %p63 = scmp.eq.s32.totalorder %s12, 3
      %p64 = por %p62, %p63
      %p65 = scmp.ne.s32.totalorder %s57, %s60
      %p66 = scmp.eq.s32.totalorder %s12, 0
      %p67 = por %p65, %p66
      %p68 = scmp.ne.s32.totalorder %s57, %s60
      %p69 = scmp.eq.s32.totalorder %s17, 3
      %p70 = por %p68, %p69
      %p71 = scmp.ne.s32.totalorder %s60, %s61
      %p72 = scmp.eq.s32.totalorder %s17, 0
      %p73 = por %p71, %p72
      %p74 = scmp.ne.s32.totalorder %s60, %s61
      %p75 = scmp.eq.s32.totalorder %s18, 3
      %p76 = por %p74, %p75
      %p78 = scmp.ne.s32.totalorder %s61, %s77
      %p79 = scmp.eq.s32.totalorder %s18, 0
      %p80 = por %p78, %p79
      %s81 = ssub.s32 %s19, %s31
      %p82 = scmp.eq.s32.totalorder %s81, 0
      %s84 = sadd.s32 %s83, 1
      %s85 = scalar_select %p82, %s83, %s84
      %p88 = pneg %p82
      %p89 = scmp.eq.s32.totalorder %s12, 3
      %p90 = por %p88, %p89
      %p91 = scmp.ne.s32.totalorder %s83, %s86
      %p92 = scmp.eq.s32.totalorder %s12, 0
      %p93 = por %p91, %p92
      %p94 = scmp.ne.s32.totalorder %s83, %s86
      %p95 = scmp.eq.s32.totalorder %s17, 3
      %p96 = por %p94, %p95
      %p97 = scmp.ne.s32.totalorder %s86, %s87
      %p98 = scmp.eq.s32.totalorder %s17, 0
      %p99 = por %p97, %p98
      %p100 = scmp.ne.s32.totalorder %s86, %s87
      %p101 = scmp.eq.s32.totalorder %s18, 3
      %p102 = por %p100, %p101
      %p104 = scmp.ne.s32.totalorder %s87, %s103
      %p105 = scmp.eq.s32.totalorder %s18, 0
      %p106 = por %p104, %p105
      %p107 = scmp.le.s32.totalorder 1, %s12
      %p108 = scmp.lt.s32.totalorder %s12, 5
      %p109 = pnand %p107, %p108
      %p110 = pneg %p109
      // Predicated region
      $region9: #{tpu_custom_call.1} parent=5 // pred_check
        _
      $region10: #{tpu_custom_call.1} parent=5 // pred_check_branch
        %112 = sbr.rel (%p109) target = $region12
      $region11: #{tpu_custom_call.1} parent=5 // pred_region
        %s113 = ssub.s32 %s12, 1
        // Predicated region
        $region13: #{tpu_custom_call.1} parent=11 // pred_check
          %p114 = pneg %p45
        $region14: #{tpu_custom_call.1} parent=11 // pred_check_branch
          %116 = sbr.rel (%p114) target = $region16
        $region15: #{tpu_custom_call.1} parent=11 // pred_region
          %s118 = ssub.s32 32, 32
          %119 = vsyncadd [#allocation4], %s118
          %s121 = sshll.u32 %s0, 4
          %s122 = int_to_ptr.vmem [resolvable:$true] %s121
          %124 = dma.vmem_to_smem %s122, 32, [#allocation2], [#allocation4]
        $region16: #{tpu_custom_call.1} parent=11 // pred_fallthru
          _
      $region12: #{tpu_custom_call.1} parent=5 // pred_fallthru
        _
      %p125 = scmp.lt.s32.totalorder %s12, 4
      // Predicated region
      $region17: #{tpu_custom_call.1} parent=5 // pred_check
        %p126 = pneg %p125
      $region18: #{tpu_custom_call.1} parent=5 // pred_check_branch
        %128 = sbr.rel (%p126) target = $region20
      $region19: #{tpu_custom_call.1} parent=5 // pred_region
        // Predicated region
        $region21: #{tpu_custom_call.1} parent=19 // pred_check
          %p129 = pneg %p67
        $region22: #{tpu_custom_call.1} parent=19 // pred_check_branch
          %131 = sbr.rel (%p129) target = $region24
        $region23: #{tpu_custom_call.1} parent=19 // pred_region
          %s132 = sand.u32 %s57, 1
          %s133 = sand.u32 %s57, 1
          %s134 = smul.addr %s133, 256
          %s135 = scalar_lea.vmem [#allocation5], %s134
          %s136 = smul.u32 2, %s20
          %s137 = ssub.s32 3, %s136
          %p138 = scmp.lt.s32.totalorder %s137, 2
          %s139 = scalar_select %p138, %s137, 2
          %s140 = smul.u32 2048, %s139
          %p141 = scmp.ne.s32.totalorder 0, %s140
          %s142 = smul.addr %s19, 48
          %s143 = sadd.s32 %s136, %s142
          %s144 = smul.addr %s143, 8
          %s145 = scalar_lea.vmem %s1, %s144
          %s146 = smul.u32 %s139, 8
          // Predicated region
          $region25: #{tpu_custom_call.1} parent=23 // pred_check
            %p147 = pneg %p141
          $region26: #{tpu_custom_call.1} parent=23 // pred_check_branch
            %149 = sbr.rel (%p147) target = $region28
          $region27: #{tpu_custom_call.1} parent=23 // pred_region
            %p150 = scmp.lt.u32.totalorder %s146, 8
            %p151 = pneg %p150
            // Predicated region
            $region29: #{tpu_custom_call.1} parent=27 // pred_check
              _
            $region30: #{tpu_custom_call.1} parent=27 // pred_check_branch
              %153 = sbr.rel (%p150) target = $region32
            $region31: #{tpu_custom_call.1} parent=27 // pred_region
              %s198 = sand.u32 %s146, 7
              %p199 = scmp.eq.s32.totalorder %s198, 0
              // Predicated region
              $region44: #{tpu_custom_call.1} parent=31 // pred_check
                %p200 = pneg %p199
              $region45: #{tpu_custom_call.1} parent=31 // pred_check_branch
                %202 = sbr.rel (%p200) target = $region47
              $region46: #{tpu_custom_call.1} parent=31 // pred_region
                %s203 = sshrl.u32 %s146, 3
                %s204 = sshrl.u32 %s203, 2
                // While loop
                $region48: #{tpu_custom_call.1} parent=46 // loop_pre_header
                  _
                $region49: #{tpu_custom_call.1} parent=46 // loop_header
                  %s208 = sphi 0, %s210
                  %p209 = scmp.ge.s32.totalorder %s208, %s204
                  %s213 = sphi 0, %s346
                  %s214 = sphi %s145, %s349
                  %s215 = sphi %s135, %s350
                $region50: #{tpu_custom_call.1} parent=46 // loop_header_branch
                  %212 = sbr.rel (%p209) target = $region54
                $region51: #{tpu_custom_call.1} parent=46 // loop_body
                  %v216 = vld [vmem:[%s214] sm:$0xff]
                  %217 = vst [vmem:[%s215] sm:$0xff] %v216
                  %v218 = vld [vmem:[%s214 + $0x8] sm:$0xff]
                  %219 = vst [vmem:[%s215 + $0x8] sm:$0xff] %v218
                  %v220 = vld [vmem:[%s214 + $0x10] sm:$0xff]
                  %221 = vst [vmem:[%s215 + $0x10] sm:$0xff] %v220
                  %v222 = vld [vmem:[%s214 + $0x18] sm:$0xff]
                  %223 = vst [vmem:[%s215 + $0x18] sm:$0xff] %v222
                  %v224 = vld [vmem:[%s214 + $0x18] sm:$0xff]
                  %225 = vst [vmem:[%s215 + $0x10] sm:$0xff] %v224
                  %v226 = vld [vmem:[%s214 + $0x20] sm:$0xff]
                  %227 = vst [vmem:[%s215 + $0x18] sm:$0xff] %v226
                  %v228 = vld [vmem:[%s214 + $0x28] sm:$0xff]
                  %229 = vst [vmem:[%s215 + $0x20] sm:$0xff] %v228
                  %v230 = vld [vmem:[%s214 + $0x30] sm:$0xff]
                  %231 = vst [vmem:[%s215 + $0x28] sm:$0xff] %v230
                  %v232 = vld [vmem:[%s214 + $0x30] sm:$0xff]
                  %233 = vst [vmem:[%s215 + $0x20] sm:$0xff] %v232
                  %v234 = vld [vmem:[%s214 + $0x38] sm:$0xff]
                  %235 = vst [vmem:[%s215 + $0x28] sm:$0xff] %v234
                  %v236 = vld [vmem:[%s214 + $0x40] sm:$0xff]
                  %237 = vst [vmem:[%s215 + $0x30] sm:$0xff] %v236
                  %v238 = vld [vmem:[%s214 + $0x48] sm:$0xff]
                  %239 = vst [vmem:[%s215 + $0x38] sm:$0xff] %v238
                  %v240 = vld [vmem:[%s214 + $0x48] sm:$0xff]
                  %241 = vst [vmem:[%s215 + $0x30] sm:$0xff] %v240
                  %v242 = vld [vmem:[%s214 + $0x50] sm:$0xff]
                  %243 = vst [vmem:[%s215 + $0x38] sm:$0xff] %v242
                  %v244 = vld [vmem:[%s214 + $0x58] sm:$0xff]
                  %245 = vst [vmem:[%s215 + $0x40] sm:$0xff] %v244
                  %v246 = vld [vmem:[%s214 + $0x60] sm:$0xff]
                  %247 = vst [vmem:[%s215 + $0x48] sm:$0xff] %v246
                  %v248 = vld [vmem:[%s214 + $0x60] sm:$0xff]
                  %249 = vst [vmem:[%s215 + $0x40] sm:$0xff] %v248
                  %v250 = vld [vmem:[%s214 + $0x68] sm:$0xff]
                  %251 = vst [vmem:[%s215 + $0x48] sm:$0xff] %v250
                  %v252 = vld [vmem:[%s214 + $0x70] sm:$0xff]
                  %253 = vst [vmem:[%s215 + $0x50] sm:$0xff] %v252
                  %v254 = vld [vmem:[%s214 + $0x78] sm:$0xff]
                  %255 = vst [vmem:[%s215 + $0x58] sm:$0xff] %v254
                  %v256 = vld [vmem:[%s214 + $0x78] sm:$0xff]
                  %257 = vst [vmem:[%s215 + $0x50] sm:$0xff] %v256
                  %v258 = vld [vmem:[%s214 + $0x80] sm:$0xff]
                  %259 = vst [vmem:[%s215 + $0x58] sm:$0xff] %v258
                  %v260 = vld [vmem:[%s214 + $0x88] sm:$0xff]
                  %261 = vst [vmem:[%s215 + $0x60] sm:$0xff] %v260
                  %v262 = vld [vmem:[%s214 + $0x90] sm:$0xff]
                  %263 = vst [vmem:[%s215 + $0x68] sm:$0xff] %v262
                  %v264 = vld [vmem:[%s214 + $0x90] sm:$0xff]
                  %265 = vst [vmem:[%s215 + $0x60] sm:$0xff] %v264
                  %v266 = vld [vmem:[%s214 + $0x98] sm:$0xff]
                  %267 = vst [vmem:[%s215 + $0x68] sm:$0xff] %v266
                  %v268 = vld [vmem:[%s214 + $0xa0] sm:$0xff]
                  %269 = vst [vmem:[%s215 + $0x70] sm:$0xff] %v268
                  %v270 = vld [vmem:[%s214 + $0xa8] sm:$0xff]
                  %271 = vst [vmem:[%s215 + $0x78] sm:$0xff] %v270
                  %v272 = vld [vmem:[%s214 + $0xa8] sm:$0xff]
                  %273 = vst [vmem:[%s215 + $0x70] sm:$0xff] %v272
                  %v274 = vld [vmem:[%s214 + $0xb0] sm:$0xff]
                  %275 = vst [vmem:[%s215 + $0x78] sm:$0xff] %v274
                  %v276 = vld [vmem:[%s214 + $0xb8] sm:$0xff]
                  %277 = vst [vmem:[%s215 + $0x80] sm:$0xff] %v276
                  %v278 = vld [vmem:[%s214 + $0xc0] sm:$0xff]
                  %279 = vst [vmem:[%s215 + $0x88] sm:$0xff] %v278
                  %v280 = vld [vmem:[%s214 + $0xc0] sm:$0xff]
                  %281 = vst [vmem:[%s215 + $0x80] sm:$0xff] %v280
                  %v282 = vld [vmem:[%s214 + $0xc8] sm:$0xff]
                  %283 = vst [vmem:[%s215 + $0x88] sm:$0xff] %v282
                  %v284 = vld [vmem:[%s214 + $0xd0] sm:$0xff]
                  %285 = vst [vmem:[%s215 + $0x90] sm:$0xff] %v284
                  %v286 = vld [vmem:[%s214 + $0xd8] sm:$0xff]
                  %287 = vst [vmem:[%s215 + $0x98] sm:$0xff] %v286
                  %v288 = vld [vmem:[%s214 + $0xd8] sm:$0xff]
                  %289 = vst [vmem:[%s215 + $0x90] sm:$0xff] %v288
                  %v290 = vld [vmem:[%s214 + $0xe0] sm:$0xff]
                  %291 = vst [vmem:[%s215 + $0x98] sm:$0xff] %v290
                  %v292 = vld [vmem:[%s214 + $0xe8] sm:$0xff]
                  %293 = vst [vmem:[%s215 + $0xa0] sm:$0xff] %v292
                  %v294 = vld [vmem:[%s214 + $0xf0] sm:$0xff]
                  %295 = vst [vmem:[%s215 + $0xa8] sm:$0xff] %v294
                  %v296 = vld [vmem:[%s214 + $0xf0] sm:$0xff]
                  %297 = vst [vmem:[%s215 + $0xa0] sm:$0xff] %v296
                  %v298 = vld [vmem:[%s214 + $0xf8] sm:$0xff]
                  %299 = vst [vmem:[%s215 + $0xa8] sm:$0xff] %v298
                  %v300 = vld [vmem:[%s214 + $0x100] sm:$0xff]
                  %301 = vst [vmem:[%s215 + $0xb0] sm:$0xff] %v300
                  %v302 = vld [vmem:[%s214 + $0x108] sm:$0xff]
                  %303 = vst [vmem:[%s215 + $0xb8] sm:$0xff] %v302
                  %v304 = vld [vmem:[%s214 + $0x108] sm:$0xff]
                  %305 = vst [vmem:[%s215 + $0xb0] sm:$0xff] %v304
                  %v306 = vld [vmem:[%s214 + $0x110] sm:$0xff]
                  %307 = vst [vmem:[%s215 + $0xb8] sm:$0xff] %v306
                  %v308 = vld [vmem:[%s214 + $0x118] sm:$0xff]
                  %309 = vst [vmem:[%s215 + $0xc0] sm:$0xff] %v308
                  %v310 = vld [vmem:[%s214 + $0x120] sm:$0xff]
                  %311 = vst [vmem:[%s215 + $0xc8] sm:$0xff] %v310
                  %v312 = vld [vmem:[%s214 + $0x120] sm:$0xff]
                  %313 = vst [vmem:[%s215 + $0xc0] sm:$0xff] %v312
                  %v314 = vld [vmem:[%s214 + $0x128] sm:$0xff]
                  %315 = vst [vmem:[%s215 + $0xc8] sm:$0xff] %v314
                  %v316 = vld [vmem:[%s214 + $0x130] sm:$0xff]
                  %317 = vst [vmem:[%s215 + $0xd0] sm:$0xff] %v316
                  %v318 = vld [vmem:[%s214 + $0x138] sm:$0xff]
                  %319 = vst [vmem:[%s215 + $0xd8] sm:$0xff] %v318
                  %v320 = vld [vmem:[%s214 + $0x138] sm:$0xff]
                  %321 = vst [vmem:[%s215 + $0xd0] sm:$0xff] %v320
                  %v322 = vld [vmem:[%s214 + $0x140] sm:$0xff]
                  %323 = vst [vmem:[%s215 + $0xd8] sm:$0xff] %v322
                  %v324 = vld [vmem:[%s214 + $0x148] sm:$0xff]
                  %325 = vst [vmem:[%s215 + $0xe0] sm:$0xff] %v324
                  %v326 = vld [vmem:[%s214 + $0x150] sm:$0xff]
                  %327 = vst [vmem:[%s215 + $0xe8] sm:$0xff] %v326
                  %v328 = vld [vmem:[%s214 + $0x150] sm:$0xff]
                  %329 = vst [vmem:[%s215 + $0xe0] sm:$0xff] %v328
                  %v330 = vld [vmem:[%s214 + $0x158] sm:$0xff]
                  %331 = vst [vmem:[%s215 + $0xe8] sm:$0xff] %v330
                  %v332 = vld [vmem:[%s214 + $0x160] sm:$0xff]
                  %333 = vst [vmem:[%s215 + $0xf0] sm:$0xff] %v332
                  %v334 = vld [vmem:[%s214 + $0x168] sm:$0xff]
                  %335 = vst [vmem:[%s215 + $0xf8] sm:$0xff] %v334
                  %v336 = vld [vmem:[%s214 + $0x168] sm:$0xff]
                  %337 = vst [vmem:[%s215 + $0xf0] sm:$0xff] %v336
                  %v338 = vld [vmem:[%s214 + $0x170] sm:$0xff]
                  %339 = vst [vmem:[%s215 + $0xf8] sm:$0xff] %v338
                  %v340 = vld [vmem:[%s214 + $0x178] sm:$0xff]
                  %341 = vst [vmem:[%s215 + $0x100] sm:$0xff] %v340
                  %v342 = vld [vmem:[%s214 + $0x180] sm:$0xff]
                  %343 = vst [vmem:[%s215 + $0x108] sm:$0xff] %v342
                  %s344 = sadd.s32 1, %s213
                  %p345 = scmp.ge.s32.totalorder %s344, %s204
                  %s346 = scalar_select %p345, 0, %s344
                  %s347 = smul.u32 %s346, 32
                  %s348 = smul.u32 %s346, 32
                  %s349 = scalar_lea.vmem %s145, %s347
                  %s350 = scalar_lea.vmem %s135, %s348 [#allocation5]
                $region52: #{tpu_custom_call.1} parent=46 // loop_footer
                  %s210 = sadd.s32 %s208, 1
                $region53: #{tpu_custom_call.1} parent=46 // loop_footer_branch
                  %207 = sbr.rel target = $region49
                $region54: #{tpu_custom_call.1} parent=46 // loop_exit
                  _
                %s351 = sshrl.u32 %s203, 2
                %s352 = sand.u32 %s203, 3
                %s353 = smul.u32 %s351, 4
                %s354 = smul.u32 128, %s353
                %s355 = sshra.s32 %s354, 4
                %s356 = scalar_lea.vmem %s145, %s355
                %s357 = smul.u32 128, %s353
                %s358 = sshra.s32 %s357, 4
                %s359 = scalar_lea.vmem %s135, %s358 [#allocation5]
                // While loop
                $region55: #{tpu_custom_call.1} parent=46 // loop_pre_header
                  _
                $region56: #{tpu_custom_call.1} parent=46 // loop_header
                  %s363 = sphi 0, %s365
                  %p364 = scmp.ge.s32.totalorder %s363, %s352
                  %s368 = sphi 0, %s405
                  %s369 = sphi %s356, %s408
                  %s370 = sphi %s359, %s409
                $region57: #{tpu_custom_call.1} parent=46 // loop_header_branch
                  %367 = sbr.rel (%p364) target = $region61
                $region58: #{tpu_custom_call.1} parent=46 // loop_body
                  %v371 = vld [vmem:[%s369] sm:$0xff]
                  %372 = vst [vmem:[%s370] sm:$0xff] %v371
                  %v373 = vld [vmem:[%s369 + $0x18] sm:$0xff]
                  %374 = vst [vmem:[%s370 + $0x10] sm:$0xff] %v373
                  %v375 = vld [vmem:[%s369 + $0x30] sm:$0xff]
                  %376 = vst [vmem:[%s370 + $0x20] sm:$0xff] %v375
                  %v377 = vld [vmem:[%s369 + $0x48] sm:$0xff]
                  %378 = vst [vmem:[%s370 + $0x30] sm:$0xff] %v377
                  %v379 = vld [vmem:[%s369 + $0x60] sm:$0xff]
                  %380 = vst [vmem:[%s370 + $0x40] sm:$0xff] %v379
                  %v381 = vld [vmem:[%s369 + $0x78] sm:$0xff]
                  %382 = vst [vmem:[%s370 + $0x50] sm:$0xff] %v381
                  %v383 = vld [vmem:[%s369 + $0x90] sm:$0xff]
                  %384 = vst [vmem:[%s370 + $0x60] sm:$0xff] %v383
                  %v385 = vld [vmem:[%s369 + $0xa8] sm:$0xff]
                  %386 = vst [vmem:[%s370 + $0x70] sm:$0xff] %v385
                  %v387 = vld [vmem:[%s369 + $0xc0] sm:$0xff]
                  %388 = vst [vmem:[%s370 + $0x80] sm:$0xff] %v387
                  %v389 = vld [vmem:[%s369 + $0xd8] sm:$0xff]
                  %390 = vst [vmem:[%s370 + $0x90] sm:$0xff] %v389
                  %v391 = vld [vmem:[%s369 + $0xf0] sm:$0xff]
                  %392 = vst [vmem:[%s370 + $0xa0] sm:$0xff] %v391
                  %v393 = vld [vmem:[%s369 + $0x108] sm:$0xff]
                  %394 = vst [vmem:[%s370 + $0xb0] sm:$0xff] %v393
                  %v395 = vld [vmem:[%s369 + $0x120] sm:$0xff]
                  %396 = vst [vmem:[%s370 + $0xc0] sm:$0xff] %v395
                  %v397 = vld [vmem:[%s369 + $0x138] sm:$0xff]
                  %398 = vst [vmem:[%s370 + $0xd0] sm:$0xff] %v397
                  %v399 = vld [vmem:[%s369 + $0x150] sm:$0xff]
                  %400 = vst [vmem:[%s370 + $0xe0] sm:$0xff] %v399
                  %v401 = vld [vmem:[%s369 + $0x168] sm:$0xff]
                  %402 = vst [vmem:[%s370 + $0xf0] sm:$0xff] %v401
                  %s403 = sadd.s32 1, %s368
                  %p404 = scmp.ge.s32.totalorder %s403, %s352
                  %s405 = scalar_select %p404, 0, %s403
                  %s406 = smul.u32 %s405, 8
                  %s407 = smul.u32 %s405, 8
                  %s408 = scalar_lea.vmem %s356, %s406
                  %s409 = scalar_lea.vmem %s359, %s407 [#allocation5]
                $region59: #{tpu_custom_call.1} parent=46 // loop_footer
                  %s365 = sadd.s32 %s363, 1
                $region60: #{tpu_custom_call.1} parent=46 // loop_footer_branch
                  %362 = sbr.rel target = $region56
                $region61: #{tpu_custom_call.1} parent=46 // loop_exit
                  _
              $region47: #{tpu_custom_call.1} parent=31 // pred_fallthru
                _
              %p410 = pneg %p199
              // Predicated region
              $region62: #{tpu_custom_call.1} parent=31 // pred_check
                _
              $region63: #{tpu_custom_call.1} parent=31 // pred_check_branch
                %412 = sbr.rel (%p199) target = $region65
              $region64: #{tpu_custom_call.1} parent=31 // pred_region
                %s413 = sand.u32 %s146, 7
                %s414 = ssub.s32 %s146, %s413
                %s415 = scalar_lea.vmem %s145, %s414
                %s416 = ssub.s32 %s146, %s413
                %s417 = scalar_lea.vmem %s135, %s416 [#allocation5]
                %s418 = sshrl.u32 %s146, 3
                %s419 = sshrl.u32 %s418, 2
                // While loop
                $region66: #{tpu_custom_call.1} parent=64 // loop_pre_header
                  _
                $region67: #{tpu_custom_call.1} parent=64 // loop_header
                  %s423 = sphi 0, %s425
                  %p424 = scmp.ge.s32.totalorder %s423, %s419
                  %s428 = sphi 0, %s561
                  %s429 = sphi %s145, %s564
                  %s430 = sphi %s135, %s565
                $region68: #{tpu_custom_call.1} parent=64 // loop_header_branch
                  %427 = sbr.rel (%p424) target = $region72
                $region69: #{tpu_custom_call.1} parent=64 // loop_body
                  %v431 = vld [vmem:[%s429] sm:$0xff]
                  %432 = vst [vmem:[%s430] sm:$0xff] %v431
                  %v433 = vld [vmem:[%s429 + $0x8] sm:$0xff]
                  %434 = vst [vmem:[%s430 + $0x8] sm:$0xff] %v433
                  %v435 = vld [vmem:[%s429 + $0x10] sm:$0xff]
                  %436 = vst [vmem:[%s430 + $0x10] sm:$0xff] %v435
                  %v437 = vld [vmem:[%s429 + $0x18] sm:$0xff]
                  %438 = vst [vmem:[%s430 + $0x18] sm:$0xff] %v437
                  %v439 = vld [vmem:[%s429 + $0x18] sm:$0xff]
                  %440 = vst [vmem:[%s430 + $0x10] sm:$0xff] %v439
                  %v441 = vld [vmem:[%s429 + $0x20] sm:$0xff]
                  %442 = vst [vmem:[%s430 + $0x18] sm:$0xff] %v441
                  %v443 = vld [vmem:[%s429 + $0x28] sm:$0xff]
                  %444 = vst [vmem:[%s430 + $0x20] sm:$0xff] %v443
                  %v445 = vld [vmem:[%s429 + $0x30] sm:$0xff]
                  %446 = vst [vmem:[%s430 + $0x28] sm:$0xff] %v445
                  %v447 = vld [vmem:[%s429 + $0x30] sm:$0xff]
                  %448 = vst [vmem:[%s430 + $0x20] sm:$0xff] %v447
                  %v449 = vld [vmem:[%s429 + $0x38] sm:$0xff]
                  %450 = vst [vmem:[%s430 + $0x28] sm:$0xff] %v449
                  %v451 = vld [vmem:[%s429 + $0x40] sm:$0xff]
                  %452 = vst [vmem:[%s430 + $0x30] sm:$0xff] %v451
                  %v453 = vld [vmem:[%s429 + $0x48] sm:$0xff]
                  %454 = vst [vmem:[%s430 + $0x38] sm:$0xff] %v453
                  %v455 = vld [vmem:[%s429 + $0x48] sm:$0xff]
                  %456 = vst [vmem:[%s430 + $0x30] sm:$0xff] %v455
                  %v457 = vld [vmem:[%s429 + $0x50] sm:$0xff]
                  %458 = vst [vmem:[%s430 + $0x38] sm:$0xff] %v457
                  %v459 = vld [vmem:[%s429 + $0x58] sm:$0xff]
                  %460 = vst [vmem:[%s430 + $0x40] sm:$0xff] %v459
                  %v461 = vld [vmem:[%s429 + $0x60] sm:$0xff]
                  %462 = vst [vmem:[%s430 + $0x48] sm:$0xff] %v461
                  %v463 = vld [vmem:[%s429 + $0x60] sm:$0xff]
                  %464 = vst [vmem:[%s430 + $0x40] sm:$0xff] %v463
                  %v465 = vld [vmem:[%s429 + $0x68] sm:$0xff]
                  %466 = vst [vmem:[%s430 + $0x48] sm:$0xff] %v465
                  %v467 = vld [vmem:[%s429 + $0x70] sm:$0xff]
                  %468 = vst [vmem:[%s430 + $0x50] sm:$0xff] %v467
                  %v469 = vld [vmem:[%s429 + $0x78] sm:$0xff]
                  %470 = vst [vmem:[%s430 + $0x58] sm:$0xff] %v469
                  %v471 = vld [vmem:[%s429 + $0x78] sm:$0xff]
                  %472 = vst [vmem:[%s430 + $0x50] sm:$0xff] %v471
                  %v473 = vld [vmem:[%s429 + $0x80] sm:$0xff]
                  %474 = vst [vmem:[%s430 + $0x58] sm:$0xff] %v473
                  %v475 = vld [vmem:[%s429 + $0x88] sm:$0xff]
                  %476 = vst [vmem:[%s430 + $0x60] sm:$0xff] %v475
                  %v477 = vld [vmem:[%s429 + $0x90] sm:$0xff]
                  %478 = vst [vmem:[%s430 + $0x68] sm:$0xff] %v477
                  %v479 = vld [vmem:[%s429 + $0x90] sm:$0xff]
                  %480 = vst [vmem:[%s430 + $0x60] sm:$0xff] %v479
                  %v481 = vld [vmem:[%s429 + $0x98] sm:$0xff]
                  %482 = vst [vmem:[%s430 + $0x68] sm:$0xff] %v481
                  %v483 = vld [vmem:[%s429 + $0xa0] sm:$0xff]
                  %484 = vst [vmem:[%s430 + $0x70] sm:$0xff] %v483
                  %v485 = vld [vmem:[%s429 + $0xa8] sm:$0xff]
                  %486 = vst [vmem:[%s430 + $0x78] sm:$0xff] %v485
                  %v487 = vld [vmem:[%s429 + $0xa8] sm:$0xff]
                  %488 = vst [vmem:[%s430 + $0x70] sm:$0xff] %v487
                  %v489 = vld [vmem:[%s429 + $0xb0] sm:$0xff]
                  %490 = vst [vmem:[%s430 + $0x78] sm:$0xff] %v489
                  %v491 = vld [vmem:[%s429 + $0xb8] sm:$0xff]
                  %492 = vst [vmem:[%s430 + $0x80] sm:$0xff] %v491
                  %v493 = vld [vmem:[%s429 + $0xc0] sm:$0xff]
                  %494 = vst [vmem:[%s430 + $0x88] sm:$0xff] %v493
                  %v495 = vld [vmem:[%s429 + $0xc0] sm:$0xff]
                  %496 = vst [vmem:[%s430 + $0x80] sm:$0xff] %v495
                  %v497 = vld [vmem:[%s429 + $0xc8] sm:$0xff]
                  %498 = vst [vmem:[%s430 + $0x88] sm:$0xff] %v497
                  %v499 = vld [vmem:[%s429 + $0xd0] sm:$0xff]
                  %500 = vst [vmem:[%s430 + $0x90] sm:$0xff] %v499
                  %v501 = vld [vmem:[%s429 + $0xd8] sm:$0xff]
                  %502 = vst [vmem:[%s430 + $0x98] sm:$0xff] %v501
                  %v503 = vld [vmem:[%s429 + $0xd8] sm:$0xff]
                  %504 = vst [vmem:[%s430 + $0x90] sm:$0xff] %v503
                  %v505 = vld [vmem:[%s429 + $0xe0] sm:$0xff]
                  %506 = vst [vmem:[%s430 + $0x98] sm:$0xff] %v505
                  %v507 = vld [vmem:[%s429 + $0xe8] sm:$0xff]
                  %508 = vst [vmem:[%s430 + $0xa0] sm:$0xff] %v507
                  %v509 = vld [vmem:[%s429 + $0xf0] sm:$0xff]
                  %510 = vst [vmem:[%s430 + $0xa8] sm:$0xff] %v509
                  %v511 = vld [vmem:[%s429 + $0xf0] sm:$0xff]
                  %512 = vst [vmem:[%s430 + $0xa0] sm:$0xff] %v511
                  %v513 = vld [vmem:[%s429 + $0xf8] sm:$0xff]
                  %514 = vst [vmem:[%s430 + $0xa8] sm:$0xff] %v513
                  %v515 = vld [vmem:[%s429 + $0x100] sm:$0xff]
                  %516 = vst [vmem:[%s430 + $0xb0] sm:$0xff] %v515
                  %v517 = vld [vmem:[%s429 + $0x108] sm:$0xff]
                  %518 = vst [vmem:[%s430 + $0xb8] sm:$0xff] %v517
                  %v519 = vld [vmem:[%s429 + $0x108] sm:$0xff]
                  %520 = vst [vmem:[%s430 + $0xb0] sm:$0xff] %v519
                  %v521 = vld [vmem:[%s429 + $0x110] sm:$0xff]
                  %522 = vst [vmem:[%s430 + $0xb8] sm:$0xff] %v521
                  %v523 = vld [vmem:[%s429 + $0x118] sm:$0xff]
                  %524 = vst [vmem:[%s430 + $0xc0] sm:$0xff] %v523
                  %v525 = vld [vmem:[%s429 + $0x120] sm:$0xff]
                  %526 = vst [vmem:[%s430 + $0xc8] sm:$0xff] %v525
                  %v527 = vld [vmem:[%s429 + $0x120] sm:$0xff]
                  %528 = vst [vmem:[%s430 + $0xc0] sm:$0xff] %v527
                  %v529 = vld [vmem:[%s429 + $0x128] sm:$0xff]
                  %530 = vst [vmem:[%s430 + $0xc8] sm:$0xff] %v529
                  %v531 = vld [vmem:[%s429 + $0x130] sm:$0xff]
                  %532 = vst [vmem:[%s430 + $0xd0] sm:$0xff] %v531
                  %v533 = vld [vmem:[%s429 + $0x138] sm:$0xff]
                  %534 = vst [vmem:[%s430 + $0xd8] sm:$0xff] %v533
                  %v535 = vld [vmem:[%s429 + $0x138] sm:$0xff]
                  %536 = vst [vmem:[%s430 + $0xd0] sm:$0xff] %v535
                  %v537 = vld [vmem:[%s429 + $0x140] sm:$0xff]
                  %538 = vst [vmem:[%s430 + $0xd8] sm:$0xff] %v537
                  %v539 = vld [vmem:[%s429 + $0x148] sm:$0xff]
                  %540 = vst [vmem:[%s430 + $0xe0] sm:$0xff] %v539
                  %v541 = vld [vmem:[%s429 + $0x150] sm:$0xff]
                  %542 = vst [vmem:[%s430 + $0xe8] sm:$0xff] %v541
                  %v543 = vld [vmem:[%s429 + $0x150] sm:$0xff]
                  %544 = vst [vmem:[%s430 + $0xe0] sm:$0xff] %v543
                  %v545 = vld [vmem:[%s429 + $0x158] sm:$0xff]
                  %546 = vst [vmem:[%s430 + $0xe8] sm:$0xff] %v545
                  %v547 = vld [vmem:[%s429 + $0x160] sm:$0xff]
                  %548 = vst [vmem:[%s430 + $0xf0] sm:$0xff] %v547
                  %v549 = vld [vmem:[%s429 + $0x168] sm:$0xff]
                  %550 = vst [vmem:[%s430 + $0xf8] sm:$0xff] %v549
                  %v551 = vld [vmem:[%s429 + $0x168] sm:$0xff]
                  %552 = vst [vmem:[%s430 + $0xf0] sm:$0xff] %v551
                  %v553 = vld [vmem:[%s429 + $0x170] sm:$0xff]
                  %554 = vst [vmem:[%s430 + $0xf8] sm:$0xff] %v553
                  %v555 = vld [vmem:[%s429 + $0x178] sm:$0xff]
                  %556 = vst [vmem:[%s430 + $0x100] sm:$0xff] %v555
                  %v557 = vld [vmem:[%s429 + $0x180] sm:$0xff]
                  %558 = vst [vmem:[%s430 + $0x108] sm:$0xff] %v557
                  %s559 = sadd.s32 1, %s428
                  %p560 = scmp.ge.s32.totalorder %s559, %s419
                  %s561 = scalar_select %p560, 0, %s559
                  %s562 = smul.u32 %s561, 32
                  %s563 = smul.u32 %s561, 32
                  %s564 = scalar_lea.vmem %s145, %s562
                  %s565 = scalar_lea.vmem %s135, %s563 [#allocation5]
                $region70: #{tpu_custom_call.1} parent=64 // loop_footer
                  %s425 = sadd.s32 %s423, 1
                $region71: #{tpu_custom_call.1} parent=64 // loop_footer_branch
                  %422 = sbr.rel target = $region67
                $region72: #{tpu_custom_call.1} parent=64 // loop_exit
                  _
                %s566 = sshrl.u32 %s418, 2
                %s567 = sand.u32 %s418, 3
                %s568 = smul.u32 %s566, 4
                %s569 = smul.u32 128, %s568
                %s570 = sshra.s32 %s569, 4
                %s571 = scalar_lea.vmem %s145, %s570
                %s572 = smul.u32 128, %s568
                %s573 = sshra.s32 %s572, 4
                %s574 = scalar_lea.vmem %s135, %s573 [#allocation5]
                // While loop
                $region73: #{tpu_custom_call.1} parent=64 // loop_pre_header
                  _
                $region74: #{tpu_custom_call.1} parent=64 // loop_header
                  %s578 = sphi 0, %s580
                  %p579 = scmp.ge.s32.totalorder %s578, %s567
                  %s583 = sphi 0, %s620
                  %s584 = sphi %s571, %s623
                  %s585 = sphi %s574, %s624
                $region75: #{tpu_custom_call.1} parent=64 // loop_header_branch
                  %582 = sbr.rel (%p579) target = $region79
                $region76: #{tpu_custom_call.1} parent=64 // loop_body
                  %v586 = vld [vmem:[%s584] sm:$0xff]
                  %587 = vst [vmem:[%s585] sm:$0xff] %v586
                  %v588 = vld [vmem:[%s584 + $0x18] sm:$0xff]
                  %589 = vst [vmem:[%s585 + $0x10] sm:$0xff] %v588
                  %v590 = vld [vmem:[%s584 + $0x30] sm:$0xff]
                  %591 = vst [vmem:[%s585 + $0x20] sm:$0xff] %v590
                  %v592 = vld [vmem:[%s584 + $0x48] sm:$0xff]
                  %593 = vst [vmem:[%s585 + $0x30] sm:$0xff] %v592
                  %v594 = vld [vmem:[%s584 + $0x60] sm:$0xff]
                  %595 = vst [vmem:[%s585 + $0x40] sm:$0xff] %v594
                  %v596 = vld [vmem:[%s584 + $0x78] sm:$0xff]
                  %597 = vst [vmem:[%s585 + $0x50] sm:$0xff] %v596
                  %v598 = vld [vmem:[%s584 + $0x90] sm:$0xff]
                  %599 = vst [vmem:[%s585 + $0x60] sm:$0xff] %v598
                  %v600 = vld [vmem:[%s584 + $0xa8] sm:$0xff]
                  %601 = vst [vmem:[%s585 + $0x70] sm:$0xff] %v600
                  %v602 = vld [vmem:[%s584 + $0xc0] sm:$0xff]
                  %603 = vst [vmem:[%s585 + $0x80] sm:$0xff] %v602
                  %v604 = vld [vmem:[%s584 + $0xd8] sm:$0xff]
                  %605 = vst [vmem:[%s585 + $0x90] sm:$0xff] %v604
                  %v606 = vld [vmem:[%s584 + $0xf0] sm:$0xff]
                  %607 = vst [vmem:[%s585 + $0xa0] sm:$0xff] %v606
                  %v608 = vld [vmem:[%s584 + $0x108] sm:$0xff]
                  %609 = vst [vmem:[%s585 + $0xb0] sm:$0xff] %v608
                  %v610 = vld [vmem:[%s584 + $0x120] sm:$0xff]
                  %611 = vst [vmem:[%s585 + $0xc0] sm:$0xff] %v610
                  %v612 = vld [vmem:[%s584 + $0x138] sm:$0xff]
                  %613 = vst [vmem:[%s585 + $0xd0] sm:$0xff] %v612
                  %v614 = vld [vmem:[%s584 + $0x150] sm:$0xff]
                  %615 = vst [vmem:[%s585 + $0xe0] sm:$0xff] %v614
                  %v616 = vld [vmem:[%s584 + $0x168] sm:$0xff]
                  %617 = vst [vmem:[%s585 + $0xf0] sm:$0xff] %v616
                  %s618 = sadd.s32 1, %s583
                  %p619 = scmp.ge.s32.totalorder %s618, %s567
                  %s620 = scalar_select %p619, 0, %s618
                  %s621 = smul.u32 %s620, 8
                  %s622 = smul.u32 %s620, 8
                  %s623 = scalar_lea.vmem %s571, %s621
                  %s624 = scalar_lea.vmem %s574, %s622 [#allocation5]
                $region77: #{tpu_custom_call.1} parent=64 // loop_footer
                  %s580 = sadd.s32 %s578, 1
                $region78: #{tpu_custom_call.1} parent=64 // loop_footer_branch
                  %577 = sbr.rel target = $region74
                $region79: #{tpu_custom_call.1} parent=64 // loop_exit
                  _
                %s625 = sshllo.u32 0, %s413
                loop: start=0, step=1, limit=1
                $region80: #{tpu_custom_call.1} parent=64 // loop_pre_header
                  _
                $region81: #{tpu_custom_call.1} parent=64 // loop_header
                  %s627 = sphi 0, %s631
                  %p628 = scmp.ge.s32.totalorder %s627, 1
                  %s632 = sphi %s415, %s415
                  %s633 = sphi %s417, %s417
                $region82: #{tpu_custom_call.1} parent=64 // loop_header_branch
                  %630 = sbr.rel (%p628) target = $region86
                $region83: #{tpu_custom_call.1} parent=64 // loop_body
                  %v634 = vld [vmem:[%s632] sm:%s625]
                  %635 = vst [vmem:[%s633] sm:%s625] %v634
                  %v636 = vld [vmem:[%s632 + $0x18] sm:%s625]
                  %637 = vst [vmem:[%s633 + $0x10] sm:%s625] %v636
                  %v638 = vld [vmem:[%s632 + $0x30] sm:%s625]
                  %639 = vst [vmem:[%s633 + $0x20] sm:%s625] %v638
                  %v640 = vld [vmem:[%s632 + $0x48] sm:%s625]
                  %641 = vst [vmem:[%s633 + $0x30] sm:%s625] %v640
                  %v642 = vld [vmem:[%s632 + $0x60] sm:%s625]
                  %643 = vst [vmem:[%s633 + $0x40] sm:%s625] %v642
                  %v644 = vld [vmem:[%s632 + $0x78] sm:%s625]
                  %645 = vst [vmem:[%s633 + $0x50] sm:%s625] %v644
                  %v646 = vld [vmem:[%s632 + $0x90] sm:%s625]
                  %647 = vst [vmem:[%s633 + $0x60] sm:%s625] %v646
                  %v648 = vld [vmem:[%s632 + $0xa8] sm:%s625]
                  %649 = vst [vmem:[%s633 + $0x70] sm:%s625] %v648
                  %v650 = vld [vmem:[%s632 + $0xc0] sm:%s625]
                  %651 = vst [vmem:[%s633 + $0x80] sm:%s625] %v650
                  %v652 = vld [vmem:[%s632 + $0xd8] sm:%s625]
                  %653 = vst [vmem:[%s633 + $0x90] sm:%s625] %v652
                  %v654 = vld [vmem:[%s632 + $0xf0] sm:%s625]
                  %655 = vst [vmem:[%s633 + $0xa0] sm:%s625] %v654
                  %v656 = vld [vmem:[%s632 + $0x108] sm:%s625]
                  %657 = vst [vmem:[%s633 + $0xb0] sm:%s625] %v656
                  %v658 = vld [vmem:[%s632 + $0x120] sm:%s625]
                  %659 = vst [vmem:[%s633 + $0xc0] sm:%s625] %v658
                  %v660 = vld [vmem:[%s632 + $0x138] sm:%s625]
                  %661 = vst [vmem:[%s633 + $0xd0] sm:%s625] %v660
                  %v662 = vld [vmem:[%s632 + $0x150] sm:%s625]
                  %663 = vst [vmem:[%s633 + $0xe0] sm:%s625] %v662
                  %v664 = vld [vmem:[%s632 + $0x168] sm:%s625]
                  %665 = vst [vmem:[%s633 + $0xf0] sm:%s625] %v664
                $region84: #{tpu_custom_call.1} parent=64 // loop_footer
                  %s631 = sadd.s32 1, %s627
                $region85: #{tpu_custom_call.1} parent=64 // loop_footer_branch
                  %626 = sbr.rel target = $region81
                $region86: #{tpu_custom_call.1} parent=64 // loop_exit
                  _
              $region65: #{tpu_custom_call.1} parent=31 // pred_fallthru
                _
            $region32: #{tpu_custom_call.1} parent=27 // pred_fallthru
              _
            // Predicated region
            $region33: #{tpu_custom_call.1} parent=27 // pred_check
              %p154 = pneg %p150
            $region34: #{tpu_custom_call.1} parent=27 // pred_check_branch
              %156 = sbr.rel (%p154) target = $region36
            $region35: #{tpu_custom_call.1} parent=27 // pred_region
              %s157 = sshllo.u32 0, %s146
              loop: start=0, step=1, limit=1
              $region37: #{tpu_custom_call.1} parent=35 // loop_pre_header
                _
              $region38: #{tpu_custom_call.1} parent=35 // loop_header
                %s159 = sphi 0, %s163
                %p160 = scmp.ge.s32.totalorder %s159, 1
                %s164 = sphi %s145, %s145
                %s165 = sphi %s135, %s135
              $region39: #{tpu_custom_call.1} parent=35 // loop_header_branch
                %162 = sbr.rel (%p160) target = $region43
              $region40: #{tpu_custom_call.1} parent=35 // loop_body
                %v166 = vld [vmem:[%s164] sm:%s157]
                %167 = vst [vmem:[%s165] sm:%s157] %v166
                %v168 = vld [vmem:[%s164 + $0x18] sm:%s157]
                %169 = vst [vmem:[%s165 + $0x10] sm:%s157] %v168
                %v170 = vld [vmem:[%s164 + $0x30] sm:%s157]
                %171 = vst [vmem:[%s165 + $0x20] sm:%s157] %v170
                %v172 = vld [vmem:[%s164 + $0x48] sm:%s157]
                %173 = vst [vmem:[%s165 + $0x30] sm:%s157] %v172
                %v174 = vld [vmem:[%s164 + $0x60] sm:%s157]
                %175 = vst [vmem:[%s165 + $0x40] sm:%s157] %v174
                %v176 = vld [vmem:[%s164 + $0x78] sm:%s157]
                %177 = vst [vmem:[%s165 + $0x50] sm:%s157] %v176
                %v178 = vld [vmem:[%s164 + $0x90] sm:%s157]
                %179 = vst [vmem:[%s165 + $0x60] sm:%s157] %v178
                %v180 = vld [vmem:[%s164 + $0xa8] sm:%s157]
                %181 = vst [vmem:[%s165 + $0x70] sm:%s157] %v180
                %v182 = vld [vmem:[%s164 + $0xc0] sm:%s157]
                %183 = vst [vmem:[%s165 + $0x80] sm:%s157] %v182
                %v184 = vld [vmem:[%s164 + $0xd8] sm:%s157]
                %185 = vst [vmem:[%s165 + $0x90] sm:%s157] %v184
                %v186 = vld [vmem:[%s164 + $0xf0] sm:%s157]
                %187 = vst [vmem:[%s165 + $0xa0] sm:%s157] %v186
                %v188 = vld [vmem:[%s164 + $0x108] sm:%s157]
                %189 = vst [vmem:[%s165 + $0xb0] sm:%s157] %v188
                %v190 = vld [vmem:[%s164 + $0x120] sm:%s157]
                %191 = vst [vmem:[%s165 + $0xc0] sm:%s157] %v190
                %v192 = vld [vmem:[%s164 + $0x138] sm:%s157]
                %193 = vst [vmem:[%s165 + $0xd0] sm:%s157] %v192
                %v194 = vld [vmem:[%s164 + $0x150] sm:%s157]
                %195 = vst [vmem:[%s165 + $0xe0] sm:%s157] %v194
                %v196 = vld [vmem:[%s164 + $0x168] sm:%s157]
                %197 = vst [vmem:[%s165 + $0xf0] sm:%s157] %v196
              $region41: #{tpu_custom_call.1} parent=35 // loop_footer
                %s163 = sadd.s32 1, %s159
              $region42: #{tpu_custom_call.1} parent=35 // loop_footer_branch
                %158 = sbr.rel target = $region38
              $region43: #{tpu_custom_call.1} parent=35 // loop_exit
                _
            $region36: #{tpu_custom_call.1} parent=27 // pred_fallthru
              _
          $region28: #{tpu_custom_call.1} parent=23 // pred_fallthru
            _
          %666 = vnop
        $region24: #{tpu_custom_call.1} parent=19 // pred_fallthru
          _
      $region20: #{tpu_custom_call.1} parent=5 // pred_fallthru
        _
      %p667 = scmp.le.s32.totalorder 1, %s12
      %p668 = scmp.lt.s32.totalorder %s12, 5
      %p669 = pnand %p667, %p668
      %p670 = pneg %p669
      // Predicated region
      $region87: #{tpu_custom_call.1} parent=5 // pred_check
        _
      $region88: #{tpu_custom_call.1} parent=5 // pred_check_branch
        %672 = sbr.rel (%p669) target = $region90
      $region89: #{tpu_custom_call.1} parent=5 // pred_region
        %s673 = ssub.s32 %s12, 1
        // Predicated region
        $region91: #{tpu_custom_call.1} parent=89 // pred_check
          %p674 = pneg %p45
        $region92: #{tpu_custom_call.1} parent=89 // pred_check_branch
          %676 = sbr.rel (%p674) target = $region94
        $region93: #{tpu_custom_call.1} parent=89 // pred_region
          %677 = dma.done [#allocation4], 32
        $region94: #{tpu_custom_call.1} parent=89 // pred_fallthru
          _
        %s678 = sand.u32 %s60, 1
        %s679 = sand.u32 %s60, 1
        %s680 = smul.addr %s679, 256
        %s681 = scalar_lea.vmem [#allocation5], %s680
        // Predicated region
        $region95: #{tpu_custom_call.1} parent=89 // pred_check
          %p682 = pneg %p73
        $region96: #{tpu_custom_call.1} parent=89 // pred_check_branch
          %684 = sbr.rel (%p682) target = $region98
        $region97: #{tpu_custom_call.1} parent=89 // pred_region
          _
        $region98: #{tpu_custom_call.1} parent=89 // pred_fallthru
          _
        %685 = sfence
        %p686 = pneg %p45
        %p687 = pneg %p42
        %s688 = sand.u32 %s60, 1
        %s689 = sand.u32 %s60, 1
        %s690 = smul.addr %s689, 256
        %s691 = scalar_lea.vmem [#allocation5], %s690
        %p692 = pneg %p73
        %p693 = pneg %p70
        %p694 = pneg %p99
        %p695 = pneg %p96
        %s696 = sand.u32 %s86, 1
        %s697 = scalar_lea.sflag [#allocation3], %s696
        %s698 = sand.u32 %s86, 1
        %s699 = scalar_lea.vmem [#allocation6], %s698
        %s700 = smul.u32 2, %s22
        %s701 = ssub.s32 3, %s700
        %p702 = scmp.lt.s32.totalorder %s701, 2
        %s703 = scalar_select %p702, %s701, 2
        %s704 = smul.u32 2048, %s703
        %s705 = sld [smem:[#allocation2 + %s21]]
        %s706 = sshra.s32 %s21, 7
        %s707 = sand.u32 %s21, 127
        %s708 = sadd.s32 %s706, 1
        %s709 = smul.u32 %s708, 128
        %s710 = sshra.s32 %s21, 7
        %s711 = sand.u32 %s21, 127
        %s712 = sadd.s32 %s709, %s711
        %s713 = sld [smem:[#allocation2 + %s712]]
        %v714 = vld [vmem:[%s681] sm:$0xff]
        %v715 = vld [vmem:[%s681 + $0x8] sm:$0xff]
        %v716 = vld [vmem:[%s681 + $0x10] sm:$0xff]
        %v717 = vld [vmem:[%s681 + $0x18] sm:$0xff]
        %v718 = vld [vmem:[%s681 + $0x20] sm:$0xff]
        %v719 = vld [vmem:[%s681 + $0x28] sm:$0xff]
        %v720 = vld [vmem:[%s681 + $0x30] sm:$0xff]
        %v721 = vld [vmem:[%s681 + $0x38] sm:$0xff]
        %v722 = vld [vmem:[%s681 + $0x40] sm:$0xff]
        %v723 = vld [vmem:[%s681 + $0x48] sm:$0xff]
        %v724 = vld [vmem:[%s681 + $0x50] sm:$0xff]
        %v725 = vld [vmem:[%s681 + $0x58] sm:$0xff]
        %v726 = vld [vmem:[%s681 + $0x60] sm:$0xff]
        %v727 = vld [vmem:[%s681 + $0x68] sm:$0xff]
        %v728 = vld [vmem:[%s681 + $0x70] sm:$0xff]
        %v729 = vld [vmem:[%s681 + $0x78] sm:$0xff]
        %v730 = vld [vmem:[%s681 + $0x80] sm:$0xff]
        %v731 = vld [vmem:[%s681 + $0x88] sm:$0xff]
        %v732 = vld [vmem:[%s681 + $0x90] sm:$0xff]
        %v733 = vld [vmem:[%s681 + $0x98] sm:$0xff]
        %v734 = vld [vmem:[%s681 + $0xa0] sm:$0xff]
        %v735 = vld [vmem:[%s681 + $0xa8] sm:$0xff]
        %v736 = vld [vmem:[%s681 + $0xb0] sm:$0xff]
        %v737 = vld [vmem:[%s681 + $0xb8] sm:$0xff]
        %v738 = vld [vmem:[%s681 + $0xc0] sm:$0xff]
        %v739 = vld [vmem:[%s681 + $0xc8] sm:$0xff]
        %v740 = vld [vmem:[%s681 + $0xd0] sm:$0xff]
        %v741 = vld [vmem:[%s681 + $0xd8] sm:$0xff]
        %v742 = vld [vmem:[%s681 + $0xe0] sm:$0xff]
        %v743 = vld [vmem:[%s681 + $0xe8] sm:$0xff]
        %v744 = vld [vmem:[%s681 + $0xf0] sm:$0xff]
        %v745 = vld [vmem:[%s681 + $0xf8] sm:$0xff]
        %v746 = vstv %s705
        %v747 = vsub.f32 %v714, %v746
        %v748 = vsub.f32 %v715, %v746
        %v749 = vsub.f32 %v716, %v746
        %v750 = vsub.f32 %v717, %v746
        %v751 = vsub.f32 %v718, %v746
        %v752 = vsub.f32 %v719, %v746
        %v753 = vsub.f32 %v720, %v746
        %v754 = vsub.f32 %v721, %v746
        %v755 = vsub.f32 %v722, %v746
        %v756 = vsub.f32 %v723, %v746
        %v757 = vsub.f32 %v724, %v746
        %v758 = vsub.f32 %v725, %v746
        %v759 = vsub.f32 %v726, %v746
        %v760 = vsub.f32 %v727, %v746
        %v761 = vsub.f32 %v728, %v746
        %v762 = vsub.f32 %v729, %v746
        %v763 = vsub.f32 %v730, %v746
        %v764 = vsub.f32 %v731, %v746
        %v765 = vsub.f32 %v732, %v746
        %v766 = vsub.f32 %v733, %v746
        %v767 = vsub.f32 %v734, %v746
        %v768 = vsub.f32 %v735, %v746
        %v769 = vsub.f32 %v736, %v746
        %v770 = vsub.f32 %v737, %v746
        %v771 = vsub.f32 %v738, %v746
        %v772 = vsub.f32 %v739, %v746
        %v773 = vsub.f32 %v740, %v746
        %v774 = vsub.f32 %v741, %v746
        %v775 = vsub.f32 %v742, %v746
        %v776 = vsub.f32 %v743, %v746
        %v777 = vsub.f32 %v744, %v746
        %v778 = vsub.f32 %v745, %v746
        %v779 = vstv %s713
        %v780 = vmul.f32 %v747, %v779
        %v781 = vmul.f32 %v748, %v779
        %v782 = vmul.f32 %v749, %v779
        %v783 = vmul.f32 %v750, %v779
        %v784 = vmul.f32 %v751, %v779
        %v785 = vmul.f32 %v752, %v779
        %v786 = vmul.f32 %v753, %v779
        %v787 = vmul.f32 %v754, %v779
        %v788 = vmul.f32 %v755, %v779
        %v789 = vmul.f32 %v756, %v779
        %v790 = vmul.f32 %v757, %v779
        %v791 = vmul.f32 %v758, %v779
        %v792 = vmul.f32 %v759, %v779
        %v793 = vmul.f32 %v760, %v779
        %v794 = vmul.f32 %v761, %v779
        %v795 = vmul.f32 %v762, %v779
        %v796 = vmul.f32 %v763, %v779
        %v797 = vmul.f32 %v764, %v779
        %v798 = vmul.f32 %v765, %v779
        %v799 = vmul.f32 %v766, %v779
        %v800 = vmul.f32 %v767, %v779
        %v801 = vmul.f32 %v768, %v779
        %v802 = vmul.f32 %v769, %v779
        %v803 = vmul.f32 %v770, %v779
        %v804 = vmul.f32 %v771, %v779
        %v805 = vmul.f32 %v772, %v779
        %v806 = vmul.f32 %v773, %v779
        %v807 = vmul.f32 %v774, %v779
        %v808 = vmul.f32 %v775, %v779
        %v809 = vmul.f32 %v776, %v779
        %v810 = vmul.f32 %v777, %v779
        %v811 = vmul.f32 %v778, %v779
        %v812 = vfloor.f32 %v780
        %v813 = vfloor.f32 %v781
        %v814 = vfloor.f32 %v782
        %v815 = vfloor.f32 %v783
        %v816 = vfloor.f32 %v784
        %v817 = vfloor.f32 %v785
        %v818 = vfloor.f32 %v786
        %v819 = vfloor.f32 %v787
        %v820 = vfloor.f32 %v788
        %v821 = vfloor.f32 %v789
        %v822 = vfloor.f32 %v790
        %v823 = vfloor.f32 %v791
        %v824 = vfloor.f32 %v792
        %v825 = vfloor.f32 %v793
        %v826 = vfloor.f32 %v794
        %v827 = vfloor.f32 %v795
        %v828 = vfloor.f32 %v796
        %v829 = vfloor.f32 %v797
        %v830 = vfloor.f32 %v798
        %v831 = vfloor.f32 %v799
        %v832 = vfloor.f32 %v800
        %v833 = vfloor.f32 %v801
        %v834 = vfloor.f32 %v802
        %v835 = vfloor.f32 %v803
        %v836 = vfloor.f32 %v804
        %v837 = vfloor.f32 %v805
        %v838 = vfloor.f32 %v806
        %v839 = vfloor.f32 %v807
        %v840 = vfloor.f32 %v808
        %v841 = vfloor.f32 %v809
        %v842 = vfloor.f32 %v810
        %v843 = vfloor.f32 %v811
        %v844 = vmax.f32 %v812, 0.0
        %v845 = vmax.f32 %v813, 0.0
        %v846 = vmax.f32 %v814, 0.0
        %v847 = vmax.f32 %v815, 0.0
        %v848 = vmax.f32 %v816, 0.0
        %v849 = vmax.f32 %v817, 0.0
        %v850 = vmax.f32 %v818, 0.0
        %v851 = vmax.f32 %v819, 0.0
        %v852 = vmax.f32 %v820, 0.0
        %v853 = vmax.f32 %v821, 0.0
        %v854 = vmax.f32 %v822, 0.0
        %v855 = vmax.f32 %v823, 0.0
        %v856 = vmax.f32 %v824, 0.0
        %v857 = vmax.f32 %v825, 0.0
        %v858 = vmax.f32 %v826, 0.0
        %v859 = vmax.f32 %v827, 0.0
        %v860 = vmax.f32 %v828, 0.0
        %v861 = vmax.f32 %v829, 0.0
        %v862 = vmax.f32 %v830, 0.0
        %v863 = vmax.f32 %v831, 0.0
        %v864 = vmax.f32 %v832, 0.0
        %v865 = vmax.f32 %v833, 0.0
        %v866 = vmax.f32 %v834, 0.0
        %v867 = vmax.f32 %v835, 0.0
        %v868 = vmax.f32 %v836, 0.0
        %v869 = vmax.f32 %v837, 0.0
        %v870 = vmax.f32 %v838, 0.0
        %v871 = vmax.f32 %v839, 0.0
        %v872 = vmax.f32 %v840, 0.0
        %v873 = vmax.f32 %v841, 0.0
        %v874 = vmax.f32 %v842, 0.0
        %v875 = vmax.f32 %v843, 0.0
        %v876 = vmin.f32 %v844, 15.0
        %v877 = vmin.f32 %v845, 15.0
        %v878 = vmin.f32 %v846, 15.0
        %v879 = vmin.f32 %v847, 15.0
        %v880 = vmin.f32 %v848, 15.0
        %v881 = vmin.f32 %v849, 15.0
        %v882 = vmin.f32 %v850, 15.0
        %v883 = vmin.f32 %v851, 15.0
        %v884 = vmin.f32 %v852, 15.0
        %v885 = vmin.f32 %v853, 15.0
        %v886 = vmin.f32 %v854, 15.0
        %v887 = vmin.f32 %v855, 15.0
        %v888 = vmin.f32 %v856, 15.0
        %v889 = vmin.f32 %v857, 15.0
        %v890 = vmin.f32 %v858, 15.0
        %v891 = vmin.f32 %v859, 15.0
        %v892 = vmin.f32 %v860, 15.0
        %v893 = vmin.f32 %v861, 15.0
        %v894 = vmin.f32 %v862, 15.0
        %v895 = vmin.f32 %v863, 15.0
        %v896 = vmin.f32 %v864, 15.0
        %v897 = vmin.f32 %v865, 15.0
        %v898 = vmin.f32 %v866, 15.0
        %v899 = vmin.f32 %v867, 15.0
        %v900 = vmin.f32 %v868, 15.0
        %v901 = vmin.f32 %v869, 15.0
        %v902 = vmin.f32 %v870, 15.0
        %v903 = vmin.f32 %v871, 15.0
        %v904 = vmin.f32 %v872, 15.0
        %v905 = vmin.f32 %v873, 15.0
        %v906 = vmin.f32 %v874, 15.0
        %v907 = vmin.f32 %v875, 15.0
        %s908 = smul.u32 %s22, 256
        %v909 = vlaneseq
        %v910 = vand.u32 %v909, 127
        %v911 = vadd.s32 %v910, 128
        %v912 = vstv %s908
        %v913 = vadd.s32 %v912, %v910
        %v914 = vadd.s32 %v912, %v911
        %vm915 = vcmp.lt.s32.totalorder %v913, 320
        %vm916 = vcmp.lt.s32.totalorder %v914, 320
        %v917 = vsel %vm915, %v876, -1.0
        %v918 = vsel %vm916, %v877, -1.0
        %v919 = vsel %vm915, %v878, -1.0
        %v920 = vsel %vm916, %v879, -1.0
        %v921 = vsel %vm915, %v880, -1.0
        %v922 = vsel %vm916, %v881, -1.0
        %v923 = vsel %vm915, %v882, -1.0
        %v924 = vsel %vm916, %v883, -1.0
        %v925 = vsel %vm915, %v884, -1.0
        %v926 = vsel %vm916, %v885, -1.0
        %v927 = vsel %vm915, %v886, -1.0
        %v928 = vsel %vm916, %v887, -1.0
        %v929 = vsel %vm915, %v888, -1.0
        %v930 = vsel %vm916, %v889, -1.0
        %v931 = vsel %vm915, %v890, -1.0
        %v932 = vsel %vm916, %v891, -1.0
        %v933 = vsel %vm915, %v892, -1.0
        %v934 = vsel %vm916, %v893, -1.0
        %v935 = vsel %vm915, %v894, -1.0
        %v936 = vsel %vm916, %v895, -1.0
        %v937 = vsel %vm915, %v896, -1.0
        %v938 = vsel %vm916, %v897, -1.0
        %v939 = vsel %vm915, %v898, -1.0
        %v940 = vsel %vm916, %v899, -1.0
        %v941 = vsel %vm915, %v900, -1.0
        %v942 = vsel %vm916, %v901, -1.0
        %v943 = vsel %vm915, %v902, -1.0
        %v944 = vsel %vm916, %v903, -1.0
        %v945 = vsel %vm915, %v904, -1.0
        %v946 = vsel %vm916, %v905, -1.0
        %v947 = vsel %vm915, %v906, -1.0
        %v948 = vsel %vm916, %v907, -1.0
        %vm949 = vcmp.eq.f32.partialorder %v917, 0.0
        %vm950 = vcmp.eq.f32.partialorder %v918, 0.0
        %vm951 = vcmp.eq.f32.partialorder %v919, 0.0
        %vm952 = vcmp.eq.f32.partialorder %v920, 0.0
        %vm953 = vcmp.eq.f32.partialorder %v921, 0.0
        %vm954 = vcmp.eq.f32.partialorder %v922, 0.0
        %vm955 = vcmp.eq.f32.partialorder %v923, 0.0
        %vm956 = vcmp.eq.f32.partialorder %v924, 0.0
        %vm957 = vcmp.eq.f32.partialorder %v925, 0.0
        %vm958 = vcmp.eq.f32.partialorder %v926, 0.0
        %vm959 = vcmp.eq.f32.partialorder %v927, 0.0
        %vm960 = vcmp.eq.f32.partialorder %v928, 0.0
        %vm961 = vcmp.eq.f32.partialorder %v929, 0.0
        %vm962 = vcmp.eq.f32.partialorder %v930, 0.0
        %vm963 = vcmp.eq.f32.partialorder %v931, 0.0
        %vm964 = vcmp.eq.f32.partialorder %v932, 0.0
        %vm965 = vcmp.eq.f32.partialorder %v933, 0.0
        %vm966 = vcmp.eq.f32.partialorder %v934, 0.0
        %vm967 = vcmp.eq.f32.partialorder %v935, 0.0
        %vm968 = vcmp.eq.f32.partialorder %v936, 0.0
        %vm969 = vcmp.eq.f32.partialorder %v937, 0.0
        %vm970 = vcmp.eq.f32.partialorder %v938, 0.0
        %vm971 = vcmp.eq.f32.partialorder %v939, 0.0
        %vm972 = vcmp.eq.f32.partialorder %v940, 0.0
        %vm973 = vcmp.eq.f32.partialorder %v941, 0.0
        %vm974 = vcmp.eq.f32.partialorder %v942, 0.0
        %vm975 = vcmp.eq.f32.partialorder %v943, 0.0
        %vm976 = vcmp.eq.f32.partialorder %v944, 0.0
        %vm977 = vcmp.eq.f32.partialorder %v945, 0.0
        %vm978 = vcmp.eq.f32.partialorder %v946, 0.0
        %vm979 = vcmp.eq.f32.partialorder %v947, 0.0
        %vm980 = vcmp.eq.f32.partialorder %v948, 0.0
        %v981 = vsel %vm949, 1, 0
        %v982 = vsel %vm950, 1, 0
        %v983 = vsel %vm951, 1, 0
        %v984 = vsel %vm952, 1, 0
        %v985 = vsel %vm953, 1, 0
        %v986 = vsel %vm954, 1, 0
        %v987 = vsel %vm955, 1, 0
        %v988 = vsel %vm956, 1, 0
        %v989 = vsel %vm957, 1, 0
        %v990 = vsel %vm958, 1, 0
        %v991 = vsel %vm959, 1, 0
        %v992 = vsel %vm960, 1, 0
        %v993 = vsel %vm961, 1, 0
        %v994 = vsel %vm962, 1, 0
        %v995 = vsel %vm963, 1, 0
        %v996 = vsel %vm964, 1, 0
        %v997 = vsel %vm965, 1, 0
        %v998 = vsel %vm966, 1, 0
        %v999 = vsel %vm967, 1, 0
        %v1000 = vsel %vm968, 1, 0
        %v1001 = vsel %vm969, 1, 0
        %v1002 = vsel %vm970, 1, 0
        %v1003 = vsel %vm971, 1, 0
        %v1004 = vsel %vm972, 1, 0
        %v1005 = vsel %vm973, 1, 0
        %v1006 = vsel %vm974, 1, 0
        %v1007 = vsel %vm975, 1, 0
        %v1008 = vsel %vm976, 1, 0
        %v1009 = vsel %vm977, 1, 0
        %v1010 = vsel %vm978, 1, 0
        %v1011 = vsel %vm979, 1, 0
        %v1012 = vsel %vm980, 1, 0
        %v1013 = vcvt.s32.f32 %v981
        %v1014 = vcvt.s32.f32 %v982
        %v1015 = vcvt.s32.f32 %v983
        %v1016 = vcvt.s32.f32 %v984
        %v1017 = vcvt.s32.f32 %v985
        %v1018 = vcvt.s32.f32 %v986
        %v1019 = vcvt.s32.f32 %v987
        %v1020 = vcvt.s32.f32 %v988
        %v1021 = vcvt.s32.f32 %v989
        %v1022 = vcvt.s32.f32 %v990
        %v1023 = vcvt.s32.f32 %v991
        %v1024 = vcvt.s32.f32 %v992
        %v1025 = vcvt.s32.f32 %v993
        %v1026 = vcvt.s32.f32 %v994
        %v1027 = vcvt.s32.f32 %v995
        %v1028 = vcvt.s32.f32 %v996
        %v1029 = vcvt.s32.f32 %v997
        %v1030 = vcvt.s32.f32 %v998
        %v1031 = vcvt.s32.f32 %v999
        %v1032 = vcvt.s32.f32 %v1000
        %v1033 = vcvt.s32.f32 %v1001
        %v1034 = vcvt.s32.f32 %v1002
        %v1035 = vcvt.s32.f32 %v1003
        %v1036 = vcvt.s32.f32 %v1004
        %v1037 = vcvt.s32.f32 %v1005
        %v1038 = vcvt.s32.f32 %v1006
        %v1039 = vcvt.s32.f32 %v1007
        %v1040 = vcvt.s32.f32 %v1008
        %v1041 = vcvt.s32.f32 %v1009
        %v1042 = vcvt.s32.f32 %v1010
        %v1043 = vcvt.s32.f32 %v1011
        %v1044 = vcvt.s32.f32 %v1012
        %v1045 = vadd.f32 %v1013, %v1014
        %v1046 = vadd.f32 %v1045, %v1015
        %v1047 = vadd.f32 %v1046, %v1016
        %v1048 = vadd.f32 %v1047, %v1017
        %v1049 = vadd.f32 %v1048, %v1018
        %v1050 = vadd.f32 %v1049, %v1019
        %v1051 = vadd.f32 %v1050, %v1020
        %v1052 = vadd.f32 %v1051, %v1021
        %v1053 = vadd.f32 %v1052, %v1022
        %v1054 = vadd.f32 %v1053, %v1023
        %v1055 = vadd.f32 %v1054, %v1024
        %v1056 = vadd.f32 %v1055, %v1025
        %v1057 = vadd.f32 %v1056, %v1026
        %v1058 = vadd.f32 %v1057, %v1027
        %v1059 = vadd.f32 %v1058, %v1028
        %v1060 = vadd.f32 %v1059, %v1029
        %v1061 = vadd.f32 %v1060, %v1030
        %v1062 = vadd.f32 %v1061, %v1031
        %v1063 = vadd.f32 %v1062, %v1032
        %v1064 = vadd.f32 %v1063, %v1033
        %v1065 = vadd.f32 %v1064, %v1034
        %v1066 = vadd.f32 %v1065, %v1035
        %v1067 = vadd.f32 %v1066, %v1036
        %v1068 = vadd.f32 %v1067, %v1037
        %v1069 = vadd.f32 %v1068, %v1038
        %v1070 = vadd.f32 %v1069, %v1039
        %v1071 = vadd.f32 %v1070, %v1040
        %v1072 = vadd.f32 %v1071, %v1041
        %v1073 = vadd.f32 %v1072, %v1042
        %v1074 = vadd.f32 %v1073, %v1043
        %v1075 = vadd.f32 %v1074, %v1044
        %1076 = vadd.xlane.f32.xlu0 %v1075
        %v1077 = vpop.xlane.xlu0 %1076
        %v1078 = vrot.slane %v1077, 4
        %v1079 = vadd.f32 %v1077, %v1078
        %v1080 = vrot.slane %v1079, 2
        %v1081 = vadd.f32 %v1079, %v1080
        %v1082 = vrot.slane %v1081, 1
        %v1083 = vadd.f32 %v1081, %v1082
        %s1084 = vtos %v1083
        %vm1085 = vcmp.eq.s32.totalorder %v910, 0
        %v1086 = vstv %s1084
        %v1087 = vsel %vm1085, %v1086, 0.0
        %v1088 = vadd.f32 %v1087, 0.0
        %vm1089 = vcmp.eq.f32.partialorder %v917, 1.0
        %vm1090 = vcmp.eq.f32.partialorder %v918, 1.0
        %vm1091 = vcmp.eq.f32.partialorder %v919, 1.0
        %vm1092 = vcmp.eq.f32.partialorder %v920, 1.0
        %vm1093 = vcmp.eq.f32.partialorder %v921, 1.0
        %vm1094 = vcmp.eq.f32.partialorder %v922, 1.0
        %vm1095 = vcmp.eq.f32.partialorder %v923, 1.0
        %vm1096 = vcmp.eq.f32.partialorder %v924, 1.0
        %vm1097 = vcmp.eq.f32.partialorder %v925, 1.0
        %vm1098 = vcmp.eq.f32.partialorder %v926, 1.0
        %vm1099 = vcmp.eq.f32.partialorder %v927, 1.0
        %vm1100 = vcmp.eq.f32.partialorder %v928, 1.0
        %vm1101 = vcmp.eq.f32.partialorder %v929, 1.0
        %vm1102 = vcmp.eq.f32.partialorder %v930, 1.0
        %vm1103 = vcmp.eq.f32.partialorder %v931, 1.0
        %vm1104 = vcmp.eq.f32.partialorder %v932, 1.0
        %vm1105 = vcmp.eq.f32.partialorder %v933, 1.0
        %vm1106 = vcmp.eq.f32.partialorder %v934, 1.0
        %vm1107 = vcmp.eq.f32.partialorder %v935, 1.0
        %vm1108 = vcmp.eq.f32.partialorder %v936, 1.0
        %vm1109 = vcmp.eq.f32.partialorder %v937, 1.0
        %vm1110 = vcmp.eq.f32.partialorder %v938, 1.0
        %vm1111 = vcmp.eq.f32.partialorder %v939, 1.0
        %vm1112 = vcmp.eq.f32.partialorder %v940, 1.0
        %vm1113 = vcmp.eq.f32.partialorder %v941, 1.0
        %vm1114 = vcmp.eq.f32.partialorder %v942, 1.0
        %vm1115 = vcmp.eq.f32.partialorder %v943, 1.0
        %vm1116 = vcmp.eq.f32.partialorder %v944, 1.0
        %vm1117 = vcmp.eq.f32.partialorder %v945, 1.0
        %vm1118 = vcmp.eq.f32.partialorder %v946, 1.0
        %vm1119 = vcmp.eq.f32.partialorder %v947, 1.0
        %vm1120 = vcmp.eq.f32.partialorder %v948, 1.0
        %v1121 = vsel %vm1089, 1, 0
        %v1122 = vsel %vm1090, 1, 0
        %v1123 = vsel %vm1091, 1, 0
        %v1124 = vsel %vm1092, 1, 0
        %v1125 = vsel %vm1093, 1, 0
        %v1126 = vsel %vm1094, 1, 0
        %v1127 = vsel %vm1095, 1, 0
        %v1128 = vsel %vm1096, 1, 0
        %v1129 = vsel %vm1097, 1, 0
        %v1130 = vsel %vm1098, 1, 0
        %v1131 = vsel %vm1099, 1, 0
        %v1132 = vsel %vm1100, 1, 0
        %v1133 = vsel %vm1101, 1, 0
        %v1134 = vsel %vm1102, 1, 0
        %v1135 = vsel %vm1103, 1, 0
        %v1136 = vsel %vm1104, 1, 0
        %v1137 = vsel %vm1105, 1, 0
        %v1138 = vsel %vm1106, 1, 0
        %v1139 = vsel %vm1107, 1, 0
        %v1140 = vsel %vm1108, 1, 0
        %v1141 = vsel %vm1109, 1, 0
        %v1142 = vsel %vm1110, 1, 0
        %v1143 = vsel %vm1111, 1, 0
        %v1144 = vsel %vm1112, 1, 0
        %v1145 = vsel %vm1113, 1, 0
        %v1146 = vsel %vm1114, 1, 0
        %v1147 = vsel %vm1115, 1, 0
        %v1148 = vsel %vm1116, 1, 0
        %v1149 = vsel %vm1117, 1, 0
        %v1150 = vsel %vm1118, 1, 0
        %v1151 = vsel %vm1119, 1, 0
        %v1152 = vsel %vm1120, 1, 0
        %v1153 = vcvt.s32.f32 %v1121
        %v1154 = vcvt.s32.f32 %v1122
        %v1155 = vcvt.s32.f32 %v1123
        %v1156 = vcvt.s32.f32 %v1124
        %v1157 = vcvt.s32.f32 %v1125
        %v1158 = vcvt.s32.f32 %v1126
        %v1159 = vcvt.s32.f32 %v1127
        %v1160 = vcvt.s32.f32 %v1128
        %v1161 = vcvt.s32.f32 %v1129
        %v1162 = vcvt.s32.f32 %v1130
        %v1163 = vcvt.s32.f32 %v1131
        %v1164 = vcvt.s32.f32 %v1132
        %v1165 = vcvt.s32.f32 %v1133
        %v1166 = vcvt.s32.f32 %v1134
        %v1167 = vcvt.s32.f32 %v1135
        %v1168 = vcvt.s32.f32 %v1136
        %v1169 = vcvt.s32.f32 %v1137
        %v1170 = vcvt.s32.f32 %v1138
        %v1171 = vcvt.s32.f32 %v1139
        %v1172 = vcvt.s32.f32 %v1140
        %v1173 = vcvt.s32.f32 %v1141
        %v1174 = vcvt.s32.f32 %v1142
        %v1175 = vcvt.s32.f32 %v1143
        %v1176 = vcvt.s32.f32 %v1144
        %v1177 = vcvt.s32.f32 %v1145
        %v1178 = vcvt.s32.f32 %v1146
        %v1179 = vcvt.s32.f32 %v1147
        %v1180 = vcvt.s32.f32 %v1148
        %v1181 = vcvt.s32.f32 %v1149
        %v1182 = vcvt.s32.f32 %v1150
        %v1183 = vcvt.s32.f32 %v1151
        %v1184 = vcvt.s32.f32 %v1152
        %v1185 = vadd.f32 %v1153, %v1154
        %v1186 = vadd.f32 %v1185, %v1155
        %v1187 = vadd.f32 %v1186, %v1156
        %v1188 = vadd.f32 %v1187, %v1157
        %v1189 = vadd.f32 %v1188, %v1158
        %v1190 = vadd.f32 %v1189, %v1159
        %v1191 = vadd.f32 %v1190, %v1160
        %v1192 = vadd.f32 %v1191, %v1161
        %v1193 = vadd.f32 %v1192, %v1162
        %v1194 = vadd.f32 %v1193, %v1163
        %v1195 = vadd.f32 %v1194, %v1164
        %v1196 = vadd.f32 %v1195, %v1165
        %v1197 = vadd.f32 %v1196, %v1166
        %v1198 = vadd.f32 %v1197, %v1167
        %v1199 = vadd.f32 %v1198, %v1168
        %v1200 = vadd.f32 %v1199, %v1169
        %v1201 = vadd.f32 %v1200, %v1170
        %v1202 = vadd.f32 %v1201, %v1171
        %v1203 = vadd.f32 %v1202, %v1172
        %v1204 = vadd.f32 %v1203, %v1173
        %v1205 = vadd.f32 %v1204, %v1174
        %v1206 = vadd.f32 %v1205, %v1175
        %v1207 = vadd.f32 %v1206, %v1176
        %v1208 = vadd.f32 %v1207, %v1177
        %v1209 = vadd.f32 %v1208, %v1178
        %v1210 = vadd.f32 %v1209, %v1179
        %v1211 = vadd.f32 %v1210, %v1180
        %v1212 = vadd.f32 %v1211, %v1181
        %v1213 = vadd.f32 %v1212, %v1182
        %v1214 = vadd.f32 %v1213, %v1183
        %v1215 = vadd.f32 %v1214, %v1184
        %1216 = vadd.xlane.f32.xlu0 %v1215
        %v1217 = vpop.xlane.xlu0 %1216
        %v1218 = vrot.slane %v1217, 4
        %v1219 = vadd.f32 %v1217, %v1218
        %v1220 = vrot.slane %v1219, 2
        %v1221 = vadd.f32 %v1219, %v1220
        %v1222 = vrot.slane %v1221, 1
        %v1223 = vadd.f32 %v1221, %v1222
        %s1224 = vtos %v1223
        %vm1225 = vcmp.eq.s32.totalorder %v910, 1
        %v1226 = vstv %s1224
        %v1227 = vsel %vm1225, %v1226, 0.0
        %v1228 = vadd.f32 %v1088, %v1227
        %vm1229 = vcmp.eq.f32.partialorder %v917, 2.0
        %vm1230 = vcmp.eq.f32.partialorder %v918, 2.0
        %vm1231 = vcmp.eq.f32.partialorder %v919, 2.0
        %vm1232 = vcmp.eq.f32.partialorder %v920, 2.0
        %vm1233 = vcmp.eq.f32.partialorder %v921, 2.0
        %vm1234 = vcmp.eq.f32.partialorder %v922, 2.0
        %vm1235 = vcmp.eq.f32.partialorder %v923, 2.0
        %vm1236 = vcmp.eq.f32.partialorder %v924, 2.0
        %vm1237 = vcmp.eq.f32.partialorder %v925, 2.0
        %vm1238 = vcmp.eq.f32.partialorder %v926, 2.0
        %vm1239 = vcmp.eq.f32.partialorder %v927, 2.0
        %vm1240 = vcmp.eq.f32.partialorder %v928, 2.0
        %vm1241 = vcmp.eq.f32.partialorder %v929, 2.0
        %vm1242 = vcmp.eq.f32.partialorder %v930, 2.0
        %vm1243 = vcmp.eq.f32.partialorder %v931, 2.0
        %vm1244 = vcmp.eq.f32.partialorder %v932, 2.0
        %vm1245 = vcmp.eq.f32.partialorder %v933, 2.0
        %vm1246 = vcmp.eq.f32.partialorder %v934, 2.0
        %vm1247 = vcmp.eq.f32.partialorder %v935, 2.0
        %vm1248 = vcmp.eq.f32.partialorder %v936, 2.0
        %vm1249 = vcmp.eq.f32.partialorder %v937, 2.0
        %vm1250 = vcmp.eq.f32.partialorder %v938, 2.0
        %vm1251 = vcmp.eq.f32.partialorder %v939, 2.0
        %vm1252 = vcmp.eq.f32.partialorder %v940, 2.0
        %vm1253 = vcmp.eq.f32.partialorder %v941, 2.0
        %vm1254 = vcmp.eq.f32.partialorder %v942, 2.0
        %vm1255 = vcmp.eq.f32.partialorder %v943, 2.0
        %vm1256 = vcmp.eq.f32.partialorder %v944, 2.0
        %vm1257 = vcmp.eq.f32.partialorder %v945, 2.0
        %vm1258 = vcmp.eq.f32.partialorder %v946, 2.0
        %vm1259 = vcmp.eq.f32.partialorder %v947, 2.0
        %vm1260 = vcmp.eq.f32.partialorder %v948, 2.0
        %v1261 = vsel %vm1229, 1, 0
        %v1262 = vsel %vm1230, 1, 0
        %v1263 = vsel %vm1231, 1, 0
        %v1264 = vsel %vm1232, 1, 0
        %v1265 = vsel %vm1233, 1, 0
        %v1266 = vsel %vm1234, 1, 0
        %v1267 = vsel %vm1235, 1, 0
        %v1268 = vsel %vm1236, 1, 0
        %v1269 = vsel %vm1237, 1, 0
        %v1270 = vsel %vm1238, 1, 0
        %v1271 = vsel %vm1239, 1, 0
        %v1272 = vsel %vm1240, 1, 0
        %v1273 = vsel %vm1241, 1, 0
        %v1274 = vsel %vm1242, 1, 0
        %v1275 = vsel %vm1243, 1, 0
        %v1276 = vsel %vm1244, 1, 0
        %v1277 = vsel %vm1245, 1, 0
        %v1278 = vsel %vm1246, 1, 0
        %v1279 = vsel %vm1247, 1, 0
        %v1280 = vsel %vm1248, 1, 0
        %v1281 = vsel %vm1249, 1, 0
        %v1282 = vsel %vm1250, 1, 0
        %v1283 = vsel %vm1251, 1, 0
        %v1284 = vsel %vm1252, 1, 0
        %v1285 = vsel %vm1253, 1, 0
        %v1286 = vsel %vm1254, 1, 0
        %v1287 = vsel %vm1255, 1, 0
        %v1288 = vsel %vm1256, 1, 0
        %v1289 = vsel %vm1257, 1, 0
        %v1290 = vsel %vm1258, 1, 0
        %v1291 = vsel %vm1259, 1, 0
        %v1292 = vsel %vm1260, 1, 0
        %v1293 = vcvt.s32.f32 %v1261
        %v1294 = vcvt.s32.f32 %v1262
        %v1295 = vcvt.s32.f32 %v1263
        %v1296 = vcvt.s32.f32 %v1264
        %v1297 = vcvt.s32.f32 %v1265
        %v1298 = vcvt.s32.f32 %v1266
        %v1299 = vcvt.s32.f32 %v1267
        %v1300 = vcvt.s32.f32 %v1268
        %v1301 = vcvt.s32.f32 %v1269
        %v1302 = vcvt.s32.f32 %v1270
        %v1303 = vcvt.s32.f32 %v1271
        %v1304 = vcvt.s32.f32 %v1272
        %v1305 = vcvt.s32.f32 %v1273
        %v1306 = vcvt.s32.f32 %v1274
        %v1307 = vcvt.s32.f32 %v1275
        %v1308 = vcvt.s32.f32 %v1276
        %v1309 = vcvt.s32.f32 %v1277
        %v1310 = vcvt.s32.f32 %v1278
        %v1311 = vcvt.s32.f32 %v1279
        %v1312 = vcvt.s32.f32 %v1280
        %v1313 = vcvt.s32.f32 %v1281
        %v1314 = vcvt.s32.f32 %v1282
        %v1315 = vcvt.s32.f32 %v1283
        %v1316 = vcvt.s32.f32 %v1284
        %v1317 = vcvt.s32.f32 %v1285
        %v1318 = vcvt.s32.f32 %v1286
        %v1319 = vcvt.s32.f32 %v1287
        %v1320 = vcvt.s32.f32 %v1288
        %v1321 = vcvt.s32.f32 %v1289
        %v1322 = vcvt.s32.f32 %v1290
        %v1323 = vcvt.s32.f32 %v1291
        %v1324 = vcvt.s32.f32 %v1292
        %v1325 = vadd.f32 %v1293, %v1294
        %v1326 = vadd.f32 %v1325, %v1295
        %v1327 = vadd.f32 %v1326, %v1296
        %v1328 = vadd.f32 %v1327, %v1297
        %v1329 = vadd.f32 %v1328, %v1298
        %v1330 = vadd.f32 %v1329, %v1299
        %v1331 = vadd.f32 %v1330, %v1300
        %v1332 = vadd.f32 %v1331, %v1301
        %v1333 = vadd.f32 %v1332, %v1302
        %v1334 = vadd.f32 %v1333, %v1303
        %v1335 = vadd.f32 %v1334, %v1304
        %v1336 = vadd.f32 %v1335, %v1305
        %v1337 = vadd.f32 %v1336, %v1306
        %v1338 = vadd.f32 %v1337, %v1307
        %v1339 = vadd.f32 %v1338, %v1308
        %v1340 = vadd.f32 %v1339, %v1309
        %v1341 = vadd.f32 %v1340, %v1310
        %v1342 = vadd.f32 %v1341, %v1311
        %v1343 = vadd.f32 %v1342, %v1312
        %v1344 = vadd.f32 %v1343, %v1313
        %v1345 = vadd.f32 %v1344, %v1314
        %v1346 = vadd.f32 %v1345, %v1315
        %v1347 = vadd.f32 %v1346, %v1316
        %v1348 = vadd.f32 %v1347, %v1317
        %v1349 = vadd.f32 %v1348, %v1318
        %v1350 = vadd.f32 %v1349, %v1319
        %v1351 = vadd.f32 %v1350, %v1320
        %v1352 = vadd.f32 %v1351, %v1321
        %v1353 = vadd.f32 %v1352, %v1322
        %v1354 = vadd.f32 %v1353, %v1323
        %v1355 = vadd.f32 %v1354, %v1324
        %1356 = vadd.xlane.f32.xlu0 %v1355
        %v1357 = vpop.xlane.xlu0 %1356
        %v1358 = vrot.slane %v1357, 4
        %v1359 = vadd.f32 %v1357, %v1358
        %v1360 = vrot.slane %v1359, 2
        %v1361 = vadd.f32 %v1359, %v1360
        %v1362 = vrot.slane %v1361, 1
        %v1363 = vadd.f32 %v1361, %v1362
        %s1364 = vtos %v1363
        %vm1365 = vcmp.eq.s32.totalorder %v910, 2
        %v1366 = vstv %s1364
        %v1367 = vsel %vm1365, %v1366, 0.0
        %v1368 = vadd.f32 %v1228, %v1367
        %vm1369 = vcmp.eq.f32.partialorder %v917, 3.0
        %vm1370 = vcmp.eq.f32.partialorder %v918, 3.0
        %vm1371 = vcmp.eq.f32.partialorder %v919, 3.0
        %vm1372 = vcmp.eq.f32.partialorder %v920, 3.0
        %vm1373 = vcmp.eq.f32.partialorder %v921, 3.0
        %vm1374 = vcmp.eq.f32.partialorder %v922, 3.0
        %vm1375 = vcmp.eq.f32.partialorder %v923, 3.0
        %vm1376 = vcmp.eq.f32.partialorder %v924, 3.0
        %vm1377 = vcmp.eq.f32.partialorder %v925, 3.0
        %vm1378 = vcmp.eq.f32.partialorder %v926, 3.0
        %vm1379 = vcmp.eq.f32.partialorder %v927, 3.0
        %vm1380 = vcmp.eq.f32.partialorder %v928, 3.0
        %vm1381 = vcmp.eq.f32.partialorder %v929, 3.0
        %vm1382 = vcmp.eq.f32.partialorder %v930, 3.0
        %vm1383 = vcmp.eq.f32.partialorder %v931, 3.0
        %vm1384 = vcmp.eq.f32.partialorder %v932, 3.0
        %vm1385 = vcmp.eq.f32.partialorder %v933, 3.0
        %vm1386 = vcmp.eq.f32.partialorder %v934, 3.0
        %vm1387 = vcmp.eq.f32.partialorder %v935, 3.0
        %vm1388 = vcmp.eq.f32.partialorder %v936, 3.0
        %vm1389 = vcmp.eq.f32.partialorder %v937, 3.0
        %vm1390 = vcmp.eq.f32.partialorder %v938, 3.0
        %vm1391 = vcmp.eq.f32.partialorder %v939, 3.0
        %vm1392 = vcmp.eq.f32.partialorder %v940, 3.0
        %vm1393 = vcmp.eq.f32.partialorder %v941, 3.0
        %vm1394 = vcmp.eq.f32.partialorder %v942, 3.0
        %vm1395 = vcmp.eq.f32.partialorder %v943, 3.0
        %vm1396 = vcmp.eq.f32.partialorder %v944, 3.0
        %vm1397 = vcmp.eq.f32.partialorder %v945, 3.0
        %vm1398 = vcmp.eq.f32.partialorder %v946, 3.0
        %vm1399 = vcmp.eq.f32.partialorder %v947, 3.0
        %vm1400 = vcmp.eq.f32.partialorder %v948, 3.0
        %v1401 = vsel %vm1369, 1, 0
        %v1402 = vsel %vm1370, 1, 0
        %v1403 = vsel %vm1371, 1, 0
        %v1404 = vsel %vm1372, 1, 0
        %v1405 = vsel %vm1373, 1, 0
        %v1406 = vsel %vm1374, 1, 0
        %v1407 = vsel %vm1375, 1, 0
        %v1408 = vsel %vm1376, 1, 0
        %v1409 = vsel %vm1377, 1, 0
        %v1410 = vsel %vm1378, 1, 0
        %v1411 = vsel %vm1379, 1, 0
        %v1412 = vsel %vm1380, 1, 0
        %v1413 = vsel %vm1381, 1, 0
        %v1414 = vsel %vm1382, 1, 0
        %v1415 = vsel %vm1383, 1, 0
        %v1416 = vsel %vm1384, 1, 0
        %v1417 = vsel %vm1385, 1, 0
        %v1418 = vsel %vm1386, 1, 0
        %v1419 = vsel %vm1387, 1, 0
        %v1420 = vsel %vm1388, 1, 0
        %v1421 = vsel %vm1389, 1, 0
        %v1422 = vsel %vm1390, 1, 0
        %v1423 = vsel %vm1391, 1, 0
        %v1424 = vsel %vm1392, 1, 0
        %v1425 = vsel %vm1393, 1, 0
        %v1426 = vsel %vm1394, 1, 0
        %v1427 = vsel %vm1395, 1, 0
        %v1428 = vsel %vm1396, 1, 0
        %v1429 = vsel %vm1397, 1, 0
        %v1430 = vsel %vm1398, 1, 0
        %v1431 = vsel %vm1399, 1, 0
        %v1432 = vsel %vm1400, 1, 0
        %v1433 = vcvt.s32.f32 %v1401
        %v1434 = vcvt.s32.f32 %v1402
        %v1435 = vcvt.s32.f32 %v1403
        %v1436 = vcvt.s32.f32 %v1404
        %v1437 = vcvt.s32.f32 %v1405
        %v1438 = vcvt.s32.f32 %v1406
        %v1439 = vcvt.s32.f32 %v1407
        %v1440 = vcvt.s32.f32 %v1408
        %v1441 = vcvt.s32.f32 %v1409
        %v1442 = vcvt.s32.f32 %v1410
        %v1443 = vcvt.s32.f32 %v1411
        %v1444 = vcvt.s32.f32 %v1412
        %v1445 = vcvt.s32.f32 %v1413
        %v1446 = vcvt.s32.f32 %v1414
        %v1447 = vcvt.s32.f32 %v1415
        %v1448 = vcvt.s32.f32 %v1416
        %v1449 = vcvt.s32.f32 %v1417
        %v1450 = vcvt.s32.f32 %v1418
        %v1451 = vcvt.s32.f32 %v1419
        %v1452 = vcvt.s32.f32 %v1420
        %v1453 = vcvt.s32.f32 %v1421
        %v1454 = vcvt.s32.f32 %v1422
        %v1455 = vcvt.s32.f32 %v1423
        %v1456 = vcvt.s32.f32 %v1424
        %v1457 = vcvt.s32.f32 %v1425
        %v1458 = vcvt.s32.f32 %v1426
        %v1459 = vcvt.s32.f32 %v1427
        %v1460 = vcvt.s32.f32 %v1428
        %v1461 = vcvt.s32.f32 %v1429
        %v1462 = vcvt.s32.f32 %v1430
        %v1463 = vcvt.s32.f32 %v1431
        %v1464 = vcvt.s32.f32 %v1432
        %v1465 = vadd.f32 %v1433, %v1434
        %v1466 = vadd.f32 %v1465, %v1435
        %v1467 = vadd.f32 %v1466, %v1436
        %v1468 = vadd.f32 %v1467, %v1437
        %v1469 = vadd.f32 %v1468, %v1438
        %v1470 = vadd.f32 %v1469, %v1439
        %v1471 = vadd.f32 %v1470, %v1440
        %v1472 = vadd.f32 %v1471, %v1441
        %v1473 = vadd.f32 %v1472, %v1442
        %v1474 = vadd.f32 %v1473, %v1443
        %v1475 = vadd.f32 %v1474, %v1444
        %v1476 = vadd.f32 %v1475, %v1445
        %v1477 = vadd.f32 %v1476, %v1446
        %v1478 = vadd.f32 %v1477, %v1447
        %v1479 = vadd.f32 %v1478, %v1448
        %v1480 = vadd.f32 %v1479, %v1449
        %v1481 = vadd.f32 %v1480, %v1450
        %v1482 = vadd.f32 %v1481, %v1451
        %v1483 = vadd.f32 %v1482, %v1452
        %v1484 = vadd.f32 %v1483, %v1453
        %v1485 = vadd.f32 %v1484, %v1454
        %v1486 = vadd.f32 %v1485, %v1455
        %v1487 = vadd.f32 %v1486, %v1456
        %v1488 = vadd.f32 %v1487, %v1457
        %v1489 = vadd.f32 %v1488, %v1458
        %v1490 = vadd.f32 %v1489, %v1459
        %v1491 = vadd.f32 %v1490, %v1460
        %v1492 = vadd.f32 %v1491, %v1461
        %v1493 = vadd.f32 %v1492, %v1462
        %v1494 = vadd.f32 %v1493, %v1463
        %v1495 = vadd.f32 %v1494, %v1464
        %1496 = vadd.xlane.f32.xlu0 %v1495
        %v1497 = vpop.xlane.xlu0 %1496
        %v1498 = vrot.slane %v1497, 4
        %v1499 = vadd.f32 %v1497, %v1498
        %v1500 = vrot.slane %v1499, 2
        %v1501 = vadd.f32 %v1499, %v1500
        %v1502 = vrot.slane %v1501, 1
        %v1503 = vadd.f32 %v1501, %v1502
        %s1504 = vtos %v1503
        %vm1505 = vcmp.eq.s32.totalorder %v910, 3
        %v1506 = vstv %s1504
        %v1507 = vsel %vm1505, %v1506, 0.0
        %v1508 = vadd.f32 %v1368, %v1507
        %vm1509 = vcmp.eq.f32.partialorder %v917, 4.0
        %vm1510 = vcmp.eq.f32.partialorder %v918, 4.0
        %vm1511 = vcmp.eq.f32.partialorder %v919, 4.0
        %vm1512 = vcmp.eq.f32.partialorder %v920, 4.0
        %vm1513 = vcmp.eq.f32.partialorder %v921, 4.0
        %vm1514 = vcmp.eq.f32.partialorder %v922, 4.0
        %vm1515 = vcmp.eq.f32.partialorder %v923, 4.0
        %vm1516 = vcmp.eq.f32.partialorder %v924, 4.0
        %vm1517 = vcmp.eq.f32.partialorder %v925, 4.0
        %vm1518 = vcmp.eq.f32.partialorder %v926, 4.0
        %vm1519 = vcmp.eq.f32.partialorder %v927, 4.0
        %vm1520 = vcmp.eq.f32.partialorder %v928, 4.0
        %vm1521 = vcmp.eq.f32.partialorder %v929, 4.0
        %vm1522 = vcmp.eq.f32.partialorder %v930, 4.0
        %vm1523 = vcmp.eq.f32.partialorder %v931, 4.0
        %vm1524 = vcmp.eq.f32.partialorder %v932, 4.0
        %vm1525 = vcmp.eq.f32.partialorder %v933, 4.0
        %vm1526 = vcmp.eq.f32.partialorder %v934, 4.0
        %vm1527 = vcmp.eq.f32.partialorder %v935, 4.0
        %vm1528 = vcmp.eq.f32.partialorder %v936, 4.0
        %vm1529 = vcmp.eq.f32.partialorder %v937, 4.0
        %vm1530 = vcmp.eq.f32.partialorder %v938, 4.0
        %vm1531 = vcmp.eq.f32.partialorder %v939, 4.0
        %vm1532 = vcmp.eq.f32.partialorder %v940, 4.0
        %vm1533 = vcmp.eq.f32.partialorder %v941, 4.0
        %vm1534 = vcmp.eq.f32.partialorder %v942, 4.0
        %vm1535 = vcmp.eq.f32.partialorder %v943, 4.0
        %vm1536 = vcmp.eq.f32.partialorder %v944, 4.0
        %vm1537 = vcmp.eq.f32.partialorder %v945, 4.0
        %vm1538 = vcmp.eq.f32.partialorder %v946, 4.0
        %vm1539 = vcmp.eq.f32.partialorder %v947, 4.0
        %vm1540 = vcmp.eq.f32.partialorder %v948, 4.0
        %v1541 = vsel %vm1509, 1, 0
        %v1542 = vsel %vm1510, 1, 0
        %v1543 = vsel %vm1511, 1, 0
        %v1544 = vsel %vm1512, 1, 0
        %v1545 = vsel %vm1513, 1, 0
        %v1546 = vsel %vm1514, 1, 0
        %v1547 = vsel %vm1515, 1, 0
        %v1548 = vsel %vm1516, 1, 0
        %v1549 = vsel %vm1517, 1, 0
        %v1550 = vsel %vm1518, 1, 0
        %v1551 = vsel %vm1519, 1, 0
        %v1552 = vsel %vm1520, 1, 0
        %v1553 = vsel %vm1521, 1, 0
        %v1554 = vsel %vm1522, 1, 0
        %v1555 = vsel %vm1523, 1, 0
        %v1556 = vsel %vm1524, 1, 0
        %v1557 = vsel %vm1525, 1, 0
        %v1558 = vsel %vm1526, 1, 0
        %v1559 = vsel %vm1527, 1, 0
        %v1560 = vsel %vm1528, 1, 0
        %v1561 = vsel %vm1529, 1, 0
        %v1562 = vsel %vm1530, 1, 0
        %v1563 = vsel %vm1531, 1, 0
        %v1564 = vsel %vm1532, 1, 0
        %v1565 = vsel %vm1533, 1, 0
        %v1566 = vsel %vm1534, 1, 0
        %v1567 = vsel %vm1535, 1, 0
        %v1568 = vsel %vm1536, 1, 0
        %v1569 = vsel %vm1537, 1, 0
        %v1570 = vsel %vm1538, 1, 0
        %v1571 = vsel %vm1539, 1, 0
        %v1572 = vsel %vm1540, 1, 0
        %v1573 = vcvt.s32.f32 %v1541
        %v1574 = vcvt.s32.f32 %v1542
        %v1575 = vcvt.s32.f32 %v1543
        %v1576 = vcvt.s32.f32 %v1544
        %v1577 = vcvt.s32.f32 %v1545
        %v1578 = vcvt.s32.f32 %v1546
        %v1579 = vcvt.s32.f32 %v1547
        %v1580 = vcvt.s32.f32 %v1548
        %v1581 = vcvt.s32.f32 %v1549
        %v1582 = vcvt.s32.f32 %v1550
        %v1583 = vcvt.s32.f32 %v1551
        %v1584 = vcvt.s32.f32 %v1552
        %v1585 = vcvt.s32.f32 %v1553
        %v1586 = vcvt.s32.f32 %v1554
        %v1587 = vcvt.s32.f32 %v1555
        %v1588 = vcvt.s32.f32 %v1556
        %v1589 = vcvt.s32.f32 %v1557
        %v1590 = vcvt.s32.f32 %v1558
        %v1591 = vcvt.s32.f32 %v1559
        %v1592 = vcvt.s32.f32 %v1560
        %v1593 = vcvt.s32.f32 %v1561
        %v1594 = vcvt.s32.f32 %v1562
        %v1595 = vcvt.s32.f32 %v1563
        %v1596 = vcvt.s32.f32 %v1564
        %v1597 = vcvt.s32.f32 %v1565
        %v1598 = vcvt.s32.f32 %v1566
        %v1599 = vcvt.s32.f32 %v1567
        %v1600 = vcvt.s32.f32 %v1568
        %v1601 = vcvt.s32.f32 %v1569
        %v1602 = vcvt.s32.f32 %v1570
        %v1603 = vcvt.s32.f32 %v1571
        %v1604 = vcvt.s32.f32 %v1572
        %v1605 = vadd.f32 %v1573, %v1574
        %v1606 = vadd.f32 %v1605, %v1575
        %v1607 = vadd.f32 %v1606, %v1576
        %v1608 = vadd.f32 %v1607, %v1577
        %v1609 = vadd.f32 %v1608, %v1578
        %v1610 = vadd.f32 %v1609, %v1579
        %v1611 = vadd.f32 %v1610, %v1580
        %v1612 = vadd.f32 %v1611, %v1581
        %v1613 = vadd.f32 %v1612, %v1582
        %v1614 = vadd.f32 %v1613, %v1583
        %v1615 = vadd.f32 %v1614, %v1584
        %v1616 = vadd.f32 %v1615, %v1585
        %v1617 = vadd.f32 %v1616, %v1586
        %v1618 = vadd.f32 %v1617, %v1587
        %v1619 = vadd.f32 %v1618, %v1588
        %v1620 = vadd.f32 %v1619, %v1589
        %v1621 = vadd.f32 %v1620, %v1590
        %v1622 = vadd.f32 %v1621, %v1591
        %v1623 = vadd.f32 %v1622, %v1592
        %v1624 = vadd.f32 %v1623, %v1593
        %v1625 = vadd.f32 %v1624, %v1594
        %v1626 = vadd.f32 %v1625, %v1595
        %v1627 = vadd.f32 %v1626, %v1596
        %v1628 = vadd.f32 %v1627, %v1597
        %v1629 = vadd.f32 %v1628, %v1598
        %v1630 = vadd.f32 %v1629, %v1599
        %v1631 = vadd.f32 %v1630, %v1600
        %v1632 = vadd.f32 %v1631, %v1601
        %v1633 = vadd.f32 %v1632, %v1602
        %v1634 = vadd.f32 %v1633, %v1603
        %v1635 = vadd.f32 %v1634, %v1604
        %1636 = vadd.xlane.f32.xlu0 %v1635
        %v1637 = vpop.xlane.xlu0 %1636
        %v1638 = vrot.slane %v1637, 4
        %v1639 = vadd.f32 %v1637, %v1638
        %v1640 = vrot.slane %v1639, 2
        %v1641 = vadd.f32 %v1639, %v1640
        %v1642 = vrot.slane %v1641, 1
        %v1643 = vadd.f32 %v1641, %v1642
        %s1644 = vtos %v1643
        %vm1645 = vcmp.eq.s32.totalorder %v910, 4
        %v1646 = vstv %s1644
        %v1647 = vsel %vm1645, %v1646, 0.0
        %v1648 = vadd.f32 %v1508, %v1647
        %vm1649 = vcmp.eq.f32.partialorder %v917, 5.0
        %vm1650 = vcmp.eq.f32.partialorder %v918, 5.0
        %vm1651 = vcmp.eq.f32.partialorder %v919, 5.0
        %vm1652 = vcmp.eq.f32.partialorder %v920, 5.0
        %vm1653 = vcmp.eq.f32.partialorder %v921, 5.0
        %vm1654 = vcmp.eq.f32.partialorder %v922, 5.0
        %vm1655 = vcmp.eq.f32.partialorder %v923, 5.0
        %vm1656 = vcmp.eq.f32.partialorder %v924, 5.0
        %vm1657 = vcmp.eq.f32.partialorder %v925, 5.0
        %vm1658 = vcmp.eq.f32.partialorder %v926, 5.0
        %vm1659 = vcmp.eq.f32.partialorder %v927, 5.0
        %vm1660 = vcmp.eq.f32.partialorder %v928, 5.0
        %vm1661 = vcmp.eq.f32.partialorder %v929, 5.0
        %vm1662 = vcmp.eq.f32.partialorder %v930, 5.0
        %vm1663 = vcmp.eq.f32.partialorder %v931, 5.0
        %vm1664 = vcmp.eq.f32.partialorder %v932, 5.0
        %vm1665 = vcmp.eq.f32.partialorder %v933, 5.0
        %vm1666 = vcmp.eq.f32.partialorder %v934, 5.0
        %vm1667 = vcmp.eq.f32.partialorder %v935, 5.0
        %vm1668 = vcmp.eq.f32.partialorder %v936, 5.0
        %vm1669 = vcmp.eq.f32.partialorder %v937, 5.0
        %vm1670 = vcmp.eq.f32.partialorder %v938, 5.0
        %vm1671 = vcmp.eq.f32.partialorder %v939, 5.0
        %vm1672 = vcmp.eq.f32.partialorder %v940, 5.0
        %vm1673 = vcmp.eq.f32.partialorder %v941, 5.0
        %vm1674 = vcmp.eq.f32.partialorder %v942, 5.0
        %vm1675 = vcmp.eq.f32.partialorder %v943, 5.0
        %vm1676 = vcmp.eq.f32.partialorder %v944, 5.0
        %vm1677 = vcmp.eq.f32.partialorder %v945, 5.0
        %vm1678 = vcmp.eq.f32.partialorder %v946, 5.0
        %vm1679 = vcmp.eq.f32.partialorder %v947, 5.0
        %vm1680 = vcmp.eq.f32.partialorder %v948, 5.0
        %v1681 = vsel %vm1649, 1, 0
        %v1682 = vsel %vm1650, 1, 0
        %v1683 = vsel %vm1651, 1, 0
        %v1684 = vsel %vm1652, 1, 0
        %v1685 = vsel %vm1653, 1, 0
        %v1686 = vsel %vm1654, 1, 0
        %v1687 = vsel %vm1655, 1, 0
        %v1688 = vsel %vm1656, 1, 0
        %v1689 = vsel %vm1657, 1, 0
        %v1690 = vsel %vm1658, 1, 0
        %v1691 = vsel %vm1659, 1, 0
        %v1692 = vsel %vm1660, 1, 0
        %v1693 = vsel %vm1661, 1, 0
        %v1694 = vsel %vm1662, 1, 0
        %v1695 = vsel %vm1663, 1, 0
        %v1696 = vsel %vm1664, 1, 0
        %v1697 = vsel %vm1665, 1, 0
        %v1698 = vsel %vm1666, 1, 0
        %v1699 = vsel %vm1667, 1, 0
        %v1700 = vsel %vm1668, 1, 0
        %v1701 = vsel %vm1669, 1, 0
        %v1702 = vsel %vm1670, 1, 0
        %v1703 = vsel %vm1671, 1, 0
        %v1704 = vsel %vm1672, 1, 0
        %v1705 = vsel %vm1673, 1, 0
        %v1706 = vsel %vm1674, 1, 0
        %v1707 = vsel %vm1675, 1, 0
        %v1708 = vsel %vm1676, 1, 0
        %v1709 = vsel %vm1677, 1, 0
        %v1710 = vsel %vm1678, 1, 0
        %v1711 = vsel %vm1679, 1, 0
        %v1712 = vsel %vm1680, 1, 0
        %v1713 = vcvt.s32.f32 %v1681
        %v1714 = vcvt.s32.f32 %v1682
        %v1715 = vcvt.s32.f32 %v1683
        %v1716 = vcvt.s32.f32 %v1684
        %v1717 = vcvt.s32.f32 %v1685
        %v1718 = vcvt.s32.f32 %v1686
        %v1719 = vcvt.s32.f32 %v1687
        %v1720 = vcvt.s32.f32 %v1688
        %v1721 = vcvt.s32.f32 %v1689
        %v1722 = vcvt.s32.f32 %v1690
        %v1723 = vcvt.s32.f32 %v1691
        %v1724 = vcvt.s32.f32 %v1692
        %v1725 = vcvt.s32.f32 %v1693
        %v1726 = vcvt.s32.f32 %v1694
        %v1727 = vcvt.s32.f32 %v1695
        %v1728 = vcvt.s32.f32 %v1696
        %v1729 = vcvt.s32.f32 %v1697
        %v1730 = vcvt.s32.f32 %v1698
        %v1731 = vcvt.s32.f32 %v1699
        %v1732 = vcvt.s32.f32 %v1700
        %v1733 = vcvt.s32.f32 %v1701
        %v1734 = vcvt.s32.f32 %v1702
        %v1735 = vcvt.s32.f32 %v1703
        %v1736 = vcvt.s32.f32 %v1704
        %v1737 = vcvt.s32.f32 %v1705
        %v1738 = vcvt.s32.f32 %v1706
        %v1739 = vcvt.s32.f32 %v1707
        %v1740 = vcvt.s32.f32 %v1708
        %v1741 = vcvt.s32.f32 %v1709
        %v1742 = vcvt.s32.f32 %v1710
        %v1743 = vcvt.s32.f32 %v1711
        %v1744 = vcvt.s32.f32 %v1712
        %v1745 = vadd.f32 %v1713, %v1714
        %v1746 = vadd.f32 %v1745, %v1715
        %v1747 = vadd.f32 %v1746, %v1716
        %v1748 = vadd.f32 %v1747, %v1717
        %v1749 = vadd.f32 %v1748, %v1718
        %v1750 = vadd.f32 %v1749, %v1719
        %v1751 = vadd.f32 %v1750, %v1720
        %v1752 = vadd.f32 %v1751, %v1721
        %v1753 = vadd.f32 %v1752, %v1722
        %v1754 = vadd.f32 %v1753, %v1723
        %v1755 = vadd.f32 %v1754, %v1724
        %v1756 = vadd.f32 %v1755, %v1725
        %v1757 = vadd.f32 %v1756, %v1726
        %v1758 = vadd.f32 %v1757, %v1727
        %v1759 = vadd.f32 %v1758, %v1728
        %v1760 = vadd.f32 %v1759, %v1729
        %v1761 = vadd.f32 %v1760, %v1730
        %v1762 = vadd.f32 %v1761, %v1731
        %v1763 = vadd.f32 %v1762, %v1732
        %v1764 = vadd.f32 %v1763, %v1733
        %v1765 = vadd.f32 %v1764, %v1734
        %v1766 = vadd.f32 %v1765, %v1735
        %v1767 = vadd.f32 %v1766, %v1736
        %v1768 = vadd.f32 %v1767, %v1737
        %v1769 = vadd.f32 %v1768, %v1738
        %v1770 = vadd.f32 %v1769, %v1739
        %v1771 = vadd.f32 %v1770, %v1740
        %v1772 = vadd.f32 %v1771, %v1741
        %v1773 = vadd.f32 %v1772, %v1742
        %v1774 = vadd.f32 %v1773, %v1743
        %v1775 = vadd.f32 %v1774, %v1744
        %1776 = vadd.xlane.f32.xlu0 %v1775
        %v1777 = vpop.xlane.xlu0 %1776
        %v1778 = vrot.slane %v1777, 4
        %v1779 = vadd.f32 %v1777, %v1778
        %v1780 = vrot.slane %v1779, 2
        %v1781 = vadd.f32 %v1779, %v1780
        %v1782 = vrot.slane %v1781, 1
        %v1783 = vadd.f32 %v1781, %v1782
        %s1784 = vtos %v1783
        %vm1785 = vcmp.eq.s32.totalorder %v910, 5
        %v1786 = vstv %s1784
        %v1787 = vsel %vm1785, %v1786, 0.0
        %v1788 = vadd.f32 %v1648, %v1787
        %vm1789 = vcmp.eq.f32.partialorder %v917, 6.0
        %vm1790 = vcmp.eq.f32.partialorder %v918, 6.0
        %vm1791 = vcmp.eq.f32.partialorder %v919, 6.0
        %vm1792 = vcmp.eq.f32.partialorder %v920, 6.0
        %vm1793 = vcmp.eq.f32.partialorder %v921, 6.0
        %vm1794 = vcmp.eq.f32.partialorder %v922, 6.0
        %vm1795 = vcmp.eq.f32.partialorder %v923, 6.0
        %vm1796 = vcmp.eq.f32.partialorder %v924, 6.0
        %vm1797 = vcmp.eq.f32.partialorder %v925, 6.0
        %vm1798 = vcmp.eq.f32.partialorder %v926, 6.0
        %vm1799 = vcmp.eq.f32.partialorder %v927, 6.0
        %vm1800 = vcmp.eq.f32.partialorder %v928, 6.0
        %vm1801 = vcmp.eq.f32.partialorder %v929, 6.0
        %vm1802 = vcmp.eq.f32.partialorder %v930, 6.0
        %vm1803 = vcmp.eq.f32.partialorder %v931, 6.0
        %vm1804 = vcmp.eq.f32.partialorder %v932, 6.0
        %vm1805 = vcmp.eq.f32.partialorder %v933, 6.0
        %vm1806 = vcmp.eq.f32.partialorder %v934, 6.0
        %vm1807 = vcmp.eq.f32.partialorder %v935, 6.0
        %vm1808 = vcmp.eq.f32.partialorder %v936, 6.0
        %vm1809 = vcmp.eq.f32.partialorder %v937, 6.0
        %vm1810 = vcmp.eq.f32.partialorder %v938, 6.0
        %vm1811 = vcmp.eq.f32.partialorder %v939, 6.0
        %vm1812 = vcmp.eq.f32.partialorder %v940, 6.0
        %vm1813 = vcmp.eq.f32.partialorder %v941, 6.0
        %vm1814 = vcmp.eq.f32.partialorder %v942, 6.0
        %vm1815 = vcmp.eq.f32.partialorder %v943, 6.0
        %vm1816 = vcmp.eq.f32.partialorder %v944, 6.0
        %vm1817 = vcmp.eq.f32.partialorder %v945, 6.0
        %vm1818 = vcmp.eq.f32.partialorder %v946, 6.0
        %vm1819 = vcmp.eq.f32.partialorder %v947, 6.0
        %vm1820 = vcmp.eq.f32.partialorder %v948, 6.0
        %v1821 = vsel %vm1789, 1, 0
        %v1822 = vsel %vm1790, 1, 0
        %v1823 = vsel %vm1791, 1, 0
        %v1824 = vsel %vm1792, 1, 0
        %v1825 = vsel %vm1793, 1, 0
        %v1826 = vsel %vm1794, 1, 0
        %v1827 = vsel %vm1795, 1, 0
        %v1828 = vsel %vm1796, 1, 0
        %v1829 = vsel %vm1797, 1, 0
        %v1830 = vsel %vm1798, 1, 0
        %v1831 = vsel %vm1799, 1, 0
        %v1832 = vsel %vm1800, 1, 0
        %v1833 = vsel %vm1801, 1, 0
        %v1834 = vsel %vm1802, 1, 0
        %v1835 = vsel %vm1803, 1, 0
        %v1836 = vsel %vm1804, 1, 0
        %v1837 = vsel %vm1805, 1, 0
        %v1838 = vsel %vm1806, 1, 0
        %v1839 = vsel %vm1807, 1, 0
        %v1840 = vsel %vm1808, 1, 0
        %v1841 = vsel %vm1809, 1, 0
        %v1842 = vsel %vm1810, 1, 0
        %v1843 = vsel %vm1811, 1, 0
        %v1844 = vsel %vm1812, 1, 0
        %v1845 = vsel %vm1813, 1, 0
        %v1846 = vsel %vm1814, 1, 0
        %v1847 = vsel %vm1815, 1, 0
        %v1848 = vsel %vm1816, 1, 0
        %v1849 = vsel %vm1817, 1, 0
        %v1850 = vsel %vm1818, 1, 0
        %v1851 = vsel %vm1819, 1, 0
        %v1852 = vsel %vm1820, 1, 0
        %v1853 = vcvt.s32.f32 %v1821
        %v1854 = vcvt.s32.f32 %v1822
        %v1855 = vcvt.s32.f32 %v1823
        %v1856 = vcvt.s32.f32 %v1824
        %v1857 = vcvt.s32.f32 %v1825
        %v1858 = vcvt.s32.f32 %v1826
        %v1859 = vcvt.s32.f32 %v1827
        %v1860 = vcvt.s32.f32 %v1828
        %v1861 = vcvt.s32.f32 %v1829
        %v1862 = vcvt.s32.f32 %v1830
        %v1863 = vcvt.s32.f32 %v1831
        %v1864 = vcvt.s32.f32 %v1832
        %v1865 = vcvt.s32.f32 %v1833
        %v1866 = vcvt.s32.f32 %v1834
        %v1867 = vcvt.s32.f32 %v1835
        %v1868 = vcvt.s32.f32 %v1836
        %v1869 = vcvt.s32.f32 %v1837
        %v1870 = vcvt.s32.f32 %v1838
        %v1871 = vcvt.s32.f32 %v1839
        %v1872 = vcvt.s32.f32 %v1840
        %v1873 = vcvt.s32.f32 %v1841
        %v1874 = vcvt.s32.f32 %v1842
        %v1875 = vcvt.s32.f32 %v1843
        %v1876 = vcvt.s32.f32 %v1844
        %v1877 = vcvt.s32.f32 %v1845
        %v1878 = vcvt.s32.f32 %v1846
        %v1879 = vcvt.s32.f32 %v1847
        %v1880 = vcvt.s32.f32 %v1848
        %v1881 = vcvt.s32.f32 %v1849
        %v1882 = vcvt.s32.f32 %v1850
        %v1883 = vcvt.s32.f32 %v1851
        %v1884 = vcvt.s32.f32 %v1852
        %v1885 = vadd.f32 %v1853, %v1854
        %v1886 = vadd.f32 %v1885, %v1855
        %v1887 = vadd.f32 %v1886, %v1856
        %v1888 = vadd.f32 %v1887, %v1857
        %v1889 = vadd.f32 %v1888, %v1858
        %v1890 = vadd.f32 %v1889, %v1859
        %v1891 = vadd.f32 %v1890, %v1860
        %v1892 = vadd.f32 %v1891, %v1861
        %v1893 = vadd.f32 %v1892, %v1862
        %v1894 = vadd.f32 %v1893, %v1863
        %v1895 = vadd.f32 %v1894, %v1864
        %v1896 = vadd.f32 %v1895, %v1865
        %v1897 = vadd.f32 %v1896, %v1866
        %v1898 = vadd.f32 %v1897, %v1867
        %v1899 = vadd.f32 %v1898, %v1868
        %v1900 = vadd.f32 %v1899, %v1869
        %v1901 = vadd.f32 %v1900, %v1870
        %v1902 = vadd.f32 %v1901, %v1871
        %v1903 = vadd.f32 %v1902, %v1872
        %v1904 = vadd.f32 %v1903, %v1873
        %v1905 = vadd.f32 %v1904, %v1874
        %v1906 = vadd.f32 %v1905, %v1875
        %v1907 = vadd.f32 %v1906, %v1876
        %v1908 = vadd.f32 %v1907, %v1877
        %v1909 = vadd.f32 %v1908, %v1878
        %v1910 = vadd.f32 %v1909, %v1879
        %v1911 = vadd.f32 %v1910, %v1880
        %v1912 = vadd.f32 %v1911, %v1881
        %v1913 = vadd.f32 %v1912, %v1882
        %v1914 = vadd.f32 %v1913, %v1883
        %v1915 = vadd.f32 %v1914, %v1884
        %1916 = vadd.xlane.f32.xlu0 %v1915
        %v1917 = vpop.xlane.xlu0 %1916
        %v1918 = vrot.slane %v1917, 4
        %v1919 = vadd.f32 %v1917, %v1918
        %v1920 = vrot.slane %v1919, 2
        %v1921 = vadd.f32 %v1919, %v1920
        %v1922 = vrot.slane %v1921, 1
        %v1923 = vadd.f32 %v1921, %v1922
        %s1924 = vtos %v1923
        %vm1925 = vcmp.eq.s32.totalorder %v910, 6
        %v1926 = vstv %s1924
        %v1927 = vsel %vm1925, %v1926, 0.0
        %v1928 = vadd.f32 %v1788, %v1927
        %vm1929 = vcmp.eq.f32.partialorder %v917, 7.0
        %vm1930 = vcmp.eq.f32.partialorder %v918, 7.0
        %vm1931 = vcmp.eq.f32.partialorder %v919, 7.0
        %vm1932 = vcmp.eq.f32.partialorder %v920, 7.0
        %vm1933 = vcmp.eq.f32.partialorder %v921, 7.0
        %vm1934 = vcmp.eq.f32.partialorder %v922, 7.0
        %vm1935 = vcmp.eq.f32.partialorder %v923, 7.0
        %vm1936 = vcmp.eq.f32.partialorder %v924, 7.0
        %vm1937 = vcmp.eq.f32.partialorder %v925, 7.0
        %vm1938 = vcmp.eq.f32.partialorder %v926, 7.0
        %vm1939 = vcmp.eq.f32.partialorder %v927, 7.0
        %vm1940 = vcmp.eq.f32.partialorder %v928, 7.0
        %vm1941 = vcmp.eq.f32.partialorder %v929, 7.0
        %vm1942 = vcmp.eq.f32.partialorder %v930, 7.0
        %vm1943 = vcmp.eq.f32.partialorder %v931, 7.0
        %vm1944 = vcmp.eq.f32.partialorder %v932, 7.0
        %vm1945 = vcmp.eq.f32.partialorder %v933, 7.0
        %vm1946 = vcmp.eq.f32.partialorder %v934, 7.0
        %vm1947 = vcmp.eq.f32.partialorder %v935, 7.0
        %vm1948 = vcmp.eq.f32.partialorder %v936, 7.0
        %vm1949 = vcmp.eq.f32.partialorder %v937, 7.0
        %vm1950 = vcmp.eq.f32.partialorder %v938, 7.0
        %vm1951 = vcmp.eq.f32.partialorder %v939, 7.0
        %vm1952 = vcmp.eq.f32.partialorder %v940, 7.0
        %vm1953 = vcmp.eq.f32.partialorder %v941, 7.0
        %vm1954 = vcmp.eq.f32.partialorder %v942, 7.0
        %vm1955 = vcmp.eq.f32.partialorder %v943, 7.0
        %vm1956 = vcmp.eq.f32.partialorder %v944, 7.0
        %vm1957 = vcmp.eq.f32.partialorder %v945, 7.0
        %vm1958 = vcmp.eq.f32.partialorder %v946, 7.0
        %vm1959 = vcmp.eq.f32.partialorder %v947, 7.0
        %vm1960 = vcmp.eq.f32.partialorder %v948, 7.0
        %v1961 = vsel %vm1929, 1, 0
        %v1962 = vsel %vm1930, 1, 0
        %v1963 = vsel %vm1931, 1, 0
        %v1964 = vsel %vm1932, 1, 0
        %v1965 = vsel %vm1933, 1, 0
        %v1966 = vsel %vm1934, 1, 0
        %v1967 = vsel %vm1935, 1, 0
        %v1968 = vsel %vm1936, 1, 0
        %v1969 = vsel %vm1937, 1, 0
        %v1970 = vsel %vm1938, 1, 0
        %v1971 = vsel %vm1939, 1, 0
        %v1972 = vsel %vm1940, 1, 0
        %v1973 = vsel %vm1941, 1, 0
        %v1974 = vsel %vm1942, 1, 0
        %v1975 = vsel %vm1943, 1, 0
        %v1976 = vsel %vm1944, 1, 0
        %v1977 = vsel %vm1945, 1, 0
        %v1978 = vsel %vm1946, 1, 0
        %v1979 = vsel %vm1947, 1, 0
        %v1980 = vsel %vm1948, 1, 0
        %v1981 = vsel %vm1949, 1, 0
        %v1982 = vsel %vm1950, 1, 0
        %v1983 = vsel %vm1951, 1, 0
        %v1984 = vsel %vm1952, 1, 0
        %v1985 = vsel %vm1953, 1, 0
        %v1986 = vsel %vm1954, 1, 0
        %v1987 = vsel %vm1955, 1, 0
        %v1988 = vsel %vm1956, 1, 0
        %v1989 = vsel %vm1957, 1, 0
        %v1990 = vsel %vm1958, 1, 0
        %v1991 = vsel %vm1959, 1, 0
        %v1992 = vsel %vm1960, 1, 0
        %v1993 = vcvt.s32.f32 %v1961
        %v1994 = vcvt.s32.f32 %v1962
        %v1995 = vcvt.s32.f32 %v1963
        %v1996 = vcvt.s32.f32 %v1964
        %v1997 = vcvt.s32.f32 %v1965
        %v1998 = vcvt.s32.f32 %v1966
        %v1999 = vcvt.s32.f32 %v1967
        %v2000 = vcvt.s32.f32 %v1968
        %v2001 = vcvt.s32.f32 %v1969
        %v2002 = vcvt.s32.f32 %v1970
        %v2003 = vcvt.s32.f32 %v1971
        %v2004 = vcvt.s32.f32 %v1972
        %v2005 = vcvt.s32.f32 %v1973
        %v2006 = vcvt.s32.f32 %v1974
        %v2007 = vcvt.s32.f32 %v1975
        %v2008 = vcvt.s32.f32 %v1976
        %v2009 = vcvt.s32.f32 %v1977
        %v2010 = vcvt.s32.f32 %v1978
        %v2011 = vcvt.s32.f32 %v1979
        %v2012 = vcvt.s32.f32 %v1980
        %v2013 = vcvt.s32.f32 %v1981
        %v2014 = vcvt.s32.f32 %v1982
        %v2015 = vcvt.s32.f32 %v1983
        %v2016 = vcvt.s32.f32 %v1984
        %v2017 = vcvt.s32.f32 %v1985
        %v2018 = vcvt.s32.f32 %v1986
        %v2019 = vcvt.s32.f32 %v1987
        %v2020 = vcvt.s32.f32 %v1988
        %v2021 = vcvt.s32.f32 %v1989
        %v2022 = vcvt.s32.f32 %v1990
        %v2023 = vcvt.s32.f32 %v1991
        %v2024 = vcvt.s32.f32 %v1992
        %v2025 = vadd.f32 %v1993, %v1994
        %v2026 = vadd.f32 %v2025, %v1995
        %v2027 = vadd.f32 %v2026, %v1996
        %v2028 = vadd.f32 %v2027, %v1997
        %v2029 = vadd.f32 %v2028, %v1998
        %v2030 = vadd.f32 %v2029, %v1999
        %v2031 = vadd.f32 %v2030, %v2000
        %v2032 = vadd.f32 %v2031, %v2001
        %v2033 = vadd.f32 %v2032, %v2002
        %v2034 = vadd.f32 %v2033, %v2003
        %v2035 = vadd.f32 %v2034, %v2004
        %v2036 = vadd.f32 %v2035, %v2005
        %v2037 = vadd.f32 %v2036, %v2006
        %v2038 = vadd.f32 %v2037, %v2007
        %v2039 = vadd.f32 %v2038, %v2008
        %v2040 = vadd.f32 %v2039, %v2009
        %v2041 = vadd.f32 %v2040, %v2010
        %v2042 = vadd.f32 %v2041, %v2011
        %v2043 = vadd.f32 %v2042, %v2012
        %v2044 = vadd.f32 %v2043, %v2013
        %v2045 = vadd.f32 %v2044, %v2014
        %v2046 = vadd.f32 %v2045, %v2015
        %v2047 = vadd.f32 %v2046, %v2016
        %v2048 = vadd.f32 %v2047, %v2017
        %v2049 = vadd.f32 %v2048, %v2018
        %v2050 = vadd.f32 %v2049, %v2019
        %v2051 = vadd.f32 %v2050, %v2020
        %v2052 = vadd.f32 %v2051, %v2021
        %v2053 = vadd.f32 %v2052, %v2022
        %v2054 = vadd.f32 %v2053, %v2023
        %v2055 = vadd.f32 %v2054, %v2024
        %2056 = vadd.xlane.f32.xlu0 %v2055
        %v2057 = vpop.xlane.xlu0 %2056
        %v2058 = vrot.slane %v2057, 4
        %v2059 = vadd.f32 %v2057, %v2058
        %v2060 = vrot.slane %v2059, 2
        %v2061 = vadd.f32 %v2059, %v2060
        %v2062 = vrot.slane %v2061, 1
        %v2063 = vadd.f32 %v2061, %v2062
        %s2064 = vtos %v2063
        %vm2065 = vcmp.eq.s32.totalorder %v910, 7
        %v2066 = vstv %s2064
        %v2067 = vsel %vm2065, %v2066, 0.0
        %v2068 = vadd.f32 %v1928, %v2067
        %vm2069 = vcmp.eq.f32.partialorder %v917, 8.0
        %vm2070 = vcmp.eq.f32.partialorder %v918, 8.0
        %vm2071 = vcmp.eq.f32.partialorder %v919, 8.0
        %vm2072 = vcmp.eq.f32.partialorder %v920, 8.0
        %vm2073 = vcmp.eq.f32.partialorder %v921, 8.0
        %vm2074 = vcmp.eq.f32.partialorder %v922, 8.0
        %vm2075 = vcmp.eq.f32.partialorder %v923, 8.0
        %vm2076 = vcmp.eq.f32.partialorder %v924, 8.0
        %vm2077 = vcmp.eq.f32.partialorder %v925, 8.0
        %vm2078 = vcmp.eq.f32.partialorder %v926, 8.0
        %vm2079 = vcmp.eq.f32.partialorder %v927, 8.0
        %vm2080 = vcmp.eq.f32.partialorder %v928, 8.0
        %vm2081 = vcmp.eq.f32.partialorder %v929, 8.0
        %vm2082 = vcmp.eq.f32.partialorder %v930, 8.0
        %vm2083 = vcmp.eq.f32.partialorder %v931, 8.0
        %vm2084 = vcmp.eq.f32.partialorder %v932, 8.0
        %vm2085 = vcmp.eq.f32.partialorder %v933, 8.0
        %vm2086 = vcmp.eq.f32.partialorder %v934, 8.0
        %vm2087 = vcmp.eq.f32.partialorder %v935, 8.0
        %vm2088 = vcmp.eq.f32.partialorder %v936, 8.0
        %vm2089 = vcmp.eq.f32.partialorder %v937, 8.0
        %vm2090 = vcmp.eq.f32.partialorder %v938, 8.0
        %vm2091 = vcmp.eq.f32.partialorder %v939, 8.0
        %vm2092 = vcmp.eq.f32.partialorder %v940, 8.0
        %vm2093 = vcmp.eq.f32.partialorder %v941, 8.0
        %vm2094 = vcmp.eq.f32.partialorder %v942, 8.0
        %vm2095 = vcmp.eq.f32.partialorder %v943, 8.0
        %vm2096 = vcmp.eq.f32.partialorder %v944, 8.0
        %vm2097 = vcmp.eq.f32.partialorder %v945, 8.0
        %vm2098 = vcmp.eq.f32.partialorder %v946, 8.0
        %vm2099 = vcmp.eq.f32.partialorder %v947, 8.0
        %vm2100 = vcmp.eq.f32.partialorder %v948, 8.0
        %v2101 = vsel %vm2069, 1, 0
        %v2102 = vsel %vm2070, 1, 0
        %v2103 = vsel %vm2071, 1, 0
        %v2104 = vsel %vm2072, 1, 0
        %v2105 = vsel %vm2073, 1, 0
        %v2106 = vsel %vm2074, 1, 0
        %v2107 = vsel %vm2075, 1, 0
        %v2108 = vsel %vm2076, 1, 0
        %v2109 = vsel %vm2077, 1, 0
        %v2110 = vsel %vm2078, 1, 0
        %v2111 = vsel %vm2079, 1, 0
        %v2112 = vsel %vm2080, 1, 0
        %v2113 = vsel %vm2081, 1, 0
        %v2114 = vsel %vm2082, 1, 0
        %v2115 = vsel %vm2083, 1, 0
        %v2116 = vsel %vm2084, 1, 0
        %v2117 = vsel %vm2085, 1, 0
        %v2118 = vsel %vm2086, 1, 0
        %v2119 = vsel %vm2087, 1, 0
        %v2120 = vsel %vm2088, 1, 0
        %v2121 = vsel %vm2089, 1, 0
        %v2122 = vsel %vm2090, 1, 0
        %v2123 = vsel %vm2091, 1, 0
        %v2124 = vsel %vm2092, 1, 0
        %v2125 = vsel %vm2093, 1, 0
        %v2126 = vsel %vm2094, 1, 0
        %v2127 = vsel %vm2095, 1, 0
        %v2128 = vsel %vm2096, 1, 0
        %v2129 = vsel %vm2097, 1, 0
        %v2130 = vsel %vm2098, 1, 0
        %v2131 = vsel %vm2099, 1, 0
        %v2132 = vsel %vm2100, 1, 0
        %v2133 = vcvt.s32.f32 %v2101
        %v2134 = vcvt.s32.f32 %v2102
        %v2135 = vcvt.s32.f32 %v2103
        %v2136 = vcvt.s32.f32 %v2104
        %v2137 = vcvt.s32.f32 %v2105
        %v2138 = vcvt.s32.f32 %v2106
        %v2139 = vcvt.s32.f32 %v2107
        %v2140 = vcvt.s32.f32 %v2108
        %v2141 = vcvt.s32.f32 %v2109
        %v2142 = vcvt.s32.f32 %v2110
        %v2143 = vcvt.s32.f32 %v2111
        %v2144 = vcvt.s32.f32 %v2112
        %v2145 = vcvt.s32.f32 %v2113
        %v2146 = vcvt.s32.f32 %v2114
        %v2147 = vcvt.s32.f32 %v2115
        %v2148 = vcvt.s32.f32 %v2116
        %v2149 = vcvt.s32.f32 %v2117
        %v2150 = vcvt.s32.f32 %v2118
        %v2151 = vcvt.s32.f32 %v2119
        %v2152 = vcvt.s32.f32 %v2120
        %v2153 = vcvt.s32.f32 %v2121
        %v2154 = vcvt.s32.f32 %v2122
        %v2155 = vcvt.s32.f32 %v2123
        %v2156 = vcvt.s32.f32 %v2124
        %v2157 = vcvt.s32.f32 %v2125
        %v2158 = vcvt.s32.f32 %v2126
        %v2159 = vcvt.s32.f32 %v2127
        %v2160 = vcvt.s32.f32 %v2128
        %v2161 = vcvt.s32.f32 %v2129
        %v2162 = vcvt.s32.f32 %v2130
        %v2163 = vcvt.s32.f32 %v2131
        %v2164 = vcvt.s32.f32 %v2132
        %v2165 = vadd.f32 %v2133, %v2134
        %v2166 = vadd.f32 %v2165, %v2135
        %v2167 = vadd.f32 %v2166, %v2136
        %v2168 = vadd.f32 %v2167, %v2137
        %v2169 = vadd.f32 %v2168, %v2138
        %v2170 = vadd.f32 %v2169, %v2139
        %v2171 = vadd.f32 %v2170, %v2140
        %v2172 = vadd.f32 %v2171, %v2141
        %v2173 = vadd.f32 %v2172, %v2142
        %v2174 = vadd.f32 %v2173, %v2143
        %v2175 = vadd.f32 %v2174, %v2144
        %v2176 = vadd.f32 %v2175, %v2145
        %v2177 = vadd.f32 %v2176, %v2146
        %v2178 = vadd.f32 %v2177, %v2147
        %v2179 = vadd.f32 %v2178, %v2148
        %v2180 = vadd.f32 %v2179, %v2149
        %v2181 = vadd.f32 %v2180, %v2150
        %v2182 = vadd.f32 %v2181, %v2151
        %v2183 = vadd.f32 %v2182, %v2152
        %v2184 = vadd.f32 %v2183, %v2153
        %v2185 = vadd.f32 %v2184, %v2154
        %v2186 = vadd.f32 %v2185, %v2155
        %v2187 = vadd.f32 %v2186, %v2156
        %v2188 = vadd.f32 %v2187, %v2157
        %v2189 = vadd.f32 %v2188, %v2158
        %v2190 = vadd.f32 %v2189, %v2159
        %v2191 = vadd.f32 %v2190, %v2160
        %v2192 = vadd.f32 %v2191, %v2161
        %v2193 = vadd.f32 %v2192, %v2162
        %v2194 = vadd.f32 %v2193, %v2163
        %v2195 = vadd.f32 %v2194, %v2164
        %2196 = vadd.xlane.f32.xlu0 %v2195
        %v2197 = vpop.xlane.xlu0 %2196
        %v2198 = vrot.slane %v2197, 4
        %v2199 = vadd.f32 %v2197, %v2198
        %v2200 = vrot.slane %v2199, 2
        %v2201 = vadd.f32 %v2199, %v2200
        %v2202 = vrot.slane %v2201, 1
        %v2203 = vadd.f32 %v2201, %v2202
        %s2204 = vtos %v2203
        %vm2205 = vcmp.eq.s32.totalorder %v910, 8
        %v2206 = vstv %s2204
        %v2207 = vsel %vm2205, %v2206, 0.0
        %v2208 = vadd.f32 %v2068, %v2207
        %vm2209 = vcmp.eq.f32.partialorder %v917, 9.0
        %vm2210 = vcmp.eq.f32.partialorder %v918, 9.0
        %vm2211 = vcmp.eq.f32.partialorder %v919, 9.0
        %vm2212 = vcmp.eq.f32.partialorder %v920, 9.0
        %vm2213 = vcmp.eq.f32.partialorder %v921, 9.0
        %vm2214 = vcmp.eq.f32.partialorder %v922, 9.0
        %vm2215 = vcmp.eq.f32.partialorder %v923, 9.0
        %vm2216 = vcmp.eq.f32.partialorder %v924, 9.0
        %vm2217 = vcmp.eq.f32.partialorder %v925, 9.0
        %vm2218 = vcmp.eq.f32.partialorder %v926, 9.0
        %vm2219 = vcmp.eq.f32.partialorder %v927, 9.0
        %vm2220 = vcmp.eq.f32.partialorder %v928, 9.0
        %vm2221 = vcmp.eq.f32.partialorder %v929, 9.0
        %vm2222 = vcmp.eq.f32.partialorder %v930, 9.0
        %vm2223 = vcmp.eq.f32.partialorder %v931, 9.0
        %vm2224 = vcmp.eq.f32.partialorder %v932, 9.0
        %vm2225 = vcmp.eq.f32.partialorder %v933, 9.0
        %vm2226 = vcmp.eq.f32.partialorder %v934, 9.0
        %vm2227 = vcmp.eq.f32.partialorder %v935, 9.0
        %vm2228 = vcmp.eq.f32.partialorder %v936, 9.0
        %vm2229 = vcmp.eq.f32.partialorder %v937, 9.0
        %vm2230 = vcmp.eq.f32.partialorder %v938, 9.0
        %vm2231 = vcmp.eq.f32.partialorder %v939, 9.0
        %vm2232 = vcmp.eq.f32.partialorder %v940, 9.0
        %vm2233 = vcmp.eq.f32.partialorder %v941, 9.0
        %vm2234 = vcmp.eq.f32.partialorder %v942, 9.0
        %vm2235 = vcmp.eq.f32.partialorder %v943, 9.0
        %vm2236 = vcmp.eq.f32.partialorder %v944, 9.0
        %vm2237 = vcmp.eq.f32.partialorder %v945, 9.0
        %vm2238 = vcmp.eq.f32.partialorder %v946, 9.0
        %vm2239 = vcmp.eq.f32.partialorder %v947, 9.0
        %vm2240 = vcmp.eq.f32.partialorder %v948, 9.0
        %v2241 = vsel %vm2209, 1, 0
        %v2242 = vsel %vm2210, 1, 0
        %v2243 = vsel %vm2211, 1, 0
        %v2244 = vsel %vm2212, 1, 0
        %v2245 = vsel %vm2213, 1, 0
        %v2246 = vsel %vm2214, 1, 0
        %v2247 = vsel %vm2215, 1, 0
        %v2248 = vsel %vm2216, 1, 0
        %v2249 = vsel %vm2217, 1, 0
        %v2250 = vsel %vm2218, 1, 0
        %v2251 = vsel %vm2219, 1, 0
        %v2252 = vsel %vm2220, 1, 0
        %v2253 = vsel %vm2221, 1, 0
        %v2254 = vsel %vm2222, 1, 0
        %v2255 = vsel %vm2223, 1, 0
        %v2256 = vsel %vm2224, 1, 0
        %v2257 = vsel %vm2225, 1, 0
        %v2258 = vsel %vm2226, 1, 0
        %v2259 = vsel %vm2227, 1, 0
        %v2260 = vsel %vm2228, 1, 0
        %v2261 = vsel %vm2229, 1, 0
        %v2262 = vsel %vm2230, 1, 0
        %v2263 = vsel %vm2231, 1, 0
        %v2264 = vsel %vm2232, 1, 0
        %v2265 = vsel %vm2233, 1, 0
        %v2266 = vsel %vm2234, 1, 0
        %v2267 = vsel %vm2235, 1, 0
        %v2268 = vsel %vm2236, 1, 0
        %v2269 = vsel %vm2237, 1, 0
        %v2270 = vsel %vm2238, 1, 0
        %v2271 = vsel %vm2239, 1, 0
        %v2272 = vsel %vm2240, 1, 0
        %v2273 = vcvt.s32.f32 %v2241
        %v2274 = vcvt.s32.f32 %v2242
        %v2275 = vcvt.s32.f32 %v2243
        %v2276 = vcvt.s32.f32 %v2244
        %v2277 = vcvt.s32.f32 %v2245
        %v2278 = vcvt.s32.f32 %v2246
        %v2279 = vcvt.s32.f32 %v2247
        %v2280 = vcvt.s32.f32 %v2248
        %v2281 = vcvt.s32.f32 %v2249
        %v2282 = vcvt.s32.f32 %v2250
        %v2283 = vcvt.s32.f32 %v2251
        %v2284 = vcvt.s32.f32 %v2252
        %v2285 = vcvt.s32.f32 %v2253
        %v2286 = vcvt.s32.f32 %v2254
        %v2287 = vcvt.s32.f32 %v2255
        %v2288 = vcvt.s32.f32 %v2256
        %v2289 = vcvt.s32.f32 %v2257
        %v2290 = vcvt.s32.f32 %v2258
        %v2291 = vcvt.s32.f32 %v2259
        %v2292 = vcvt.s32.f32 %v2260
        %v2293 = vcvt.s32.f32 %v2261
        %v2294 = vcvt.s32.f32 %v2262
        %v2295 = vcvt.s32.f32 %v2263
        %v2296 = vcvt.s32.f32 %v2264
        %v2297 = vcvt.s32.f32 %v2265
        %v2298 = vcvt.s32.f32 %v2266
        %v2299 = vcvt.s32.f32 %v2267
        %v2300 = vcvt.s32.f32 %v2268
        %v2301 = vcvt.s32.f32 %v2269
        %v2302 = vcvt.s32.f32 %v2270
        %v2303 = vcvt.s32.f32 %v2271
        %v2304 = vcvt.s32.f32 %v2272
        %v2305 = vadd.f32 %v2273, %v2274
        %v2306 = vadd.f32 %v2305, %v2275
        %v2307 = vadd.f32 %v2306, %v2276
        %v2308 = vadd.f32 %v2307, %v2277
        %v2309 = vadd.f32 %v2308, %v2278
        %v2310 = vadd.f32 %v2309, %v2279
        %v2311 = vadd.f32 %v2310, %v2280
        %v2312 = vadd.f32 %v2311, %v2281
        %v2313 = vadd.f32 %v2312, %v2282
        %v2314 = vadd.f32 %v2313, %v2283
        %v2315 = vadd.f32 %v2314, %v2284
        %v2316 = vadd.f32 %v2315, %v2285
        %v2317 = vadd.f32 %v2316, %v2286
        %v2318 = vadd.f32 %v2317, %v2287
        %v2319 = vadd.f32 %v2318, %v2288
        %v2320 = vadd.f32 %v2319, %v2289
        %v2321 = vadd.f32 %v2320, %v2290
        %v2322 = vadd.f32 %v2321, %v2291
        %v2323 = vadd.f32 %v2322, %v2292
        %v2324 = vadd.f32 %v2323, %v2293
        %v2325 = vadd.f32 %v2324, %v2294
        %v2326 = vadd.f32 %v2325, %v2295
        %v2327 = vadd.f32 %v2326, %v2296
        %v2328 = vadd.f32 %v2327, %v2297
        %v2329 = vadd.f32 %v2328, %v2298
        %v2330 = vadd.f32 %v2329, %v2299
        %v2331 = vadd.f32 %v2330, %v2300
        %v2332 = vadd.f32 %v2331, %v2301
        %v2333 = vadd.f32 %v2332, %v2302
        %v2334 = vadd.f32 %v2333, %v2303
        %v2335 = vadd.f32 %v2334, %v2304
        %2336 = vadd.xlane.f32.xlu0 %v2335
        %v2337 = vpop.xlane.xlu0 %2336
        %v2338 = vrot.slane %v2337, 4
        %v2339 = vadd.f32 %v2337, %v2338
        %v2340 = vrot.slane %v2339, 2
        %v2341 = vadd.f32 %v2339, %v2340
        %v2342 = vrot.slane %v2341, 1
        %v2343 = vadd.f32 %v2341, %v2342
        %s2344 = vtos %v2343
        %vm2345 = vcmp.eq.s32.totalorder %v910, 9
        %v2346 = vstv %s2344
        %v2347 = vsel %vm2345, %v2346, 0.0
        %v2348 = vadd.f32 %v2208, %v2347
        %vm2349 = vcmp.eq.f32.partialorder %v917, 10.0
        %vm2350 = vcmp.eq.f32.partialorder %v918, 10.0
        %vm2351 = vcmp.eq.f32.partialorder %v919, 10.0
        %vm2352 = vcmp.eq.f32.partialorder %v920, 10.0
        %vm2353 = vcmp.eq.f32.partialorder %v921, 10.0
        %vm2354 = vcmp.eq.f32.partialorder %v922, 10.0
        %vm2355 = vcmp.eq.f32.partialorder %v923, 10.0
        %vm2356 = vcmp.eq.f32.partialorder %v924, 10.0
        %vm2357 = vcmp.eq.f32.partialorder %v925, 10.0
        %vm2358 = vcmp.eq.f32.partialorder %v926, 10.0
        %vm2359 = vcmp.eq.f32.partialorder %v927, 10.0
        %vm2360 = vcmp.eq.f32.partialorder %v928, 10.0
        %vm2361 = vcmp.eq.f32.partialorder %v929, 10.0
        %vm2362 = vcmp.eq.f32.partialorder %v930, 10.0
        %vm2363 = vcmp.eq.f32.partialorder %v931, 10.0
        %vm2364 = vcmp.eq.f32.partialorder %v932, 10.0
        %vm2365 = vcmp.eq.f32.partialorder %v933, 10.0
        %vm2366 = vcmp.eq.f32.partialorder %v934, 10.0
        %vm2367 = vcmp.eq.f32.partialorder %v935, 10.0
        %vm2368 = vcmp.eq.f32.partialorder %v936, 10.0
        %vm2369 = vcmp.eq.f32.partialorder %v937, 10.0
        %vm2370 = vcmp.eq.f32.partialorder %v938, 10.0
        %vm2371 = vcmp.eq.f32.partialorder %v939, 10.0
        %vm2372 = vcmp.eq.f32.partialorder %v940, 10.0
        %vm2373 = vcmp.eq.f32.partialorder %v941, 10.0
        %vm2374 = vcmp.eq.f32.partialorder %v942, 10.0
        %vm2375 = vcmp.eq.f32.partialorder %v943, 10.0
        %vm2376 = vcmp.eq.f32.partialorder %v944, 10.0
        %vm2377 = vcmp.eq.f32.partialorder %v945, 10.0
        %vm2378 = vcmp.eq.f32.partialorder %v946, 10.0
        %vm2379 = vcmp.eq.f32.partialorder %v947, 10.0
        %vm2380 = vcmp.eq.f32.partialorder %v948, 10.0
        %v2381 = vsel %vm2349, 1, 0
        %v2382 = vsel %vm2350, 1, 0
        %v2383 = vsel %vm2351, 1, 0
        %v2384 = vsel %vm2352, 1, 0
        %v2385 = vsel %vm2353, 1, 0
        %v2386 = vsel %vm2354, 1, 0
        %v2387 = vsel %vm2355, 1, 0
        %v2388 = vsel %vm2356, 1, 0
        %v2389 = vsel %vm2357, 1, 0
        %v2390 = vsel %vm2358, 1, 0
        %v2391 = vsel %vm2359, 1, 0
        %v2392 = vsel %vm2360, 1, 0
        %v2393 = vsel %vm2361, 1, 0
        %v2394 = vsel %vm2362, 1, 0
        %v2395 = vsel %vm2363, 1, 0
        %v2396 = vsel %vm2364, 1, 0
        %v2397 = vsel %vm2365, 1, 0
        %v2398 = vsel %vm2366, 1, 0
        %v2399 = vsel %vm2367, 1, 0
        %v2400 = vsel %vm2368, 1, 0
        %v2401 = vsel %vm2369, 1, 0
        %v2402 = vsel %vm2370, 1, 0
        %v2403 = vsel %vm2371, 1, 0
        %v2404 = vsel %vm2372, 1, 0
        %v2405 = vsel %vm2373, 1, 0
        %v2406 = vsel %vm2374, 1, 0
        %v2407 = vsel %vm2375, 1, 0
        %v2408 = vsel %vm2376, 1, 0
        %v2409 = vsel %vm2377, 1, 0
        %v2410 = vsel %vm2378, 1, 0
        %v2411 = vsel %vm2379, 1, 0
        %v2412 = vsel %vm2380, 1, 0
        %v2413 = vcvt.s32.f32 %v2381
        %v2414 = vcvt.s32.f32 %v2382
        %v2415 = vcvt.s32.f32 %v2383
        %v2416 = vcvt.s32.f32 %v2384
        %v2417 = vcvt.s32.f32 %v2385
        %v2418 = vcvt.s32.f32 %v2386
        %v2419 = vcvt.s32.f32 %v2387
        %v2420 = vcvt.s32.f32 %v2388
        %v2421 = vcvt.s32.f32 %v2389
        %v2422 = vcvt.s32.f32 %v2390
        %v2423 = vcvt.s32.f32 %v2391
        %v2424 = vcvt.s32.f32 %v2392
        %v2425 = vcvt.s32.f32 %v2393
        %v2426 = vcvt.s32.f32 %v2394
        %v2427 = vcvt.s32.f32 %v2395
        %v2428 = vcvt.s32.f32 %v2396
        %v2429 = vcvt.s32.f32 %v2397
        %v2430 = vcvt.s32.f32 %v2398
        %v2431 = vcvt.s32.f32 %v2399
        %v2432 = vcvt.s32.f32 %v2400
        %v2433 = vcvt.s32.f32 %v2401
        %v2434 = vcvt.s32.f32 %v2402
        %v2435 = vcvt.s32.f32 %v2403
        %v2436 = vcvt.s32.f32 %v2404
        %v2437 = vcvt.s32.f32 %v2405
        %v2438 = vcvt.s32.f32 %v2406
        %v2439 = vcvt.s32.f32 %v2407
        %v2440 = vcvt.s32.f32 %v2408
        %v2441 = vcvt.s32.f32 %v2409
        %v2442 = vcvt.s32.f32 %v2410
        %v2443 = vcvt.s32.f32 %v2411
        %v2444 = vcvt.s32.f32 %v2412
        %v2445 = vadd.f32 %v2413, %v2414
        %v2446 = vadd.f32 %v2445, %v2415
        %v2447 = vadd.f32 %v2446, %v2416
        %v2448 = vadd.f32 %v2447, %v2417
        %v2449 = vadd.f32 %v2448, %v2418
        %v2450 = vadd.f32 %v2449, %v2419
        %v2451 = vadd.f32 %v2450, %v2420
        %v2452 = vadd.f32 %v2451, %v2421
        %v2453 = vadd.f32 %v2452, %v2422
        %v2454 = vadd.f32 %v2453, %v2423
        %v2455 = vadd.f32 %v2454, %v2424
        %v2456 = vadd.f32 %v2455, %v2425
        %v2457 = vadd.f32 %v2456, %v2426
        %v2458 = vadd.f32 %v2457, %v2427
        %v2459 = vadd.f32 %v2458, %v2428
        %v2460 = vadd.f32 %v2459, %v2429
        %v2461 = vadd.f32 %v2460, %v2430
        %v2462 = vadd.f32 %v2461, %v2431
        %v2463 = vadd.f32 %v2462, %v2432
        %v2464 = vadd.f32 %v2463, %v2433
        %v2465 = vadd.f32 %v2464, %v2434
        %v2466 = vadd.f32 %v2465, %v2435
        %v2467 = vadd.f32 %v2466, %v2436
        %v2468 = vadd.f32 %v2467, %v2437
        %v2469 = vadd.f32 %v2468, %v2438
        %v2470 = vadd.f32 %v2469, %v2439
        %v2471 = vadd.f32 %v2470, %v2440
        %v2472 = vadd.f32 %v2471, %v2441
        %v2473 = vadd.f32 %v2472, %v2442
        %v2474 = vadd.f32 %v2473, %v2443
        %v2475 = vadd.f32 %v2474, %v2444
        %2476 = vadd.xlane.f32.xlu0 %v2475
        %v2477 = vpop.xlane.xlu0 %2476
        %v2478 = vrot.slane %v2477, 4
        %v2479 = vadd.f32 %v2477, %v2478
        %v2480 = vrot.slane %v2479, 2
        %v2481 = vadd.f32 %v2479, %v2480
        %v2482 = vrot.slane %v2481, 1
        %v2483 = vadd.f32 %v2481, %v2482
        %s2484 = vtos %v2483
        %vm2485 = vcmp.eq.s32.totalorder %v910, 10
        %v2486 = vstv %s2484
        %v2487 = vsel %vm2485, %v2486, 0.0
        %v2488 = vadd.f32 %v2348, %v2487
        %vm2489 = vcmp.eq.f32.partialorder %v917, 11.0
        %vm2490 = vcmp.eq.f32.partialorder %v918, 11.0
        %vm2491 = vcmp.eq.f32.partialorder %v919, 11.0
        %vm2492 = vcmp.eq.f32.partialorder %v920, 11.0
        %vm2493 = vcmp.eq.f32.partialorder %v921, 11.0
        %vm2494 = vcmp.eq.f32.partialorder %v922, 11.0
        %vm2495 = vcmp.eq.f32.partialorder %v923, 11.0
        %vm2496 = vcmp.eq.f32.partialorder %v924, 11.0
        %vm2497 = vcmp.eq.f32.partialorder %v925, 11.0
        %vm2498 = vcmp.eq.f32.partialorder %v926, 11.0
        %vm2499 = vcmp.eq.f32.partialorder %v927, 11.0
        %vm2500 = vcmp.eq.f32.partialorder %v928, 11.0
        %vm2501 = vcmp.eq.f32.partialorder %v929, 11.0
        %vm2502 = vcmp.eq.f32.partialorder %v930, 11.0
        %vm2503 = vcmp.eq.f32.partialorder %v931, 11.0
        %vm2504 = vcmp.eq.f32.partialorder %v932, 11.0
        %vm2505 = vcmp.eq.f32.partialorder %v933, 11.0
        %vm2506 = vcmp.eq.f32.partialorder %v934, 11.0
        %vm2507 = vcmp.eq.f32.partialorder %v935, 11.0
        %vm2508 = vcmp.eq.f32.partialorder %v936, 11.0
        %vm2509 = vcmp.eq.f32.partialorder %v937, 11.0
        %vm2510 = vcmp.eq.f32.partialorder %v938, 11.0
        %vm2511 = vcmp.eq.f32.partialorder %v939, 11.0
        %vm2512 = vcmp.eq.f32.partialorder %v940, 11.0
        %vm2513 = vcmp.eq.f32.partialorder %v941, 11.0
        %vm2514 = vcmp.eq.f32.partialorder %v942, 11.0
        %vm2515 = vcmp.eq.f32.partialorder %v943, 11.0
        %vm2516 = vcmp.eq.f32.partialorder %v944, 11.0
        %vm2517 = vcmp.eq.f32.partialorder %v945, 11.0
        %vm2518 = vcmp.eq.f32.partialorder %v946, 11.0
        %vm2519 = vcmp.eq.f32.partialorder %v947, 11.0
        %vm2520 = vcmp.eq.f32.partialorder %v948, 11.0
        %v2521 = vsel %vm2489, 1, 0
        %v2522 = vsel %vm2490, 1, 0
        %v2523 = vsel %vm2491, 1, 0
        %v2524 = vsel %vm2492, 1, 0
        %v2525 = vsel %vm2493, 1, 0
        %v2526 = vsel %vm2494, 1, 0
        %v2527 = vsel %vm2495, 1, 0
        %v2528 = vsel %vm2496, 1, 0
        %v2529 = vsel %vm2497, 1, 0
        %v2530 = vsel %vm2498, 1, 0
        %v2531 = vsel %vm2499, 1, 0
        %v2532 = vsel %vm2500, 1, 0
        %v2533 = vsel %vm2501, 1, 0
        %v2534 = vsel %vm2502, 1, 0
        %v2535 = vsel %vm2503, 1, 0
        %v2536 = vsel %vm2504, 1, 0
        %v2537 = vsel %vm2505, 1, 0
        %v2538 = vsel %vm2506, 1, 0
        %v2539 = vsel %vm2507, 1, 0
        %v2540 = vsel %vm2508, 1, 0
        %v2541 = vsel %vm2509, 1, 0
        %v2542 = vsel %vm2510, 1, 0
        %v2543 = vsel %vm2511, 1, 0
        %v2544 = vsel %vm2512, 1, 0
        %v2545 = vsel %vm2513, 1, 0
        %v2546 = vsel %vm2514, 1, 0
        %v2547 = vsel %vm2515, 1, 0
        %v2548 = vsel %vm2516, 1, 0
        %v2549 = vsel %vm2517, 1, 0
        %v2550 = vsel %vm2518, 1, 0
        %v2551 = vsel %vm2519, 1, 0
        %v2552 = vsel %vm2520, 1, 0
        %v2553 = vcvt.s32.f32 %v2521
        %v2554 = vcvt.s32.f32 %v2522
        %v2555 = vcvt.s32.f32 %v2523
        %v2556 = vcvt.s32.f32 %v2524
        %v2557 = vcvt.s32.f32 %v2525
        %v2558 = vcvt.s32.f32 %v2526
        %v2559 = vcvt.s32.f32 %v2527
        %v2560 = vcvt.s32.f32 %v2528
        %v2561 = vcvt.s32.f32 %v2529
        %v2562 = vcvt.s32.f32 %v2530
        %v2563 = vcvt.s32.f32 %v2531
        %v2564 = vcvt.s32.f32 %v2532
        %v2565 = vcvt.s32.f32 %v2533
        %v2566 = vcvt.s32.f32 %v2534
        %v2567 = vcvt.s32.f32 %v2535
        %v2568 = vcvt.s32.f32 %v2536
        %v2569 = vcvt.s32.f32 %v2537
        %v2570 = vcvt.s32.f32 %v2538
        %v2571 = vcvt.s32.f32 %v2539
        %v2572 = vcvt.s32.f32 %v2540
        %v2573 = vcvt.s32.f32 %v2541
        %v2574 = vcvt.s32.f32 %v2542
        %v2575 = vcvt.s32.f32 %v2543
        %v2576 = vcvt.s32.f32 %v2544
        %v2577 = vcvt.s32.f32 %v2545
        %v2578 = vcvt.s32.f32 %v2546
        %v2579 = vcvt.s32.f32 %v2547
        %v2580 = vcvt.s32.f32 %v2548
        %v2581 = vcvt.s32.f32 %v2549
        %v2582 = vcvt.s32.f32 %v2550
        %v2583 = vcvt.s32.f32 %v2551
        %v2584 = vcvt.s32.f32 %v2552
        %v2585 = vadd.f32 %v2553, %v2554
        %v2586 = vadd.f32 %v2585, %v2555
        %v2587 = vadd.f32 %v2586, %v2556
        %v2588 = vadd.f32 %v2587, %v2557
        %v2589 = vadd.f32 %v2588, %v2558
        %v2590 = vadd.f32 %v2589, %v2559
        %v2591 = vadd.f32 %v2590, %v2560
        %v2592 = vadd.f32 %v2591, %v2561
        %v2593 = vadd.f32 %v2592, %v2562
        %v2594 = vadd.f32 %v2593, %v2563
        %v2595 = vadd.f32 %v2594, %v2564
        %v2596 = vadd.f32 %v2595, %v2565
        %v2597 = vadd.f32 %v2596, %v2566
        %v2598 = vadd.f32 %v2597, %v2567
        %v2599 = vadd.f32 %v2598, %v2568
        %v2600 = vadd.f32 %v2599, %v2569
        %v2601 = vadd.f32 %v2600, %v2570
        %v2602 = vadd.f32 %v2601, %v2571
        %v2603 = vadd.f32 %v2602, %v2572
        %v2604 = vadd.f32 %v2603, %v2573
        %v2605 = vadd.f32 %v2604, %v2574
        %v2606 = vadd.f32 %v2605, %v2575
        %v2607 = vadd.f32 %v2606, %v2576
        %v2608 = vadd.f32 %v2607, %v2577
        %v2609 = vadd.f32 %v2608, %v2578
        %v2610 = vadd.f32 %v2609, %v2579
        %v2611 = vadd.f32 %v2610, %v2580
        %v2612 = vadd.f32 %v2611, %v2581
        %v2613 = vadd.f32 %v2612, %v2582
        %v2614 = vadd.f32 %v2613, %v2583
        %v2615 = vadd.f32 %v2614, %v2584
        %2616 = vadd.xlane.f32.xlu0 %v2615
        %v2617 = vpop.xlane.xlu0 %2616
        %v2618 = vrot.slane %v2617, 4
        %v2619 = vadd.f32 %v2617, %v2618
        %v2620 = vrot.slane %v2619, 2
        %v2621 = vadd.f32 %v2619, %v2620
        %v2622 = vrot.slane %v2621, 1
        %v2623 = vadd.f32 %v2621, %v2622
        %s2624 = vtos %v2623
        %vm2625 = vcmp.eq.s32.totalorder %v910, 11
        %v2626 = vstv %s2624
        %v2627 = vsel %vm2625, %v2626, 0.0
        %v2628 = vadd.f32 %v2488, %v2627
        %vm2629 = vcmp.eq.f32.partialorder %v917, 12.0
        %vm2630 = vcmp.eq.f32.partialorder %v918, 12.0
        %vm2631 = vcmp.eq.f32.partialorder %v919, 12.0
        %vm2632 = vcmp.eq.f32.partialorder %v920, 12.0
        %vm2633 = vcmp.eq.f32.partialorder %v921, 12.0
        %vm2634 = vcmp.eq.f32.partialorder %v922, 12.0
        %vm2635 = vcmp.eq.f32.partialorder %v923, 12.0
        %vm2636 = vcmp.eq.f32.partialorder %v924, 12.0
        %vm2637 = vcmp.eq.f32.partialorder %v925, 12.0
        %vm2638 = vcmp.eq.f32.partialorder %v926, 12.0
        %vm2639 = vcmp.eq.f32.partialorder %v927, 12.0
        %vm2640 = vcmp.eq.f32.partialorder %v928, 12.0
        %vm2641 = vcmp.eq.f32.partialorder %v929, 12.0
        %vm2642 = vcmp.eq.f32.partialorder %v930, 12.0
        %vm2643 = vcmp.eq.f32.partialorder %v931, 12.0
        %vm2644 = vcmp.eq.f32.partialorder %v932, 12.0
        %vm2645 = vcmp.eq.f32.partialorder %v933, 12.0
        %vm2646 = vcmp.eq.f32.partialorder %v934, 12.0
        %vm2647 = vcmp.eq.f32.partialorder %v935, 12.0
        %vm2648 = vcmp.eq.f32.partialorder %v936, 12.0
        %vm2649 = vcmp.eq.f32.partialorder %v937, 12.0
        %vm2650 = vcmp.eq.f32.partialorder %v938, 12.0
        %vm2651 = vcmp.eq.f32.partialorder %v939, 12.0
        %vm2652 = vcmp.eq.f32.partialorder %v940, 12.0
        %vm2653 = vcmp.eq.f32.partialorder %v941, 12.0
        %vm2654 = vcmp.eq.f32.partialorder %v942, 12.0
        %vm2655 = vcmp.eq.f32.partialorder %v943, 12.0
        %vm2656 = vcmp.eq.f32.partialorder %v944, 12.0
        %vm2657 = vcmp.eq.f32.partialorder %v945, 12.0
        %vm2658 = vcmp.eq.f32.partialorder %v946, 12.0
        %vm2659 = vcmp.eq.f32.partialorder %v947, 12.0
        %vm2660 = vcmp.eq.f32.partialorder %v948, 12.0
        %v2661 = vsel %vm2629, 1, 0
        %v2662 = vsel %vm2630, 1, 0
        %v2663 = vsel %vm2631, 1, 0
        %v2664 = vsel %vm2632, 1, 0
        %v2665 = vsel %vm2633, 1, 0
        %v2666 = vsel %vm2634, 1, 0
        %v2667 = vsel %vm2635, 1, 0
        %v2668 = vsel %vm2636, 1, 0
        %v2669 = vsel %vm2637, 1, 0
        %v2670 = vsel %vm2638, 1, 0
        %v2671 = vsel %vm2639, 1, 0
        %v2672 = vsel %vm2640, 1, 0
        %v2673 = vsel %vm2641, 1, 0
        %v2674 = vsel %vm2642, 1, 0
        %v2675 = vsel %vm2643, 1, 0
        %v2676 = vsel %vm2644, 1, 0
        %v2677 = vsel %vm2645, 1, 0
        %v2678 = vsel %vm2646, 1, 0
        %v2679 = vsel %vm2647, 1, 0
        %v2680 = vsel %vm2648, 1, 0
        %v2681 = vsel %vm2649, 1, 0
        %v2682 = vsel %vm2650, 1, 0
        %v2683 = vsel %vm2651, 1, 0
        %v2684 = vsel %vm2652, 1, 0
        %v2685 = vsel %vm2653, 1, 0
        %v2686 = vsel %vm2654, 1, 0
        %v2687 = vsel %vm2655, 1, 0
        %v2688 = vsel %vm2656, 1, 0
        %v2689 = vsel %vm2657, 1, 0
        %v2690 = vsel %vm2658, 1, 0
        %v2691 = vsel %vm2659, 1, 0
        %v2692 = vsel %vm2660, 1, 0
        %v2693 = vcvt.s32.f32 %v2661
        %v2694 = vcvt.s32.f32 %v2662
        %v2695 = vcvt.s32.f32 %v2663
        %v2696 = vcvt.s32.f32 %v2664
        %v2697 = vcvt.s32.f32 %v2665
        %v2698 = vcvt.s32.f32 %v2666
        %v2699 = vcvt.s32.f32 %v2667
        %v2700 = vcvt.s32.f32 %v2668
        %v2701 = vcvt.s32.f32 %v2669
        %v2702 = vcvt.s32.f32 %v2670
        %v2703 = vcvt.s32.f32 %v2671
        %v2704 = vcvt.s32.f32 %v2672
        %v2705 = vcvt.s32.f32 %v2673
        %v2706 = vcvt.s32.f32 %v2674
        %v2707 = vcvt.s32.f32 %v2675
        %v2708 = vcvt.s32.f32 %v2676
        %v2709 = vcvt.s32.f32 %v2677
        %v2710 = vcvt.s32.f32 %v2678
        %v2711 = vcvt.s32.f32 %v2679
        %v2712 = vcvt.s32.f32 %v2680
        %v2713 = vcvt.s32.f32 %v2681
        %v2714 = vcvt.s32.f32 %v2682
        %v2715 = vcvt.s32.f32 %v2683
        %v2716 = vcvt.s32.f32 %v2684
        %v2717 = vcvt.s32.f32 %v2685
        %v2718 = vcvt.s32.f32 %v2686
        %v2719 = vcvt.s32.f32 %v2687
        %v2720 = vcvt.s32.f32 %v2688
        %v2721 = vcvt.s32.f32 %v2689
        %v2722 = vcvt.s32.f32 %v2690
        %v2723 = vcvt.s32.f32 %v2691
        %v2724 = vcvt.s32.f32 %v2692
        %v2725 = vadd.f32 %v2693, %v2694
        %v2726 = vadd.f32 %v2725, %v2695
        %v2727 = vadd.f32 %v2726, %v2696
        %v2728 = vadd.f32 %v2727, %v2697
        %v2729 = vadd.f32 %v2728, %v2698
        %v2730 = vadd.f32 %v2729, %v2699
        %v2731 = vadd.f32 %v2730, %v2700
        %v2732 = vadd.f32 %v2731, %v2701
        %v2733 = vadd.f32 %v2732, %v2702
        %v2734 = vadd.f32 %v2733, %v2703
        %v2735 = vadd.f32 %v2734, %v2704
        %v2736 = vadd.f32 %v2735, %v2705
        %v2737 = vadd.f32 %v2736, %v2706
        %v2738 = vadd.f32 %v2737, %v2707
        %v2739 = vadd.f32 %v2738, %v2708
        %v2740 = vadd.f32 %v2739, %v2709
        %v2741 = vadd.f32 %v2740, %v2710
        %v2742 = vadd.f32 %v2741, %v2711
        %v2743 = vadd.f32 %v2742, %v2712
        %v2744 = vadd.f32 %v2743, %v2713
        %v2745 = vadd.f32 %v2744, %v2714
        %v2746 = vadd.f32 %v2745, %v2715
        %v2747 = vadd.f32 %v2746, %v2716
        %v2748 = vadd.f32 %v2747, %v2717
        %v2749 = vadd.f32 %v2748, %v2718
        %v2750 = vadd.f32 %v2749, %v2719
        %v2751 = vadd.f32 %v2750, %v2720
        %v2752 = vadd.f32 %v2751, %v2721
        %v2753 = vadd.f32 %v2752, %v2722
        %v2754 = vadd.f32 %v2753, %v2723
        %v2755 = vadd.f32 %v2754, %v2724
        %2756 = vadd.xlane.f32.xlu0 %v2755
        %v2757 = vpop.xlane.xlu0 %2756
        %v2758 = vrot.slane %v2757, 4
        %v2759 = vadd.f32 %v2757, %v2758
        %v2760 = vrot.slane %v2759, 2
        %v2761 = vadd.f32 %v2759, %v2760
        %v2762 = vrot.slane %v2761, 1
        %v2763 = vadd.f32 %v2761, %v2762
        %s2764 = vtos %v2763
        %vm2765 = vcmp.eq.s32.totalorder %v910, 12
        %v2766 = vstv %s2764
        %v2767 = vsel %vm2765, %v2766, 0.0
        %v2768 = vadd.f32 %v2628, %v2767
        %vm2769 = vcmp.eq.f32.partialorder %v917, 13.0
        %vm2770 = vcmp.eq.f32.partialorder %v918, 13.0
        %vm2771 = vcmp.eq.f32.partialorder %v919, 13.0
        %vm2772 = vcmp.eq.f32.partialorder %v920, 13.0
        %vm2773 = vcmp.eq.f32.partialorder %v921, 13.0
        %vm2774 = vcmp.eq.f32.partialorder %v922, 13.0
        %vm2775 = vcmp.eq.f32.partialorder %v923, 13.0
        %vm2776 = vcmp.eq.f32.partialorder %v924, 13.0
        %vm2777 = vcmp.eq.f32.partialorder %v925, 13.0
        %vm2778 = vcmp.eq.f32.partialorder %v926, 13.0
        %vm2779 = vcmp.eq.f32.partialorder %v927, 13.0
        %vm2780 = vcmp.eq.f32.partialorder %v928, 13.0
        %vm2781 = vcmp.eq.f32.partialorder %v929, 13.0
        %vm2782 = vcmp.eq.f32.partialorder %v930, 13.0
        %vm2783 = vcmp.eq.f32.partialorder %v931, 13.0
        %vm2784 = vcmp.eq.f32.partialorder %v932, 13.0
        %vm2785 = vcmp.eq.f32.partialorder %v933, 13.0
        %vm2786 = vcmp.eq.f32.partialorder %v934, 13.0
        %vm2787 = vcmp.eq.f32.partialorder %v935, 13.0
        %vm2788 = vcmp.eq.f32.partialorder %v936, 13.0
        %vm2789 = vcmp.eq.f32.partialorder %v937, 13.0
        %vm2790 = vcmp.eq.f32.partialorder %v938, 13.0
        %vm2791 = vcmp.eq.f32.partialorder %v939, 13.0
        %vm2792 = vcmp.eq.f32.partialorder %v940, 13.0
        %vm2793 = vcmp.eq.f32.partialorder %v941, 13.0
        %vm2794 = vcmp.eq.f32.partialorder %v942, 13.0
        %vm2795 = vcmp.eq.f32.partialorder %v943, 13.0
        %vm2796 = vcmp.eq.f32.partialorder %v944, 13.0
        %vm2797 = vcmp.eq.f32.partialorder %v945, 13.0
        %vm2798 = vcmp.eq.f32.partialorder %v946, 13.0
        %vm2799 = vcmp.eq.f32.partialorder %v947, 13.0
        %vm2800 = vcmp.eq.f32.partialorder %v948, 13.0
        %v2801 = vsel %vm2769, 1, 0
        %v2802 = vsel %vm2770, 1, 0
        %v2803 = vsel %vm2771, 1, 0
        %v2804 = vsel %vm2772, 1, 0
        %v2805 = vsel %vm2773, 1, 0
        %v2806 = vsel %vm2774, 1, 0
        %v2807 = vsel %vm2775, 1, 0
        %v2808 = vsel %vm2776, 1, 0
        %v2809 = vsel %vm2777, 1, 0
        %v2810 = vsel %vm2778, 1, 0
        %v2811 = vsel %vm2779, 1, 0
        %v2812 = vsel %vm2780, 1, 0
        %v2813 = vsel %vm2781, 1, 0
        %v2814 = vsel %vm2782, 1, 0
        %v2815 = vsel %vm2783, 1, 0
        %v2816 = vsel %vm2784, 1, 0
        %v2817 = vsel %vm2785, 1, 0
        %v2818 = vsel %vm2786, 1, 0
        %v2819 = vsel %vm2787, 1, 0
        %v2820 = vsel %vm2788, 1, 0
        %v2821 = vsel %vm2789, 1, 0
        %v2822 = vsel %vm2790, 1, 0
        %v2823 = vsel %vm2791, 1, 0
        %v2824 = vsel %vm2792, 1, 0
        %v2825 = vsel %vm2793, 1, 0
        %v2826 = vsel %vm2794, 1, 0
        %v2827 = vsel %vm2795, 1, 0
        %v2828 = vsel %vm2796, 1, 0
        %v2829 = vsel %vm2797, 1, 0
        %v2830 = vsel %vm2798, 1, 0
        %v2831 = vsel %vm2799, 1, 0
        %v2832 = vsel %vm2800, 1, 0
        %v2833 = vcvt.s32.f32 %v2801
        %v2834 = vcvt.s32.f32 %v2802
        %v2835 = vcvt.s32.f32 %v2803
        %v2836 = vcvt.s32.f32 %v2804
        %v2837 = vcvt.s32.f32 %v2805
        %v2838 = vcvt.s32.f32 %v2806
        %v2839 = vcvt.s32.f32 %v2807
        %v2840 = vcvt.s32.f32 %v2808
        %v2841 = vcvt.s32.f32 %v2809
        %v2842 = vcvt.s32.f32 %v2810
        %v2843 = vcvt.s32.f32 %v2811
        %v2844 = vcvt.s32.f32 %v2812
        %v2845 = vcvt.s32.f32 %v2813
        %v2846 = vcvt.s32.f32 %v2814
        %v2847 = vcvt.s32.f32 %v2815
        %v2848 = vcvt.s32.f32 %v2816
        %v2849 = vcvt.s32.f32 %v2817
        %v2850 = vcvt.s32.f32 %v2818
        %v2851 = vcvt.s32.f32 %v2819
        %v2852 = vcvt.s32.f32 %v2820
        %v2853 = vcvt.s32.f32 %v2821
        %v2854 = vcvt.s32.f32 %v2822
        %v2855 = vcvt.s32.f32 %v2823
        %v2856 = vcvt.s32.f32 %v2824
        %v2857 = vcvt.s32.f32 %v2825
        %v2858 = vcvt.s32.f32 %v2826
        %v2859 = vcvt.s32.f32 %v2827
        %v2860 = vcvt.s32.f32 %v2828
        %v2861 = vcvt.s32.f32 %v2829
        %v2862 = vcvt.s32.f32 %v2830
        %v2863 = vcvt.s32.f32 %v2831
        %v2864 = vcvt.s32.f32 %v2832
        %v2865 = vadd.f32 %v2833, %v2834
        %v2866 = vadd.f32 %v2865, %v2835
        %v2867 = vadd.f32 %v2866, %v2836
        %v2868 = vadd.f32 %v2867, %v2837
        %v2869 = vadd.f32 %v2868, %v2838
        %v2870 = vadd.f32 %v2869, %v2839
        %v2871 = vadd.f32 %v2870, %v2840
        %v2872 = vadd.f32 %v2871, %v2841
        %v2873 = vadd.f32 %v2872, %v2842
        %v2874 = vadd.f32 %v2873, %v2843
        %v2875 = vadd.f32 %v2874, %v2844
        %v2876 = vadd.f32 %v2875, %v2845
        %v2877 = vadd.f32 %v2876, %v2846
        %v2878 = vadd.f32 %v2877, %v2847
        %v2879 = vadd.f32 %v2878, %v2848
        %v2880 = vadd.f32 %v2879, %v2849
        %v2881 = vadd.f32 %v2880, %v2850
        %v2882 = vadd.f32 %v2881, %v2851
        %v2883 = vadd.f32 %v2882, %v2852
        %v2884 = vadd.f32 %v2883, %v2853
        %v2885 = vadd.f32 %v2884, %v2854
        %v2886 = vadd.f32 %v2885, %v2855
        %v2887 = vadd.f32 %v2886, %v2856
        %v2888 = vadd.f32 %v2887, %v2857
        %v2889 = vadd.f32 %v2888, %v2858
        %v2890 = vadd.f32 %v2889, %v2859
        %v2891 = vadd.f32 %v2890, %v2860
        %v2892 = vadd.f32 %v2891, %v2861
        %v2893 = vadd.f32 %v2892, %v2862
        %v2894 = vadd.f32 %v2893, %v2863
        %v2895 = vadd.f32 %v2894, %v2864
        %2896 = vadd.xlane.f32.xlu0 %v2895
        %v2897 = vpop.xlane.xlu0 %2896
        %v2898 = vrot.slane %v2897, 4
        %v2899 = vadd.f32 %v2897, %v2898
        %v2900 = vrot.slane %v2899, 2
        %v2901 = vadd.f32 %v2899, %v2900
        %v2902 = vrot.slane %v2901, 1
        %v2903 = vadd.f32 %v2901, %v2902
        %s2904 = vtos %v2903
        %vm2905 = vcmp.eq.s32.totalorder %v910, 13
        %v2906 = vstv %s2904
        %v2907 = vsel %vm2905, %v2906, 0.0
        %v2908 = vadd.f32 %v2768, %v2907
        %vm2909 = vcmp.eq.f32.partialorder %v917, 14.0
        %vm2910 = vcmp.eq.f32.partialorder %v918, 14.0
        %vm2911 = vcmp.eq.f32.partialorder %v919, 14.0
        %vm2912 = vcmp.eq.f32.partialorder %v920, 14.0
        %vm2913 = vcmp.eq.f32.partialorder %v921, 14.0
        %vm2914 = vcmp.eq.f32.partialorder %v922, 14.0
        %vm2915 = vcmp.eq.f32.partialorder %v923, 14.0
        %vm2916 = vcmp.eq.f32.partialorder %v924, 14.0
        %vm2917 = vcmp.eq.f32.partialorder %v925, 14.0
        %vm2918 = vcmp.eq.f32.partialorder %v926, 14.0
        %vm2919 = vcmp.eq.f32.partialorder %v927, 14.0
        %vm2920 = vcmp.eq.f32.partialorder %v928, 14.0
        %vm2921 = vcmp.eq.f32.partialorder %v929, 14.0
        %vm2922 = vcmp.eq.f32.partialorder %v930, 14.0
        %vm2923 = vcmp.eq.f32.partialorder %v931, 14.0
        %vm2924 = vcmp.eq.f32.partialorder %v932, 14.0
        %vm2925 = vcmp.eq.f32.partialorder %v933, 14.0
        %vm2926 = vcmp.eq.f32.partialorder %v934, 14.0
        %vm2927 = vcmp.eq.f32.partialorder %v935, 14.0
        %vm2928 = vcmp.eq.f32.partialorder %v936, 14.0
        %vm2929 = vcmp.eq.f32.partialorder %v937, 14.0
        %vm2930 = vcmp.eq.f32.partialorder %v938, 14.0
        %vm2931 = vcmp.eq.f32.partialorder %v939, 14.0
        %vm2932 = vcmp.eq.f32.partialorder %v940, 14.0
        %vm2933 = vcmp.eq.f32.partialorder %v941, 14.0
        %vm2934 = vcmp.eq.f32.partialorder %v942, 14.0
        %vm2935 = vcmp.eq.f32.partialorder %v943, 14.0
        %vm2936 = vcmp.eq.f32.partialorder %v944, 14.0
        %vm2937 = vcmp.eq.f32.partialorder %v945, 14.0
        %vm2938 = vcmp.eq.f32.partialorder %v946, 14.0
        %vm2939 = vcmp.eq.f32.partialorder %v947, 14.0
        %vm2940 = vcmp.eq.f32.partialorder %v948, 14.0
        %v2941 = vsel %vm2909, 1, 0
        %v2942 = vsel %vm2910, 1, 0
        %v2943 = vsel %vm2911, 1, 0
        %v2944 = vsel %vm2912, 1, 0
        %v2945 = vsel %vm2913, 1, 0
        %v2946 = vsel %vm2914, 1, 0
        %v2947 = vsel %vm2915, 1, 0
        %v2948 = vsel %vm2916, 1, 0
        %v2949 = vsel %vm2917, 1, 0
        %v2950 = vsel %vm2918, 1, 0
        %v2951 = vsel %vm2919, 1, 0
        %v2952 = vsel %vm2920, 1, 0
        %v2953 = vsel %vm2921, 1, 0
        %v2954 = vsel %vm2922, 1, 0
        %v2955 = vsel %vm2923, 1, 0
        %v2956 = vsel %vm2924, 1, 0
        %v2957 = vsel %vm2925, 1, 0
        %v2958 = vsel %vm2926, 1, 0
        %v2959 = vsel %vm2927, 1, 0
        %v2960 = vsel %vm2928, 1, 0
        %v2961 = vsel %vm2929, 1, 0
        %v2962 = vsel %vm2930, 1, 0
        %v2963 = vsel %vm2931, 1, 0
        %v2964 = vsel %vm2932, 1, 0
        %v2965 = vsel %vm2933, 1, 0
        %v2966 = vsel %vm2934, 1, 0
        %v2967 = vsel %vm2935, 1, 0
        %v2968 = vsel %vm2936, 1, 0
        %v2969 = vsel %vm2937, 1, 0
        %v2970 = vsel %vm2938, 1, 0
        %v2971 = vsel %vm2939, 1, 0
        %v2972 = vsel %vm2940, 1, 0
        %v2973 = vcvt.s32.f32 %v2941
        %v2974 = vcvt.s32.f32 %v2942
        %v2975 = vcvt.s32.f32 %v2943
        %v2976 = vcvt.s32.f32 %v2944
        %v2977 = vcvt.s32.f32 %v2945
        %v2978 = vcvt.s32.f32 %v2946
        %v2979 = vcvt.s32.f32 %v2947
        %v2980 = vcvt.s32.f32 %v2948
        %v2981 = vcvt.s32.f32 %v2949
        %v2982 = vcvt.s32.f32 %v2950
        %v2983 = vcvt.s32.f32 %v2951
        %v2984 = vcvt.s32.f32 %v2952
        %v2985 = vcvt.s32.f32 %v2953
        %v2986 = vcvt.s32.f32 %v2954
        %v2987 = vcvt.s32.f32 %v2955
        %v2988 = vcvt.s32.f32 %v2956
        %v2989 = vcvt.s32.f32 %v2957
        %v2990 = vcvt.s32.f32 %v2958
        %v2991 = vcvt.s32.f32 %v2959
        %v2992 = vcvt.s32.f32 %v2960
        %v2993 = vcvt.s32.f32 %v2961
        %v2994 = vcvt.s32.f32 %v2962
        %v2995 = vcvt.s32.f32 %v2963
        %v2996 = vcvt.s32.f32 %v2964
        %v2997 = vcvt.s32.f32 %v2965
        %v2998 = vcvt.s32.f32 %v2966
        %v2999 = vcvt.s32.f32 %v2967
        %v3000 = vcvt.s32.f32 %v2968
        %v3001 = vcvt.s32.f32 %v2969
        %v3002 = vcvt.s32.f32 %v2970
        %v3003 = vcvt.s32.f32 %v2971
        %v3004 = vcvt.s32.f32 %v2972
        %v3005 = vadd.f32 %v2973, %v2974
        %v3006 = vadd.f32 %v3005, %v2975
        %v3007 = vadd.f32 %v3006, %v2976
        %v3008 = vadd.f32 %v3007, %v2977
        %v3009 = vadd.f32 %v3008, %v2978
        %v3010 = vadd.f32 %v3009, %v2979
        %v3011 = vadd.f32 %v3010, %v2980
        %v3012 = vadd.f32 %v3011, %v2981
        %v3013 = vadd.f32 %v3012, %v2982
        %v3014 = vadd.f32 %v3013, %v2983
        %v3015 = vadd.f32 %v3014, %v2984
        %v3016 = vadd.f32 %v3015, %v2985
        %v3017 = vadd.f32 %v3016, %v2986
        %v3018 = vadd.f32 %v3017, %v2987
        %v3019 = vadd.f32 %v3018, %v2988
        %v3020 = vadd.f32 %v3019, %v2989
        %v3021 = vadd.f32 %v3020, %v2990
        %v3022 = vadd.f32 %v3021, %v2991
        %v3023 = vadd.f32 %v3022, %v2992
        %v3024 = vadd.f32 %v3023, %v2993
        %v3025 = vadd.f32 %v3024, %v2994
        %v3026 = vadd.f32 %v3025, %v2995
        %v3027 = vadd.f32 %v3026, %v2996
        %v3028 = vadd.f32 %v3027, %v2997
        %v3029 = vadd.f32 %v3028, %v2998
        %v3030 = vadd.f32 %v3029, %v2999
        %v3031 = vadd.f32 %v3030, %v3000
        %v3032 = vadd.f32 %v3031, %v3001
        %v3033 = vadd.f32 %v3032, %v3002
        %v3034 = vadd.f32 %v3033, %v3003
        %v3035 = vadd.f32 %v3034, %v3004
        %3036 = vadd.xlane.f32.xlu0 %v3035
        %v3037 = vpop.xlane.xlu0 %3036
        %v3038 = vrot.slane %v3037, 4
        %v3039 = vadd.f32 %v3037, %v3038
        %v3040 = vrot.slane %v3039, 2
        %v3041 = vadd.f32 %v3039, %v3040
        %v3042 = vrot.slane %v3041, 1
        %v3043 = vadd.f32 %v3041, %v3042
        %s3044 = vtos %v3043
        %vm3045 = vcmp.eq.s32.totalorder %v910, 14
        %v3046 = vstv %s3044
        %v3047 = vsel %vm3045, %v3046, 0.0
        %v3048 = vadd.f32 %v2908, %v3047
        %vm3049 = vcmp.eq.f32.partialorder %v917, 15.0
        %vm3050 = vcmp.eq.f32.partialorder %v918, 15.0
        %vm3051 = vcmp.eq.f32.partialorder %v919, 15.0
        %vm3052 = vcmp.eq.f32.partialorder %v920, 15.0
        %vm3053 = vcmp.eq.f32.partialorder %v921, 15.0
        %vm3054 = vcmp.eq.f32.partialorder %v922, 15.0
        %vm3055 = vcmp.eq.f32.partialorder %v923, 15.0
        %vm3056 = vcmp.eq.f32.partialorder %v924, 15.0
        %vm3057 = vcmp.eq.f32.partialorder %v925, 15.0
        %vm3058 = vcmp.eq.f32.partialorder %v926, 15.0
        %vm3059 = vcmp.eq.f32.partialorder %v927, 15.0
        %vm3060 = vcmp.eq.f32.partialorder %v928, 15.0
        %vm3061 = vcmp.eq.f32.partialorder %v929, 15.0
        %vm3062 = vcmp.eq.f32.partialorder %v930, 15.0
        %vm3063 = vcmp.eq.f32.partialorder %v931, 15.0
        %vm3064 = vcmp.eq.f32.partialorder %v932, 15.0
        %vm3065 = vcmp.eq.f32.partialorder %v933, 15.0
        %vm3066 = vcmp.eq.f32.partialorder %v934, 15.0
        %vm3067 = vcmp.eq.f32.partialorder %v935, 15.0
        %vm3068 = vcmp.eq.f32.partialorder %v936, 15.0
        %vm3069 = vcmp.eq.f32.partialorder %v937, 15.0
        %vm3070 = vcmp.eq.f32.partialorder %v938, 15.0
        %vm3071 = vcmp.eq.f32.partialorder %v939, 15.0
        %vm3072 = vcmp.eq.f32.partialorder %v940, 15.0
        %vm3073 = vcmp.eq.f32.partialorder %v941, 15.0
        %vm3074 = vcmp.eq.f32.partialorder %v942, 15.0
        %vm3075 = vcmp.eq.f32.partialorder %v943, 15.0
        %vm3076 = vcmp.eq.f32.partialorder %v944, 15.0
        %vm3077 = vcmp.eq.f32.partialorder %v945, 15.0
        %vm3078 = vcmp.eq.f32.partialorder %v946, 15.0
        %vm3079 = vcmp.eq.f32.partialorder %v947, 15.0
        %vm3080 = vcmp.eq.f32.partialorder %v948, 15.0
        %v3081 = vsel %vm3049, 1, 0
        %v3082 = vsel %vm3050, 1, 0
        %v3083 = vsel %vm3051, 1, 0
        %v3084 = vsel %vm3052, 1, 0
        %v3085 = vsel %vm3053, 1, 0
        %v3086 = vsel %vm3054, 1, 0
        %v3087 = vsel %vm3055, 1, 0
        %v3088 = vsel %vm3056, 1, 0
        %v3089 = vsel %vm3057, 1, 0
        %v3090 = vsel %vm3058, 1, 0
        %v3091 = vsel %vm3059, 1, 0
        %v3092 = vsel %vm3060, 1, 0
        %v3093 = vsel %vm3061, 1, 0
        %v3094 = vsel %vm3062, 1, 0
        %v3095 = vsel %vm3063, 1, 0
        %v3096 = vsel %vm3064, 1, 0
        %v3097 = vsel %vm3065, 1, 0
        %v3098 = vsel %vm3066, 1, 0
        %v3099 = vsel %vm3067, 1, 0
        %v3100 = vsel %vm3068, 1, 0
        %v3101 = vsel %vm3069, 1, 0
        %v3102 = vsel %vm3070, 1, 0
        %v3103 = vsel %vm3071, 1, 0
        %v3104 = vsel %vm3072, 1, 0
        %v3105 = vsel %vm3073, 1, 0
        %v3106 = vsel %vm3074, 1, 0
        %v3107 = vsel %vm3075, 1, 0
        %v3108 = vsel %vm3076, 1, 0
        %v3109 = vsel %vm3077, 1, 0
        %v3110 = vsel %vm3078, 1, 0
        %v3111 = vsel %vm3079, 1, 0
        %v3112 = vsel %vm3080, 1, 0
        %v3113 = vcvt.s32.f32 %v3081
        %v3114 = vcvt.s32.f32 %v3082
        %v3115 = vcvt.s32.f32 %v3083
        %v3116 = vcvt.s32.f32 %v3084
        %v3117 = vcvt.s32.f32 %v3085
        %v3118 = vcvt.s32.f32 %v3086
        %v3119 = vcvt.s32.f32 %v3087
        %v3120 = vcvt.s32.f32 %v3088
        %v3121 = vcvt.s32.f32 %v3089
        %v3122 = vcvt.s32.f32 %v3090
        %v3123 = vcvt.s32.f32 %v3091
        %v3124 = vcvt.s32.f32 %v3092
        %v3125 = vcvt.s32.f32 %v3093
        %v3126 = vcvt.s32.f32 %v3094
        %v3127 = vcvt.s32.f32 %v3095
        %v3128 = vcvt.s32.f32 %v3096
        %v3129 = vcvt.s32.f32 %v3097
        %v3130 = vcvt.s32.f32 %v3098
        %v3131 = vcvt.s32.f32 %v3099
        %v3132 = vcvt.s32.f32 %v3100
        %v3133 = vcvt.s32.f32 %v3101
        %v3134 = vcvt.s32.f32 %v3102
        %v3135 = vcvt.s32.f32 %v3103
        %v3136 = vcvt.s32.f32 %v3104
        %v3137 = vcvt.s32.f32 %v3105
        %v3138 = vcvt.s32.f32 %v3106
        %v3139 = vcvt.s32.f32 %v3107
        %v3140 = vcvt.s32.f32 %v3108
        %v3141 = vcvt.s32.f32 %v3109
        %v3142 = vcvt.s32.f32 %v3110
        %v3143 = vcvt.s32.f32 %v3111
        %v3144 = vcvt.s32.f32 %v3112
        %v3145 = vadd.f32 %v3113, %v3114
        %v3146 = vadd.f32 %v3145, %v3115
        %v3147 = vadd.f32 %v3146, %v3116
        %v3148 = vadd.f32 %v3147, %v3117
        %v3149 = vadd.f32 %v3148, %v3118
        %v3150 = vadd.f32 %v3149, %v3119
        %v3151 = vadd.f32 %v3150, %v3120
        %v3152 = vadd.f32 %v3151, %v3121
        %v3153 = vadd.f32 %v3152, %v3122
        %v3154 = vadd.f32 %v3153, %v3123
        %v3155 = vadd.f32 %v3154, %v3124
        %v3156 = vadd.f32 %v3155, %v3125
        %v3157 = vadd.f32 %v3156, %v3126
        %v3158 = vadd.f32 %v3157, %v3127
        %v3159 = vadd.f32 %v3158, %v3128
        %v3160 = vadd.f32 %v3159, %v3129
        %v3161 = vadd.f32 %v3160, %v3130
        %v3162 = vadd.f32 %v3161, %v3131
        %v3163 = vadd.f32 %v3162, %v3132
        %v3164 = vadd.f32 %v3163, %v3133
        %v3165 = vadd.f32 %v3164, %v3134
        %v3166 = vadd.f32 %v3165, %v3135
        %v3167 = vadd.f32 %v3166, %v3136
        %v3168 = vadd.f32 %v3167, %v3137
        %v3169 = vadd.f32 %v3168, %v3138
        %v3170 = vadd.f32 %v3169, %v3139
        %v3171 = vadd.f32 %v3170, %v3140
        %v3172 = vadd.f32 %v3171, %v3141
        %v3173 = vadd.f32 %v3172, %v3142
        %v3174 = vadd.f32 %v3173, %v3143
        %v3175 = vadd.f32 %v3174, %v3144
        %3176 = vadd.xlane.f32.xlu0 %v3175
        %v3177 = vpop.xlane.xlu0 %3176
        %v3178 = vrot.slane %v3177, 4
        %v3179 = vadd.f32 %v3177, %v3178
        %v3180 = vrot.slane %v3179, 2
        %v3181 = vadd.f32 %v3179, %v3180
        %v3182 = vrot.slane %v3181, 1
        %v3183 = vadd.f32 %v3181, %v3182
        %s3184 = vtos %v3183
        %vm3185 = vcmp.eq.s32.totalorder %v910, 15
        %v3186 = vstv %s3184
        %v3187 = vsel %vm3185, %v3186, 0.0
        %v3188 = vadd.f32 %v3048, %v3187
        %p3189 = scmp.eq.s32.totalorder %s22, 0
        // Predicated region
        $region99: #{tpu_custom_call.1} parent=89 // pred_check
          %p3190 = pneg %p3189
        $region100: #{tpu_custom_call.1} parent=89 // pred_check_branch
          %3192 = sbr.rel (%p3190) target = $region102
        $region101: #{tpu_custom_call.1} parent=89 // pred_region
          %3193 = vst [vmem:[%s699] sm:$0x1] %v3188
        $region102: #{tpu_custom_call.1} parent=89 // pred_fallthru
          _
        %p3194 = scmp.ne.s32.totalorder %s22, 0
        // Predicated region
        $region103: #{tpu_custom_call.1} parent=89 // pred_check
          %p3195 = pneg %p3194
        $region104: #{tpu_custom_call.1} parent=89 // pred_check_branch
          %3197 = sbr.rel (%p3195) target = $region106
        $region105: #{tpu_custom_call.1} parent=89 // pred_region
          %v3198 = vld [vmem:[%s699] sm:$0x1]
          %v3199 = vadd.f32 %v3198, %v3188
          %3200 = vst [vmem:[%s699] sm:$0x1] %v3199
        $region106: #{tpu_custom_call.1} parent=89 // pred_fallthru
          _
        %s3201 = sand.u32 %s86, 1
        %s3202 = scalar_lea.sflag [#allocation3], %s3201
        %s3203 = sand.u32 %s86, 1
        %s3204 = scalar_lea.vmem [#allocation6], %s3203
        // Predicated region
        $region107: #{tpu_custom_call.1} parent=89 // pred_check
          %p3205 = pneg %p96
        $region108: #{tpu_custom_call.1} parent=89 // pred_check_branch
          %3207 = sbr.rel (%p3205) target = $region110
        $region109: #{tpu_custom_call.1} parent=89 // pred_region
          %s3209 = ssub.s32 16, 16
          %3210 = vsyncadd %s3202, %s3209
          %s3211 = smul.addr %s21, 16
          %s3212 = scalar_lea.hbm %s2, %s3211
          %s3214 = sshll.u32 %s3204, 4
          %s3215 = int_to_ptr.vmem [resolvable:$true] %s3214
          %3217 = dma.vmem_to_hbm [thread:$0]  %s3215, 16, %s3212, %s3202
        $region110: #{tpu_custom_call.1} parent=89 // pred_fallthru
          _
      $region90: #{tpu_custom_call.1} parent=5 // pred_fallthru
        _
      %p3218 = scmp.le.s32.totalorder 2, %s12
      // Predicated region
      $region111: #{tpu_custom_call.1} parent=5 // pred_check
        %p3219 = pneg %p3218
      $region112: #{tpu_custom_call.1} parent=5 // pred_check_branch
        %3221 = sbr.rel (%p3219) target = $region114
      $region113: #{tpu_custom_call.1} parent=5 // pred_region
        %s3222 = ssub.s32 %s12, 2
        // Predicated region
        $region115: #{tpu_custom_call.1} parent=113 // pred_check
          %p3223 = pneg %p102
        $region116: #{tpu_custom_call.1} parent=113 // pred_check_branch
          %3225 = sbr.rel (%p3223) target = $region118
        $region117: #{tpu_custom_call.1} parent=113 // pred_region
          %s3226 = sand.u32 %s87, 1
          %s3227 = scalar_lea.sflag [#allocation3], %s3226
          %s3228 = sand.u32 %s87, 1
          %s3229 = scalar_lea.vmem [#allocation6], %s3228
          %3230 = dma.done %s3227, 16
        $region118: #{tpu_custom_call.1} parent=113 // pred_fallthru
          _
      $region114: #{tpu_custom_call.1} parent=5 // pred_fallthru
        _
    $region6: #{tpu_custom_call.1} parent=1 // loop_footer
      %s16 = sadd.s32 1, %s12
    $region7: #{tpu_custom_call.1} parent=1 // loop_footer_branch
      %11 = sbr.rel target = $region3
    $region8: #{tpu_custom_call.1} parent=1 // loop_exit
      _
    %3231 = vsyncpa [#allocation3], 1
    %s3232 = scalar_lea.sflag [#allocation3], 1
    %3233 = vsyncpa %s3232, 1
    %3234 = vsyncpa [#allocation4], 1
    %s3235 = scalar_lea.sflag [#allocation4], 1
    %3236 = vsyncpa %s3235, 1

</llo_original>
